<compile_context>
chip_gen: v7x
topology: tpu7x:2x2x1
jax: 0.10.0
libtpu: 0.0.40
codegen_flags: <defaults>
</compile_context>

<pallas_src>
import functools

import jax
import jax.numpy as jnp
from jax.experimental import pallas as pl
from jax.experimental.pallas import tpu as pltpu


# ----------------------------------------------------------------------------
# Parameter construction (deterministic, mirrors IntensitySum.__init__)
# ----------------------------------------------------------------------------
def create_displaced_gaussian(N, center, sigma=3.0):
    x = jnp.arange(N, dtype=jnp.float32)
    y = jnp.arange(N, dtype=jnp.float32)
    xv, yv = jnp.meshgrid(x, y, indexing="ij")
    return jnp.exp(
        -((xv - center[0]) ** 2 + (yv - center[1]) ** 2) / (2.0 * sigma ** 2)
    )


def make_gaussians(disp, size, scale_factor):
    centers = [(19 + disp, 19 + disp), (19 + disp, 49 + disp), (19 + disp, 81 + disp),
               (50 + disp, 15 + disp), (50 + disp, 38 + disp), (50 + disp, 62 + disp),
               (50 + disp, 85 + disp), (81 + disp, 19 + disp), (81 + disp, 49 + disp),
               (81 + disp, 81 + disp)]
    tensors = []
    for c in centers:
        cn = tuple(v * scale_factor for v in c)
        tensors.append(create_displaced_gaussian(size, cn, sigma=3.0))
    # stacked along last dim -> (N, N, 10), same as nn.Parameter(torch.stack(..., dim=-1))
    return jnp.stack(tensors, axis=-1)


# ----------------------------------------------------------------------------
# Pallas kernel: out[b, k] = sum_p  x_flat[b, p] * g_flat[p, k]
# ----------------------------------------------------------------------------
def intensity_sum_kernel(x_ref, g_ref, o_ref):
    # Single-tile matmul on the MXU; the sum over (i, j) is the contraction.
    # HIGHEST precision keeps the f32 reduction faithful to the PyTorch f32 sum.
    o_ref[...] = jnp.dot(
        x_ref[...],
        g_ref[...],
        preferred_element_type=jnp.float32,
        precision=jax.lax.Precision.HIGHEST,
    ).astype(o_ref.dtype)


def _round_up(n, m):
    return ((n + m - 1) // m) * m


@functools.partial(jax.jit, static_argnames=("tb",))
def intensity_sum_pallas(x, gaussians, *, tb=None):
    """x: (B, N, N) f32, gaussians: (N, N, K) f32 -> (B, K) f32 via Pallas."""
    B, N, _ = x.shape
    K = gaussians.shape[-1]
    NN = N * N

    x_flat = x.reshape(B, NN).astype(jnp.float32)        # row-major flatten of (i, j)
    g_flat = gaussians.reshape(NN, K).astype(jnp.float32)

    # Lane-dense output: pad K -> multiple of 128 (padded columns are zero,
    # they contribute nothing and are sliced off below).
    kp = _round_up(max(K, 128), 128)
    g_pad = jnp.zeros((NN, kp), jnp.float32).at[:, :K].set(g_flat)

    # Batch tile: multiple of 8 sublanes.  Cap so the double-buffered x stream
    # fits a ~24 MiB VMEM budget (comfortable even on v7x's 64 MiB VMEM).
    if tb is None:
        x_budget = 24 * 1024 * 1024
        tb_cap = max(8, (x_budget // (2 * NN * 4)) // 8 * 8)
        tb = min(tb_cap, 1024, _round_up(B, 8))
    tb = max(8, _round_up(tb, 8))
    b_pad = _round_up(B, tb)
    if b_pad != B:
        x_flat = jnp.pad(x_flat, ((0, b_pad - B), (0, 0)))

    grid = (b_pad // tb,)

    # VMEM limit: double-buffered x + resident gaussians + double-buffered out,
    # plus headroom; never exceed 64 MiB (v7x physical VMEM).
    vmem_bytes = 4 * (2 * tb * NN + 2 * NN * kp + 2 * tb * kp) + (2 << 20)
    vmem_limit = int(min(64 * 1024 * 1024, max(vmem_bytes, 16 * 1024 * 1024)))

    cost = pl.CostEstimate(
        flops=2 * b_pad * NN * kp,
        transcendentals=0,
        bytes_accessed=4 * (b_pad * NN + NN * kp + b_pad * kp),
    )

    out = pl.pallas_call(
        intensity_sum_kernel,
        out_shape=jax.ShapeDtypeStruct((b_pad, kp), jnp.float32),
        grid=grid,
        in_specs=[
            pl.BlockSpec((tb, NN), lambda i: (i, 0)),   # stream x over batch tiles
            pl.BlockSpec((NN, kp), lambda i: (0, 0)),   # gaussians resident
        ],
        out_specs=pl.BlockSpec((tb, kp), lambda i: (i, 0)),
        compiler_params=pltpu.CompilerParams(
            dimension_semantics=("parallel",),          # megacore-shardable on v7x
            vmem_limit_bytes=vmem_limit,
        ),
        cost_estimate=cost,
    )(x_flat, g_pad)

    return out[:B, :K]


def intensity_sum(x, gaussians, *, min_batch_for_pallas=512):
    """Dispatch: plain XLA einsum for tiny batches, Pallas kernel for large B."""
    if x.shape[0] < min_batch_for_pallas:
        # Launch + per-step overhead dominates below this; let XLA fuse it.
        return jnp.einsum("bij,ijk->bk", x, gaussians)
    return intensity_sum_pallas(x, gaussians)


# ----------------------------------------------------------------------------
# Reference (pure JAX) for sanity checking
# ----------------------------------------------------------------------------
def intensity_sum_ref(x, gaussians):
    return jnp.einsum("bij,ijk->bk", x, gaussians)


if __name__ == "__main__":
    # Small, self-consistent configuration: N = 32, scale_factor brings the
    # ~[15, 85] center coordinates into the 32x32 grid.
    disp = 0
    size = 32
    scale_factor = size / 100.0
    B = 2

    gaussians = make_gaussians(disp, size, scale_factor)  # (32, 32, 10)

    key = jax.random.PRNGKey(0)
    x = jax.random.normal(key, (B, size, size), dtype=jnp.float32)

    # Exercise the Pallas path explicitly (the dispatcher would pick einsum at B=2).
    out = intensity_sum_pallas(x, gaussians)
    out = jax.block_until_ready(out)

    ref = intensity_sum_ref(x, gaussians)
    assert out.shape == (B, 10), out.shape
    assert jnp.allclose(out, ref, atol=1e-4, rtol=1e-4), (out, ref)

    # Also sanity-check the dispatcher (einsum path at small B).
    out2 = jax.block_until_ready(intensity_sum(x, gaussians))
    assert jnp.allclose(out2, ref, atol=1e-4, rtol=1e-4)

    print("KERNEL_OK")
</pallas_src>

<mosaic_0001>
module attributes {stable_mosaic.version = 11 : i64} {
  func.func @intensity_sum_kernel(%arg0: i32, %arg1: memref<8x1024xf32, #tpu.memory_space<vmem>>, %arg2: memref<1024x128xf32, #tpu.memory_space<vmem>>, %arg3: memref<8x128xf32, #tpu.memory_space<vmem>>) attributes {dimension_semantics = [#tpu.dimension_semantics<parallel>], iteration_bounds = array<i64: 1>, scalar_prefetch = 0 : i64, scratch_operands = 0 : i64, tpu.core_type = #tpu.core_type<tc>, window_params = [{transform_indices = @transform_0, window_bounds = array<i64: 8, 1024>}, {pipeline_mode = #tpu.pipeline_mode<synchronous>, transform_indices = @transform_1, window_bounds = array<i64: 1024, 128>}, {transform_indices = @transform_2, window_bounds = array<i64: 8, 128>}]} {
    %c0 = arith.constant 0 : index
    %c0_0 = arith.constant 0 : index
    %0 = vector.load %arg1[%c0, %c0_0] : memref<8x1024xf32, #tpu.memory_space<vmem>>, vector<8x1024xf32>
    %c0_1 = arith.constant 0 : index
    %c0_2 = arith.constant 0 : index
    %1 = vector.load %arg2[%c0_1, %c0_2] : memref<1024x128xf32, #tpu.memory_space<vmem>>, vector<1024x128xf32>
    %cst = arith.constant dense<0.000000e+00> : vector<8x128xf32>
    %2 = tpu.matmul %0, %1, %cst {dimension_numbers = #tpu.dot_dimension_numbers<[1], [0], [0], [1], [0, 0, 1, 1], [], []>, precision = #tpu.contract_precision<fp32>} : vector<8x1024xf32>, vector<1024x128xf32>, vector<8x128xf32> -> vector<8x128xf32>
    %c0_3 = arith.constant 0 : index
    %c0_4 = arith.constant 0 : index
    %3 = vector.load %arg3[%c0_3, %c0_4] : memref<8x128xf32, #tpu.memory_space<vmem>>, vector<8x128xf32>
    tpu.vector_store %arg3[%c0_3, %c0_4], %2 {strides = array<i32>} : memref<8x128xf32, #tpu.memory_space<vmem>>, vector<8x128xf32>,
    return
  }
  func.func @transform_0(%arg0: i32) -> (i32, i32) {
    %c0_i32 = arith.constant 0 : i32
    %c0_i32_0 = arith.constant 0 : i32
    return %arg0, %c0_i32 : i32, i32
  }
  func.func @transform_1(%arg0: i32) -> (i32, i32) {
    %c0_i32 = arith.constant 0 : i32
    %c0_i32_0 = arith.constant 0 : i32
    %c0_i32_1 = arith.constant 0 : i32
    return %c0_i32, %c0_i32_0 : i32, i32
  }
  func.func @transform_2(%arg0: i32) -> (i32, i32) {
    %c0_i32 = arith.constant 0 : i32
    %c0_i32_0 = arith.constant 0 : i32
    return %arg0, %c0_i32 : i32, i32
  }
}

</mosaic_0001>

<llo_original>
// kernel: intensity_sum_pallas.1
$region0: #{intensity_sum_pallas.1}
  #allocation0 [shape = 'u32[]', space=smem, size = 0x4, offset = 0x4, fixed_abs, tag = 'smem constant byte address 0x4 - core index']
  #allocation1 [shape = 'u32[144,128]{1,0:T(1,128)}', space=vmem, size = 0x12000, scoped, tag = 'internal scratch']
  %s0 = inlined_call_operand.vmem [shape: f32[8,1024], index: 0, kind: input, shape index: {}]
  %s1 = inlined_call_operand.vmem [shape: f32[1024,128], index: 1, kind: input, shape index: {}]
  %s2 = inlined_call_operand.vmem [shape: f32[8,128], index: 2, kind: output, shape index: {}]
  %s3 = sld [smem:[#allocation0]]
  $region18: #{intensity_sum_pallas.1} parent=0
    _
  %s5 = ssub.s32 1, %s3
  %s6 = scalar_select 0, %s5, %s3
  // Predicated region
  $region2: #{intensity_sum_pallas.1} parent=0 // pred_check
    _
  $region3: #{intensity_sum_pallas.1} parent=0 // pred_check_branch
    %8 = sbr.rel (0) target = $region5
  $region4: #{intensity_sum_pallas.1} parent=0 // pred_region
    _
  $region5: #{intensity_sum_pallas.1} parent=0 // pred_fallthru
    _
  // Predicated region
  $region6: #{intensity_sum_pallas.1} parent=0 // pred_check
    _
  $region7: #{intensity_sum_pallas.1} parent=0 // pred_check_branch
    %10 = sbr.rel (0) target = $region9
  $region8: #{intensity_sum_pallas.1} parent=0 // pred_region
    _
  $region9: #{intensity_sum_pallas.1} parent=0 // pred_fallthru
    _
  %v11 = vld [vmem:[%s0] sm:$0xff]
  %v12 = vld [vmem:[%s0 + $0x8] sm:$0xff]
  %v13 = vld [vmem:[%s0 + $0x10] sm:$0xff]
  %v14 = vld [vmem:[%s0 + $0x18] sm:$0xff]
  %v15 = vld [vmem:[%s0 + $0x20] sm:$0xff]
  %v16 = vld [vmem:[%s0 + $0x28] sm:$0xff]
  %v17 = vld [vmem:[%s0 + $0x30] sm:$0xff]
  %v18 = vld [vmem:[%s0 + $0x38] sm:$0xff]
  %v19 = vld [vmem:[%s1] sm:$0xff]
  %v20 = vld [vmem:[%s1 + $0x8] sm:$0xff]
  %v21 = vld [vmem:[%s1 + $0x10] sm:$0xff]
  %v22 = vld [vmem:[%s1 + $0x18] sm:$0xff]
  %v23 = vld [vmem:[%s1 + $0x20] sm:$0xff]
  %v24 = vld [vmem:[%s1 + $0x28] sm:$0xff]
  %v25 = vld [vmem:[%s1 + $0x30] sm:$0xff]
  %v26 = vld [vmem:[%s1 + $0x38] sm:$0xff]
  %v27 = vld [vmem:[%s1 + $0x40] sm:$0xff]
  %v28 = vld [vmem:[%s1 + $0x48] sm:$0xff]
  %v29 = vld [vmem:[%s1 + $0x50] sm:$0xff]
  %v30 = vld [vmem:[%s1 + $0x58] sm:$0xff]
  %v31 = vld [vmem:[%s1 + $0x60] sm:$0xff]
  %v32 = vld [vmem:[%s1 + $0x68] sm:$0xff]
  %v33 = vld [vmem:[%s1 + $0x70] sm:$0xff]
  %v34 = vld [vmem:[%s1 + $0x78] sm:$0xff]
  %v35 = vld [vmem:[%s1 + $0x80] sm:$0xff]
  %v36 = vld [vmem:[%s1 + $0x88] sm:$0xff]
  %v37 = vld [vmem:[%s1 + $0x90] sm:$0xff]
  %v38 = vld [vmem:[%s1 + $0x98] sm:$0xff]
  %v39 = vld [vmem:[%s1 + $0xa0] sm:$0xff]
  %v40 = vld [vmem:[%s1 + $0xa8] sm:$0xff]
  %v41 = vld [vmem:[%s1 + $0xb0] sm:$0xff]
  %v42 = vld [vmem:[%s1 + $0xb8] sm:$0xff]
  %v43 = vld [vmem:[%s1 + $0xc0] sm:$0xff]
  %v44 = vld [vmem:[%s1 + $0xc8] sm:$0xff]
  %v45 = vld [vmem:[%s1 + $0xd0] sm:$0xff]
  %v46 = vld [vmem:[%s1 + $0xd8] sm:$0xff]
  %v47 = vld [vmem:[%s1 + $0xe0] sm:$0xff]
  %v48 = vld [vmem:[%s1 + $0xe8] sm:$0xff]
  %v49 = vld [vmem:[%s1 + $0xf0] sm:$0xff]
  %v50 = vld [vmem:[%s1 + $0xf8] sm:$0xff]
  %v51 = vld [vmem:[%s1 + $0x100] sm:$0xff]
  %v52 = vld [vmem:[%s1 + $0x108] sm:$0xff]
  %v53 = vld [vmem:[%s1 + $0x110] sm:$0xff]
  %v54 = vld [vmem:[%s1 + $0x118] sm:$0xff]
  %v55 = vld [vmem:[%s1 + $0x120] sm:$0xff]
  %v56 = vld [vmem:[%s1 + $0x128] sm:$0xff]
  %v57 = vld [vmem:[%s1 + $0x130] sm:$0xff]
  %v58 = vld [vmem:[%s1 + $0x138] sm:$0xff]
  %v59 = vld [vmem:[%s1 + $0x140] sm:$0xff]
  %v60 = vld [vmem:[%s1 + $0x148] sm:$0xff]
  %v61 = vld [vmem:[%s1 + $0x150] sm:$0xff]
  %v62 = vld [vmem:[%s1 + $0x158] sm:$0xff]
  %v63 = vld [vmem:[%s1 + $0x160] sm:$0xff]
  %v64 = vld [vmem:[%s1 + $0x168] sm:$0xff]
  %v65 = vld [vmem:[%s1 + $0x170] sm:$0xff]
  %v66 = vld [vmem:[%s1 + $0x178] sm:$0xff]
  %v67 = vld [vmem:[%s1 + $0x180] sm:$0xff]
  %v68 = vld [vmem:[%s1 + $0x188] sm:$0xff]
  %v69 = vld [vmem:[%s1 + $0x190] sm:$0xff]
  %v70 = vld [vmem:[%s1 + $0x198] sm:$0xff]
  %v71 = vld [vmem:[%s1 + $0x1a0] sm:$0xff]
  %v72 = vld [vmem:[%s1 + $0x1a8] sm:$0xff]
  %v73 = vld [vmem:[%s1 + $0x1b0] sm:$0xff]
  %v74 = vld [vmem:[%s1 + $0x1b8] sm:$0xff]
  %v75 = vld [vmem:[%s1 + $0x1c0] sm:$0xff]
  %v76 = vld [vmem:[%s1 + $0x1c8] sm:$0xff]
  %v77 = vld [vmem:[%s1 + $0x1d0] sm:$0xff]
  %v78 = vld [vmem:[%s1 + $0x1d8] sm:$0xff]
  %v79 = vld [vmem:[%s1 + $0x1e0] sm:$0xff]
  %v80 = vld [vmem:[%s1 + $0x1e8] sm:$0xff]
  %v81 = vld [vmem:[%s1 + $0x1f0] sm:$0xff]
  %v82 = vld [vmem:[%s1 + $0x1f8] sm:$0xff]
  %v83 = vld [vmem:[%s1 + $0x200] sm:$0xff]
  %v84 = vld [vmem:[%s1 + $0x208] sm:$0xff]
  %v85 = vld [vmem:[%s1 + $0x210] sm:$0xff]
  %v86 = vld [vmem:[%s1 + $0x218] sm:$0xff]
  %v87 = vld [vmem:[%s1 + $0x220] sm:$0xff]
  %v88 = vld [vmem:[%s1 + $0x228] sm:$0xff]
  %v89 = vld [vmem:[%s1 + $0x230] sm:$0xff]
  %v90 = vld [vmem:[%s1 + $0x238] sm:$0xff]
  %v91 = vld [vmem:[%s1 + $0x240] sm:$0xff]
  %v92 = vld [vmem:[%s1 + $0x248] sm:$0xff]
  %v93 = vld [vmem:[%s1 + $0x250] sm:$0xff]
  %v94 = vld [vmem:[%s1 + $0x258] sm:$0xff]
  %v95 = vld [vmem:[%s1 + $0x260] sm:$0xff]
  %v96 = vld [vmem:[%s1 + $0x268] sm:$0xff]
  %v97 = vld [vmem:[%s1 + $0x270] sm:$0xff]
  %v98 = vld [vmem:[%s1 + $0x278] sm:$0xff]
  %v99 = vld [vmem:[%s1 + $0x280] sm:$0xff]
  %v100 = vld [vmem:[%s1 + $0x288] sm:$0xff]
  %v101 = vld [vmem:[%s1 + $0x290] sm:$0xff]
  %v102 = vld [vmem:[%s1 + $0x298] sm:$0xff]
  %v103 = vld [vmem:[%s1 + $0x2a0] sm:$0xff]
  %v104 = vld [vmem:[%s1 + $0x2a8] sm:$0xff]
  %v105 = vld [vmem:[%s1 + $0x2b0] sm:$0xff]
  %v106 = vld [vmem:[%s1 + $0x2b8] sm:$0xff]
  %v107 = vld [vmem:[%s1 + $0x2c0] sm:$0xff]
  %v108 = vld [vmem:[%s1 + $0x2c8] sm:$0xff]
  %v109 = vld [vmem:[%s1 + $0x2d0] sm:$0xff]
  %v110 = vld [vmem:[%s1 + $0x2d8] sm:$0xff]
  %v111 = vld [vmem:[%s1 + $0x2e0] sm:$0xff]
  %v112 = vld [vmem:[%s1 + $0x2e8] sm:$0xff]
  %v113 = vld [vmem:[%s1 + $0x2f0] sm:$0xff]
  %v114 = vld [vmem:[%s1 + $0x2f8] sm:$0xff]
  %v115 = vld [vmem:[%s1 + $0x300] sm:$0xff]
  %v116 = vld [vmem:[%s1 + $0x308] sm:$0xff]
  %v117 = vld [vmem:[%s1 + $0x310] sm:$0xff]
  %v118 = vld [vmem:[%s1 + $0x318] sm:$0xff]
  %v119 = vld [vmem:[%s1 + $0x320] sm:$0xff]
  %v120 = vld [vmem:[%s1 + $0x328] sm:$0xff]
  %v121 = vld [vmem:[%s1 + $0x330] sm:$0xff]
  %v122 = vld [vmem:[%s1 + $0x338] sm:$0xff]
  %v123 = vld [vmem:[%s1 + $0x340] sm:$0xff]
  %v124 = vld [vmem:[%s1 + $0x348] sm:$0xff]
  %v125 = vld [vmem:[%s1 + $0x350] sm:$0xff]
  %v126 = vld [vmem:[%s1 + $0x358] sm:$0xff]
  %v127 = vld [vmem:[%s1 + $0x360] sm:$0xff]
  %v128 = vld [vmem:[%s1 + $0x368] sm:$0xff]
  %v129 = vld [vmem:[%s1 + $0x370] sm:$0xff]
  %v130 = vld [vmem:[%s1 + $0x378] sm:$0xff]
  %v131 = vld [vmem:[%s1 + $0x380] sm:$0xff]
  %v132 = vld [vmem:[%s1 + $0x388] sm:$0xff]
  %v133 = vld [vmem:[%s1 + $0x390] sm:$0xff]
  %v134 = vld [vmem:[%s1 + $0x398] sm:$0xff]
  %v135 = vld [vmem:[%s1 + $0x3a0] sm:$0xff]
  %v136 = vld [vmem:[%s1 + $0x3a8] sm:$0xff]
  %v137 = vld [vmem:[%s1 + $0x3b0] sm:$0xff]
  %v138 = vld [vmem:[%s1 + $0x3b8] sm:$0xff]
  %v139 = vld [vmem:[%s1 + $0x3c0] sm:$0xff]
  %v140 = vld [vmem:[%s1 + $0x3c8] sm:$0xff]
  %v141 = vld [vmem:[%s1 + $0x3d0] sm:$0xff]
  %v142 = vld [vmem:[%s1 + $0x3d8] sm:$0xff]
  %v143 = vld [vmem:[%s1 + $0x3e0] sm:$0xff]
  %v144 = vld [vmem:[%s1 + $0x3e8] sm:$0xff]
  %v145 = vld [vmem:[%s1 + $0x3f0] sm:$0xff]
  %v146 = vld [vmem:[%s1 + $0x3f8] sm:$0xff]
  %147 = vmatprep.subr.mxu0 0.0
  %v148 = vand.u32 %v19, 4294901760
  %149 = vmatpush1.msra.mxu0 %v148
  %150 = vmatprep.subr.mxu0 0.0
  %v151 = vand.u32 %v20, 4294901760
  %152 = vmatpush1.msra.mxu0 %v151
  %153 = vmatprep.subr.mxu0 0.0
  %v154 = vand.u32 %v21, 4294901760
  %155 = vmatpush1.msra.mxu0 %v154
  %156 = vmatprep.subr.mxu0 0.0
  %v157 = vand.u32 %v22, 4294901760
  %158 = vmatpush1.msra.mxu0 %v157
  %159 = vmatprep.subr.mxu0 0.0
  %v160 = vand.u32 %v23, 4294901760
  %161 = vmatpush1.msra.mxu0 %v160
  %162 = vmatprep.subr.mxu0 0.0
  %v163 = vand.u32 %v24, 4294901760
  %164 = vmatpush1.msra.mxu0 %v163
  %165 = vmatprep.subr.mxu0 0.0
  %v166 = vand.u32 %v25, 4294901760
  %167 = vmatpush1.msra.mxu0 %v166
  %168 = vmatprep.subr.mxu0 0.0
  %v169 = vand.u32 %v26, 4294901760
  %170 = vmatpush1.msra.mxu0 %v169
  %171 = vmatprep.subr.mxu0 0.0
  %v172 = vand.u32 %v27, 4294901760
  %173 = vmatpush1.msra.mxu0 %v172
  %174 = vmatprep.subr.mxu0 0.0
  %v175 = vand.u32 %v28, 4294901760
  %176 = vmatpush1.msra.mxu0 %v175
  %177 = vmatprep.subr.mxu0 0.0
  %v178 = vand.u32 %v29, 4294901760
  %179 = vmatpush1.msra.mxu0 %v178
  %180 = vmatprep.subr.mxu0 0.0
  %v181 = vand.u32 %v30, 4294901760
  %182 = vmatpush1.msra.mxu0 %v181
  %183 = vmatprep.subr.mxu0 0.0
  %v184 = vand.u32 %v31, 4294901760
  %185 = vmatpush1.msra.mxu0 %v184
  %186 = vmatprep.subr.mxu0 0.0
  %v187 = vand.u32 %v32, 4294901760
  %188 = vmatpush1.msra.mxu0 %v187
  %189 = vmatprep.subr.mxu0 0.0
  %v190 = vand.u32 %v33, 4294901760
  %191 = vmatpush1.msra.mxu0 %v190
  %192 = vmatprep.subr.mxu0 0.0
  %v193 = vand.u32 %v34, 4294901760
  %194 = vmatpush1.msra.mxu0 %v193
  %195 = vmatprep.subr.mxu0 0.0
  %v196 = vand.u32 %v35, 4294901760
  %197 = vmatpush1.msra.mxu0 %v196
  %198 = vmatprep.subr.mxu0 0.0
  %v199 = vand.u32 %v36, 4294901760
  %200 = vmatpush1.msra.mxu0 %v199
  %201 = vmatprep.subr.mxu0 0.0
  %v202 = vand.u32 %v37, 4294901760
  %203 = vmatpush1.msra.mxu0 %v202
  %204 = vmatprep.subr.mxu0 0.0
  %v205 = vand.u32 %v38, 4294901760
  %206 = vmatpush1.msra.mxu0 %v205
  %207 = vmatprep.subr.mxu0 0.0
  %v208 = vand.u32 %v39, 4294901760
  %209 = vmatpush1.msra.mxu0 %v208
  %210 = vmatprep.subr.mxu0 0.0
  %v211 = vand.u32 %v40, 4294901760
  %212 = vmatpush1.msra.mxu0 %v211
  %213 = vmatprep.subr.mxu0 0.0
  %v214 = vand.u32 %v41, 4294901760
  %215 = vmatpush1.msra.mxu0 %v214
  %216 = vmatprep.subr.mxu0 0.0
  %v217 = vand.u32 %v42, 4294901760
  %218 = vmatpush1.msra.mxu0 %v217
  %219 = vmatprep.subr.mxu0 0.0
  %v220 = vand.u32 %v43, 4294901760
  %221 = vmatpush1.msra.mxu0 %v220
  %222 = vmatprep.subr.mxu0 0.0
  %v223 = vand.u32 %v44, 4294901760
  %224 = vmatpush1.msra.mxu0 %v223
  %225 = vmatprep.subr.mxu0 0.0
  %v226 = vand.u32 %v45, 4294901760
  %227 = vmatpush1.msra.mxu0 %v226
  %228 = vmatprep.subr.mxu0 0.0
  %v229 = vand.u32 %v46, 4294901760
  %230 = vmatpush1.msra.mxu0 %v229
  %231 = vmatprep.subr.mxu0 0.0
  %v232 = vand.u32 %v47, 4294901760
  %233 = vmatpush1.msra.mxu0 %v232
  %234 = vmatprep.subr.mxu0 0.0
  %v235 = vand.u32 %v48, 4294901760
  %236 = vmatpush1.msra.mxu0 %v235
  %237 = vmatprep.subr.mxu0 0.0
  %v238 = vand.u32 %v49, 4294901760
  %239 = vmatpush1.msra.mxu0 %v238
  %240 = vmatprep.subr.mxu0 0.0
  %v241 = vand.u32 %v50, 4294901760
  %242 = vmatpush1.msra.mxu0 %v241
  %v243 = vand.u32 %v12, 4294901760
  %v244 = vsub.f32 %v12, %v243
  %v245 = vand.u32 %v244, 4294901760
  %v246 = vsub.f32 %v244, %v245
  %v247 = vand.u32 %v246, 4294901760
  %248 = vmatprep.mubr.f32.mxu0 %v247
  %v249 = vand.u32 %v11, 4294901760
  %v250 = vsub.f32 %v11, %v249
  %v251 = vand.u32 %v250, 4294901760
  %v252 = vsub.f32 %v250, %v251
  %v253 = vand.u32 %v252, 4294901760
  %254 = vmatmul.mubr.f32.gmra.mrb[0].mxu0 %v253
  %v255 = vpop.f32.mrb[0].mxu0
  %v256 = vadd.f32 0.0, %v255
  %v257 = vpop.f32.mrb[0].mxu0
  %258 = vdwg.mxu0
  %259 = vmatprep.subr.mxu0 0.0
  %v260 = vand.u32 %v19, 4294901760
  %v261 = vsub.f32 %v19, %v260
  %v262 = vand.u32 %v261, 4294901760
  %v263 = vsub.f32 %v261, %v262
  %v264 = vand.u32 %v263, 4294901760
  %265 = vmatpush1.msra.mxu0 %v264
  %266 = vmatprep.subr.mxu0 0.0
  %v267 = vand.u32 %v20, 4294901760
  %v268 = vsub.f32 %v20, %v267
  %v269 = vand.u32 %v268, 4294901760
  %v270 = vsub.f32 %v268, %v269
  %v271 = vand.u32 %v270, 4294901760
  %272 = vmatpush1.msra.mxu0 %v271
  %273 = vmatprep.subr.mxu0 0.0
  %v274 = vand.u32 %v21, 4294901760
  %v275 = vsub.f32 %v21, %v274
  %v276 = vand.u32 %v275, 4294901760
  %v277 = vsub.f32 %v275, %v276
  %v278 = vand.u32 %v277, 4294901760
  %279 = vmatpush1.msra.mxu0 %v278
  %280 = vmatprep.subr.mxu0 0.0
  %v281 = vand.u32 %v22, 4294901760
  %v282 = vsub.f32 %v22, %v281
  %v283 = vand.u32 %v282, 4294901760
  %v284 = vsub.f32 %v282, %v283
  %v285 = vand.u32 %v284, 4294901760
  %286 = vmatpush1.msra.mxu0 %v285
  %287 = vmatprep.subr.mxu0 0.0
  %v288 = vand.u32 %v23, 4294901760
  %v289 = vsub.f32 %v23, %v288
  %v290 = vand.u32 %v289, 4294901760
  %v291 = vsub.f32 %v289, %v290
  %v292 = vand.u32 %v291, 4294901760
  %293 = vmatpush1.msra.mxu0 %v292
  %294 = vmatprep.subr.mxu0 0.0
  %v295 = vand.u32 %v24, 4294901760
  %v296 = vsub.f32 %v24, %v295
  %v297 = vand.u32 %v296, 4294901760
  %v298 = vsub.f32 %v296, %v297
  %v299 = vand.u32 %v298, 4294901760
  %300 = vmatpush1.msra.mxu0 %v299
  %301 = vmatprep.subr.mxu0 0.0
  %v302 = vand.u32 %v25, 4294901760
  %v303 = vsub.f32 %v25, %v302
  %v304 = vand.u32 %v303, 4294901760
  %v305 = vsub.f32 %v303, %v304
  %v306 = vand.u32 %v305, 4294901760
  %307 = vmatpush1.msra.mxu0 %v306
  %308 = vmatprep.subr.mxu0 0.0
  %v309 = vand.u32 %v26, 4294901760
  %v310 = vsub.f32 %v26, %v309
  %v311 = vand.u32 %v310, 4294901760
  %v312 = vsub.f32 %v310, %v311
  %v313 = vand.u32 %v312, 4294901760
  %314 = vmatpush1.msra.mxu0 %v313
  %315 = vmatprep.subr.mxu0 0.0
  %v316 = vand.u32 %v27, 4294901760
  %v317 = vsub.f32 %v27, %v316
  %v318 = vand.u32 %v317, 4294901760
  %v319 = vsub.f32 %v317, %v318
  %v320 = vand.u32 %v319, 4294901760
  %321 = vmatpush1.msra.mxu0 %v320
  %322 = vmatprep.subr.mxu0 0.0
  %v323 = vand.u32 %v28, 4294901760
  %v324 = vsub.f32 %v28, %v323
  %v325 = vand.u32 %v324, 4294901760
  %v326 = vsub.f32 %v324, %v325
  %v327 = vand.u32 %v326, 4294901760
  %328 = vmatpush1.msra.mxu0 %v327
  %329 = vmatprep.subr.mxu0 0.0
  %v330 = vand.u32 %v29, 4294901760
  %v331 = vsub.f32 %v29, %v330
  %v332 = vand.u32 %v331, 4294901760
  %v333 = vsub.f32 %v331, %v332
  %v334 = vand.u32 %v333, 4294901760
  %335 = vmatpush1.msra.mxu0 %v334
  %336 = vmatprep.subr.mxu0 0.0
  %v337 = vand.u32 %v30, 4294901760
  %v338 = vsub.f32 %v30, %v337
  %v339 = vand.u32 %v338, 4294901760
  %v340 = vsub.f32 %v338, %v339
  %v341 = vand.u32 %v340, 4294901760
  %342 = vmatpush1.msra.mxu0 %v341
  %343 = vmatprep.subr.mxu0 0.0
  %v344 = vand.u32 %v31, 4294901760
  %v345 = vsub.f32 %v31, %v344
  %v346 = vand.u32 %v345, 4294901760
  %v347 = vsub.f32 %v345, %v346
  %v348 = vand.u32 %v347, 4294901760
  %349 = vmatpush1.msra.mxu0 %v348
  %350 = vmatprep.subr.mxu0 0.0
  %v351 = vand.u32 %v32, 4294901760
  %v352 = vsub.f32 %v32, %v351
  %v353 = vand.u32 %v352, 4294901760
  %v354 = vsub.f32 %v352, %v353
  %v355 = vand.u32 %v354, 4294901760
  %356 = vmatpush1.msra.mxu0 %v355
  %357 = vmatprep.subr.mxu0 0.0
  %v358 = vand.u32 %v33, 4294901760
  %v359 = vsub.f32 %v33, %v358
  %v360 = vand.u32 %v359, 4294901760
  %v361 = vsub.f32 %v359, %v360
  %v362 = vand.u32 %v361, 4294901760
  %363 = vmatpush1.msra.mxu0 %v362
  %364 = vmatprep.subr.mxu0 0.0
  %v365 = vand.u32 %v34, 4294901760
  %v366 = vsub.f32 %v34, %v365
  %v367 = vand.u32 %v366, 4294901760
  %v368 = vsub.f32 %v366, %v367
  %v369 = vand.u32 %v368, 4294901760
  %370 = vmatpush1.msra.mxu0 %v369
  %371 = vmatprep.subr.mxu0 0.0
  %v372 = vand.u32 %v35, 4294901760
  %v373 = vsub.f32 %v35, %v372
  %v374 = vand.u32 %v373, 4294901760
  %v375 = vsub.f32 %v373, %v374
  %v376 = vand.u32 %v375, 4294901760
  %377 = vmatpush1.msra.mxu0 %v376
  %378 = vmatprep.subr.mxu0 0.0
  %v379 = vand.u32 %v36, 4294901760
  %v380 = vsub.f32 %v36, %v379
  %v381 = vand.u32 %v380, 4294901760
  %v382 = vsub.f32 %v380, %v381
  %v383 = vand.u32 %v382, 4294901760
  %384 = vmatpush1.msra.mxu0 %v383
  %385 = vmatprep.subr.mxu0 0.0
  %v386 = vand.u32 %v37, 4294901760
  %v387 = vsub.f32 %v37, %v386
  %v388 = vand.u32 %v387, 4294901760
  %v389 = vsub.f32 %v387, %v388
  %v390 = vand.u32 %v389, 4294901760
  %391 = vmatpush1.msra.mxu0 %v390
  %392 = vmatprep.subr.mxu0 0.0
  %v393 = vand.u32 %v38, 4294901760
  %v394 = vsub.f32 %v38, %v393
  %v395 = vand.u32 %v394, 4294901760
  %v396 = vsub.f32 %v394, %v395
  %v397 = vand.u32 %v396, 4294901760
  %398 = vmatpush1.msra.mxu0 %v397
  %399 = vmatprep.subr.mxu0 0.0
  %v400 = vand.u32 %v39, 4294901760
  %v401 = vsub.f32 %v39, %v400
  %v402 = vand.u32 %v401, 4294901760
  %v403 = vsub.f32 %v401, %v402
  %v404 = vand.u32 %v403, 4294901760
  %405 = vmatpush1.msra.mxu0 %v404
  %406 = vmatprep.subr.mxu0 0.0
  %v407 = vand.u32 %v40, 4294901760
  %v408 = vsub.f32 %v40, %v407
  %v409 = vand.u32 %v408, 4294901760
  %v410 = vsub.f32 %v408, %v409
  %v411 = vand.u32 %v410, 4294901760
  %412 = vmatpush1.msra.mxu0 %v411
  %413 = vmatprep.subr.mxu0 0.0
  %v414 = vand.u32 %v41, 4294901760
  %v415 = vsub.f32 %v41, %v414
  %v416 = vand.u32 %v415, 4294901760
  %v417 = vsub.f32 %v415, %v416
  %v418 = vand.u32 %v417, 4294901760
  %419 = vmatpush1.msra.mxu0 %v418
  %420 = vmatprep.subr.mxu0 0.0
  %v421 = vand.u32 %v42, 4294901760
  %v422 = vsub.f32 %v42, %v421
  %v423 = vand.u32 %v422, 4294901760
  %v424 = vsub.f32 %v422, %v423
  %v425 = vand.u32 %v424, 4294901760
  %426 = vmatpush1.msra.mxu0 %v425
  %427 = vmatprep.subr.mxu0 0.0
  %v428 = vand.u32 %v43, 4294901760
  %v429 = vsub.f32 %v43, %v428
  %v430 = vand.u32 %v429, 4294901760
  %v431 = vsub.f32 %v429, %v430
  %v432 = vand.u32 %v431, 4294901760
  %433 = vmatpush1.msra.mxu0 %v432
  %434 = vmatprep.subr.mxu0 0.0
  %v435 = vand.u32 %v44, 4294901760
  %v436 = vsub.f32 %v44, %v435
  %v437 = vand.u32 %v436, 4294901760
  %v438 = vsub.f32 %v436, %v437
  %v439 = vand.u32 %v438, 4294901760
  %440 = vmatpush1.msra.mxu0 %v439
  %441 = vmatprep.subr.mxu0 0.0
  %v442 = vand.u32 %v45, 4294901760
  %v443 = vsub.f32 %v45, %v442
  %v444 = vand.u32 %v443, 4294901760
  %v445 = vsub.f32 %v443, %v444
  %v446 = vand.u32 %v445, 4294901760
  %447 = vmatpush1.msra.mxu0 %v446
  %448 = vmatprep.subr.mxu0 0.0
  %v449 = vand.u32 %v46, 4294901760
  %v450 = vsub.f32 %v46, %v449
  %v451 = vand.u32 %v450, 4294901760
  %v452 = vsub.f32 %v450, %v451
  %v453 = vand.u32 %v452, 4294901760
  %454 = vmatpush1.msra.mxu0 %v453
  %455 = vmatprep.subr.mxu0 0.0
  %v456 = vand.u32 %v47, 4294901760
  %v457 = vsub.f32 %v47, %v456
  %v458 = vand.u32 %v457, 4294901760
  %v459 = vsub.f32 %v457, %v458
  %v460 = vand.u32 %v459, 4294901760
  %461 = vmatpush1.msra.mxu0 %v460
  %462 = vmatprep.subr.mxu0 0.0
  %v463 = vand.u32 %v48, 4294901760
  %v464 = vsub.f32 %v48, %v463
  %v465 = vand.u32 %v464, 4294901760
  %v466 = vsub.f32 %v464, %v465
  %v467 = vand.u32 %v466, 4294901760
  %468 = vmatpush1.msra.mxu0 %v467
  %469 = vmatprep.subr.mxu0 0.0
  %v470 = vand.u32 %v49, 4294901760
  %v471 = vsub.f32 %v49, %v470
  %v472 = vand.u32 %v471, 4294901760
  %v473 = vsub.f32 %v471, %v472
  %v474 = vand.u32 %v473, 4294901760
  %475 = vmatpush1.msra.mxu0 %v474
  %476 = vmatprep.subr.mxu0 0.0
  %v477 = vand.u32 %v50, 4294901760
  %v478 = vsub.f32 %v50, %v477
  %v479 = vand.u32 %v478, 4294901760
  %v480 = vsub.f32 %v478, %v479
  %v481 = vand.u32 %v480, 4294901760
  %482 = vmatpush1.msra.mxu0 %v481
  %v483 = vand.u32 %v12, 4294901760
  %484 = vmatprep.mubr.f32.mxu0 %v483
  %v485 = vand.u32 %v11, 4294901760
  %486 = vmatmul.mubr.f32.gmra.mrb[0].mxu0 %v485
  %v487 = vpop.f32.mrb[0].mxu0
  %v488 = vadd.f32 %v256, %v487
  %v489 = vpop.f32.mrb[0].mxu0
  %490 = vdwg.mxu0
  %491 = vmatprep.subr.mxu0 0.0
  %v492 = vand.u32 %v19, 4294901760
  %v493 = vsub.f32 %v19, %v492
  %494 = vmatpush1.msra.mxu0 %v493
  %495 = vmatprep.subr.mxu0 0.0
  %v496 = vand.u32 %v20, 4294901760
  %v497 = vsub.f32 %v20, %v496
  %498 = vmatpush1.msra.mxu0 %v497
  %499 = vmatprep.subr.mxu0 0.0
  %v500 = vand.u32 %v21, 4294901760
  %v501 = vsub.f32 %v21, %v500
  %502 = vmatpush1.msra.mxu0 %v501
  %503 = vmatprep.subr.mxu0 0.0
  %v504 = vand.u32 %v22, 4294901760
  %v505 = vsub.f32 %v22, %v504
  %506 = vmatpush1.msra.mxu0 %v505
  %507 = vmatprep.subr.mxu0 0.0
  %v508 = vand.u32 %v23, 4294901760
  %v509 = vsub.f32 %v23, %v508
  %510 = vmatpush1.msra.mxu0 %v509
  %511 = vmatprep.subr.mxu0 0.0
  %v512 = vand.u32 %v24, 4294901760
  %v513 = vsub.f32 %v24, %v512
  %514 = vmatpush1.msra.mxu0 %v513
  %515 = vmatprep.subr.mxu0 0.0
  %v516 = vand.u32 %v25, 4294901760
  %v517 = vsub.f32 %v25, %v516
  %518 = vmatpush1.msra.mxu0 %v517
  %519 = vmatprep.subr.mxu0 0.0
  %v520 = vand.u32 %v26, 4294901760
  %v521 = vsub.f32 %v26, %v520
  %522 = vmatpush1.msra.mxu0 %v521
  %523 = vmatprep.subr.mxu0 0.0
  %v524 = vand.u32 %v27, 4294901760
  %v525 = vsub.f32 %v27, %v524
  %526 = vmatpush1.msra.mxu0 %v525
  %527 = vmatprep.subr.mxu0 0.0
  %v528 = vand.u32 %v28, 4294901760
  %v529 = vsub.f32 %v28, %v528
  %530 = vmatpush1.msra.mxu0 %v529
  %531 = vmatprep.subr.mxu0 0.0
  %v532 = vand.u32 %v29, 4294901760
  %v533 = vsub.f32 %v29, %v532
  %534 = vmatpush1.msra.mxu0 %v533
  %535 = vmatprep.subr.mxu0 0.0
  %v536 = vand.u32 %v30, 4294901760
  %v537 = vsub.f32 %v30, %v536
  %538 = vmatpush1.msra.mxu0 %v537
  %539 = vmatprep.subr.mxu0 0.0
  %v540 = vand.u32 %v31, 4294901760
  %v541 = vsub.f32 %v31, %v540
  %542 = vmatpush1.msra.mxu0 %v541
  %543 = vmatprep.subr.mxu0 0.0
  %v544 = vand.u32 %v32, 4294901760
  %v545 = vsub.f32 %v32, %v544
  %546 = vmatpush1.msra.mxu0 %v545
  %547 = vmatprep.subr.mxu0 0.0
  %v548 = vand.u32 %v33, 4294901760
  %v549 = vsub.f32 %v33, %v548
  %550 = vmatpush1.msra.mxu0 %v549
  %551 = vmatprep.subr.mxu0 0.0
  %v552 = vand.u32 %v34, 4294901760
  %v553 = vsub.f32 %v34, %v552
  %554 = vmatpush1.msra.mxu0 %v553
  %555 = vmatprep.subr.mxu0 0.0
  %v556 = vand.u32 %v35, 4294901760
  %v557 = vsub.f32 %v35, %v556
  %558 = vmatpush1.msra.mxu0 %v557
  %559 = vmatprep.subr.mxu0 0.0
  %v560 = vand.u32 %v36, 4294901760
  %v561 = vsub.f32 %v36, %v560
  %562 = vmatpush1.msra.mxu0 %v561
  %563 = vmatprep.subr.mxu0 0.0
  %v564 = vand.u32 %v37, 4294901760
  %v565 = vsub.f32 %v37, %v564
  %566 = vmatpush1.msra.mxu0 %v565
  %567 = vmatprep.subr.mxu0 0.0
  %v568 = vand.u32 %v38, 4294901760
  %v569 = vsub.f32 %v38, %v568
  %570 = vmatpush1.msra.mxu0 %v569
  %571 = vmatprep.subr.mxu0 0.0
  %v572 = vand.u32 %v39, 4294901760
  %v573 = vsub.f32 %v39, %v572
  %574 = vmatpush1.msra.mxu0 %v573
  %575 = vmatprep.subr.mxu0 0.0
  %v576 = vand.u32 %v40, 4294901760
  %v577 = vsub.f32 %v40, %v576
  %578 = vmatpush1.msra.mxu0 %v577
  %579 = vmatprep.subr.mxu0 0.0
  %v580 = vand.u32 %v41, 4294901760
  %v581 = vsub.f32 %v41, %v580
  %582 = vmatpush1.msra.mxu0 %v581
  %583 = vmatprep.subr.mxu0 0.0
  %v584 = vand.u32 %v42, 4294901760
  %v585 = vsub.f32 %v42, %v584
  %586 = vmatpush1.msra.mxu0 %v585
  %587 = vmatprep.subr.mxu0 0.0
  %v588 = vand.u32 %v43, 4294901760
  %v589 = vsub.f32 %v43, %v588
  %590 = vmatpush1.msra.mxu0 %v589
  %591 = vmatprep.subr.mxu0 0.0
  %v592 = vand.u32 %v44, 4294901760
  %v593 = vsub.f32 %v44, %v592
  %594 = vmatpush1.msra.mxu0 %v593
  %595 = vmatprep.subr.mxu0 0.0
  %v596 = vand.u32 %v45, 4294901760
  %v597 = vsub.f32 %v45, %v596
  %598 = vmatpush1.msra.mxu0 %v597
  %599 = vmatprep.subr.mxu0 0.0
  %v600 = vand.u32 %v46, 4294901760
  %v601 = vsub.f32 %v46, %v600
  %602 = vmatpush1.msra.mxu0 %v601
  %603 = vmatprep.subr.mxu0 0.0
  %v604 = vand.u32 %v47, 4294901760
  %v605 = vsub.f32 %v47, %v604
  %606 = vmatpush1.msra.mxu0 %v605
  %607 = vmatprep.subr.mxu0 0.0
  %v608 = vand.u32 %v48, 4294901760
  %v609 = vsub.f32 %v48, %v608
  %610 = vmatpush1.msra.mxu0 %v609
  %611 = vmatprep.subr.mxu0 0.0
  %v612 = vand.u32 %v49, 4294901760
  %v613 = vsub.f32 %v49, %v612
  %614 = vmatpush1.msra.mxu0 %v613
  %615 = vmatprep.subr.mxu0 0.0
  %v616 = vand.u32 %v50, 4294901760
  %v617 = vsub.f32 %v50, %v616
  %618 = vmatpush1.msra.mxu0 %v617
  %v619 = vand.u32 %v12, 4294901760
  %v620 = vsub.f32 %v12, %v619
  %621 = vmatprep.mubr.f32.mxu0 %v620
  %v622 = vand.u32 %v11, 4294901760
  %v623 = vsub.f32 %v11, %v622
  %624 = vmatmul.mubr.f32.gmra.mrb[0].mxu0 %v623
  %v625 = vpop.f32.mrb[0].mxu0
  %v626 = vadd.f32 %v488, %v625
  %v627 = vpop.f32.mrb[0].mxu0
  %628 = vdwg.mxu0
  %629 = vmatprep.subr.mxu0 0.0
  %v630 = vand.u32 %v19, 4294901760
  %631 = vmatpush1.msra.mxu0 %v630
  %632 = vmatprep.subr.mxu0 0.0
  %v633 = vand.u32 %v20, 4294901760
  %634 = vmatpush1.msra.mxu0 %v633
  %635 = vmatprep.subr.mxu0 0.0
  %v636 = vand.u32 %v21, 4294901760
  %637 = vmatpush1.msra.mxu0 %v636
  %638 = vmatprep.subr.mxu0 0.0
  %v639 = vand.u32 %v22, 4294901760
  %640 = vmatpush1.msra.mxu0 %v639
  %641 = vmatprep.subr.mxu0 0.0
  %v642 = vand.u32 %v23, 4294901760
  %643 = vmatpush1.msra.mxu0 %v642
  %644 = vmatprep.subr.mxu0 0.0
  %v645 = vand.u32 %v24, 4294901760
  %646 = vmatpush1.msra.mxu0 %v645
  %647 = vmatprep.subr.mxu0 0.0
  %v648 = vand.u32 %v25, 4294901760
  %649 = vmatpush1.msra.mxu0 %v648
  %650 = vmatprep.subr.mxu0 0.0
  %v651 = vand.u32 %v26, 4294901760
  %652 = vmatpush1.msra.mxu0 %v651
  %653 = vmatprep.subr.mxu0 0.0
  %v654 = vand.u32 %v27, 4294901760
  %655 = vmatpush1.msra.mxu0 %v654
  %656 = vmatprep.subr.mxu0 0.0
  %v657 = vand.u32 %v28, 4294901760
  %658 = vmatpush1.msra.mxu0 %v657
  %659 = vmatprep.subr.mxu0 0.0
  %v660 = vand.u32 %v29, 4294901760
  %661 = vmatpush1.msra.mxu0 %v660
  %662 = vmatprep.subr.mxu0 0.0
  %v663 = vand.u32 %v30, 4294901760
  %664 = vmatpush1.msra.mxu0 %v663
  %665 = vmatprep.subr.mxu0 0.0
  %v666 = vand.u32 %v31, 4294901760
  %667 = vmatpush1.msra.mxu0 %v666
  %668 = vmatprep.subr.mxu0 0.0
  %v669 = vand.u32 %v32, 4294901760
  %670 = vmatpush1.msra.mxu0 %v669
  %671 = vmatprep.subr.mxu0 0.0
  %v672 = vand.u32 %v33, 4294901760
  %673 = vmatpush1.msra.mxu0 %v672
  %674 = vmatprep.subr.mxu0 0.0
  %v675 = vand.u32 %v34, 4294901760
  %676 = vmatpush1.msra.mxu0 %v675
  %677 = vmatprep.subr.mxu0 0.0
  %v678 = vand.u32 %v35, 4294901760
  %679 = vmatpush1.msra.mxu0 %v678
  %680 = vmatprep.subr.mxu0 0.0
  %v681 = vand.u32 %v36, 4294901760
  %682 = vmatpush1.msra.mxu0 %v681
  %683 = vmatprep.subr.mxu0 0.0
  %v684 = vand.u32 %v37, 4294901760
  %685 = vmatpush1.msra.mxu0 %v684
  %686 = vmatprep.subr.mxu0 0.0
  %v687 = vand.u32 %v38, 4294901760
  %688 = vmatpush1.msra.mxu0 %v687
  %689 = vmatprep.subr.mxu0 0.0
  %v690 = vand.u32 %v39, 4294901760
  %691 = vmatpush1.msra.mxu0 %v690
  %692 = vmatprep.subr.mxu0 0.0
  %v693 = vand.u32 %v40, 4294901760
  %694 = vmatpush1.msra.mxu0 %v693
  %695 = vmatprep.subr.mxu0 0.0
  %v696 = vand.u32 %v41, 4294901760
  %697 = vmatpush1.msra.mxu0 %v696
  %698 = vmatprep.subr.mxu0 0.0
  %v699 = vand.u32 %v42, 4294901760
  %700 = vmatpush1.msra.mxu0 %v699
  %701 = vmatprep.subr.mxu0 0.0
  %v702 = vand.u32 %v43, 4294901760
  %703 = vmatpush1.msra.mxu0 %v702
  %704 = vmatprep.subr.mxu0 0.0
  %v705 = vand.u32 %v44, 4294901760
  %706 = vmatpush1.msra.mxu0 %v705
  %707 = vmatprep.subr.mxu0 0.0
  %v708 = vand.u32 %v45, 4294901760
  %709 = vmatpush1.msra.mxu0 %v708
  %710 = vmatprep.subr.mxu0 0.0
  %v711 = vand.u32 %v46, 4294901760
  %712 = vmatpush1.msra.mxu0 %v711
  %713 = vmatprep.subr.mxu0 0.0
  %v714 = vand.u32 %v47, 4294901760
  %715 = vmatpush1.msra.mxu0 %v714
  %716 = vmatprep.subr.mxu0 0.0
  %v717 = vand.u32 %v48, 4294901760
  %718 = vmatpush1.msra.mxu0 %v717
  %719 = vmatprep.subr.mxu0 0.0
  %v720 = vand.u32 %v49, 4294901760
  %721 = vmatpush1.msra.mxu0 %v720
  %722 = vmatprep.subr.mxu0 0.0
  %v723 = vand.u32 %v50, 4294901760
  %724 = vmatpush1.msra.mxu0 %v723
  %v725 = vand.u32 %v12, 4294901760
  %v726 = vsub.f32 %v12, %v725
  %v727 = vand.u32 %v726, 4294901760
  %728 = vmatprep.mubr.f32.mxu0 %v727
  %v729 = vand.u32 %v11, 4294901760
  %v730 = vsub.f32 %v11, %v729
  %v731 = vand.u32 %v730, 4294901760
  %732 = vmatmul.mubr.f32.gmra.mrb[0].mxu0 %v731
  %v733 = vpop.f32.mrb[0].mxu0
  %v734 = vadd.f32 %v626, %v733
  %v735 = vpop.f32.mrb[0].mxu0
  %736 = vdwg.mxu0
  %737 = vmatprep.subr.mxu0 0.0
  %v738 = vand.u32 %v19, 4294901760
  %v739 = vsub.f32 %v19, %v738
  %v740 = vand.u32 %v739, 4294901760
  %741 = vmatpush1.msra.mxu0 %v740
  %742 = vmatprep.subr.mxu0 0.0
  %v743 = vand.u32 %v20, 4294901760
  %v744 = vsub.f32 %v20, %v743
  %v745 = vand.u32 %v744, 4294901760
  %746 = vmatpush1.msra.mxu0 %v745
  %747 = vmatprep.subr.mxu0 0.0
  %v748 = vand.u32 %v21, 4294901760
  %v749 = vsub.f32 %v21, %v748
  %v750 = vand.u32 %v749, 4294901760
  %751 = vmatpush1.msra.mxu0 %v750
  %752 = vmatprep.subr.mxu0 0.0
  %v753 = vand.u32 %v22, 4294901760
  %v754 = vsub.f32 %v22, %v753
  %v755 = vand.u32 %v754, 4294901760
  %756 = vmatpush1.msra.mxu0 %v755
  %757 = vmatprep.subr.mxu0 0.0
  %v758 = vand.u32 %v23, 4294901760
  %v759 = vsub.f32 %v23, %v758
  %v760 = vand.u32 %v759, 4294901760
  %761 = vmatpush1.msra.mxu0 %v760
  %762 = vmatprep.subr.mxu0 0.0
  %v763 = vand.u32 %v24, 4294901760
  %v764 = vsub.f32 %v24, %v763
  %v765 = vand.u32 %v764, 4294901760
  %766 = vmatpush1.msra.mxu0 %v765
  %767 = vmatprep.subr.mxu0 0.0
  %v768 = vand.u32 %v25, 4294901760
  %v769 = vsub.f32 %v25, %v768
  %v770 = vand.u32 %v769, 4294901760
  %771 = vmatpush1.msra.mxu0 %v770
  %772 = vmatprep.subr.mxu0 0.0
  %v773 = vand.u32 %v26, 4294901760
  %v774 = vsub.f32 %v26, %v773
  %v775 = vand.u32 %v774, 4294901760
  %776 = vmatpush1.msra.mxu0 %v775
  %777 = vmatprep.subr.mxu0 0.0
  %v778 = vand.u32 %v27, 4294901760
  %v779 = vsub.f32 %v27, %v778
  %v780 = vand.u32 %v779, 4294901760
  %781 = vmatpush1.msra.mxu0 %v780
  %782 = vmatprep.subr.mxu0 0.0
  %v783 = vand.u32 %v28, 4294901760
  %v784 = vsub.f32 %v28, %v783
  %v785 = vand.u32 %v784, 4294901760
  %786 = vmatpush1.msra.mxu0 %v785
  %787 = vmatprep.subr.mxu0 0.0
  %v788 = vand.u32 %v29, 4294901760
  %v789 = vsub.f32 %v29, %v788
  %v790 = vand.u32 %v789, 4294901760
  %791 = vmatpush1.msra.mxu0 %v790
  %792 = vmatprep.subr.mxu0 0.0
  %v793 = vand.u32 %v30, 4294901760
  %v794 = vsub.f32 %v30, %v793
  %v795 = vand.u32 %v794, 4294901760
  %796 = vmatpush1.msra.mxu0 %v795
  %797 = vmatprep.subr.mxu0 0.0
  %v798 = vand.u32 %v31, 4294901760
  %v799 = vsub.f32 %v31, %v798
  %v800 = vand.u32 %v799, 4294901760
  %801 = vmatpush1.msra.mxu0 %v800
  %802 = vmatprep.subr.mxu0 0.0
  %v803 = vand.u32 %v32, 4294901760
  %v804 = vsub.f32 %v32, %v803
  %v805 = vand.u32 %v804, 4294901760
  %806 = vmatpush1.msra.mxu0 %v805
  %807 = vmatprep.subr.mxu0 0.0
  %v808 = vand.u32 %v33, 4294901760
  %v809 = vsub.f32 %v33, %v808
  %v810 = vand.u32 %v809, 4294901760
  %811 = vmatpush1.msra.mxu0 %v810
  %812 = vmatprep.subr.mxu0 0.0
  %v813 = vand.u32 %v34, 4294901760
  %v814 = vsub.f32 %v34, %v813
  %v815 = vand.u32 %v814, 4294901760
  %816 = vmatpush1.msra.mxu0 %v815
  %817 = vmatprep.subr.mxu0 0.0
  %v818 = vand.u32 %v35, 4294901760
  %v819 = vsub.f32 %v35, %v818
  %v820 = vand.u32 %v819, 4294901760
  %821 = vmatpush1.msra.mxu0 %v820
  %822 = vmatprep.subr.mxu0 0.0
  %v823 = vand.u32 %v36, 4294901760
  %v824 = vsub.f32 %v36, %v823
  %v825 = vand.u32 %v824, 4294901760
  %826 = vmatpush1.msra.mxu0 %v825
  %827 = vmatprep.subr.mxu0 0.0
  %v828 = vand.u32 %v37, 4294901760
  %v829 = vsub.f32 %v37, %v828
  %v830 = vand.u32 %v829, 4294901760
  %831 = vmatpush1.msra.mxu0 %v830
  %832 = vmatprep.subr.mxu0 0.0
  %v833 = vand.u32 %v38, 4294901760
  %v834 = vsub.f32 %v38, %v833
  %v835 = vand.u32 %v834, 4294901760
  %836 = vmatpush1.msra.mxu0 %v835
  %837 = vmatprep.subr.mxu0 0.0
  %v838 = vand.u32 %v39, 4294901760
  %v839 = vsub.f32 %v39, %v838
  %v840 = vand.u32 %v839, 4294901760
  %841 = vmatpush1.msra.mxu0 %v840
  %842 = vmatprep.subr.mxu0 0.0
  %v843 = vand.u32 %v40, 4294901760
  %v844 = vsub.f32 %v40, %v843
  %v845 = vand.u32 %v844, 4294901760
  %846 = vmatpush1.msra.mxu0 %v845
  %847 = vmatprep.subr.mxu0 0.0
  %v848 = vand.u32 %v41, 4294901760
  %v849 = vsub.f32 %v41, %v848
  %v850 = vand.u32 %v849, 4294901760
  %851 = vmatpush1.msra.mxu0 %v850
  %852 = vmatprep.subr.mxu0 0.0
  %v853 = vand.u32 %v42, 4294901760
  %v854 = vsub.f32 %v42, %v853
  %v855 = vand.u32 %v854, 4294901760
  %856 = vmatpush1.msra.mxu0 %v855
  %857 = vmatprep.subr.mxu0 0.0
  %v858 = vand.u32 %v43, 4294901760
  %v859 = vsub.f32 %v43, %v858
  %v860 = vand.u32 %v859, 4294901760
  %861 = vmatpush1.msra.mxu0 %v860
  %862 = vmatprep.subr.mxu0 0.0
  %v863 = vand.u32 %v44, 4294901760
  %v864 = vsub.f32 %v44, %v863
  %v865 = vand.u32 %v864, 4294901760
  %866 = vmatpush1.msra.mxu0 %v865
  %867 = vmatprep.subr.mxu0 0.0
  %v868 = vand.u32 %v45, 4294901760
  %v869 = vsub.f32 %v45, %v868
  %v870 = vand.u32 %v869, 4294901760
  %871 = vmatpush1.msra.mxu0 %v870
  %872 = vmatprep.subr.mxu0 0.0
  %v873 = vand.u32 %v46, 4294901760
  %v874 = vsub.f32 %v46, %v873
  %v875 = vand.u32 %v874, 4294901760
  %876 = vmatpush1.msra.mxu0 %v875
  %877 = vmatprep.subr.mxu0 0.0
  %v878 = vand.u32 %v47, 4294901760
  %v879 = vsub.f32 %v47, %v878
  %v880 = vand.u32 %v879, 4294901760
  %881 = vmatpush1.msra.mxu0 %v880
  %882 = vmatprep.subr.mxu0 0.0
  %v883 = vand.u32 %v48, 4294901760
  %v884 = vsub.f32 %v48, %v883
  %v885 = vand.u32 %v884, 4294901760
  %886 = vmatpush1.msra.mxu0 %v885
  %887 = vmatprep.subr.mxu0 0.0
  %v888 = vand.u32 %v49, 4294901760
  %v889 = vsub.f32 %v49, %v888
  %v890 = vand.u32 %v889, 4294901760
  %891 = vmatpush1.msra.mxu0 %v890
  %892 = vmatprep.subr.mxu0 0.0
  %v893 = vand.u32 %v50, 4294901760
  %v894 = vsub.f32 %v50, %v893
  %v895 = vand.u32 %v894, 4294901760
  %896 = vmatpush1.msra.mxu0 %v895
  %v897 = vand.u32 %v12, 4294901760
  %898 = vmatprep.mubr.f32.mxu0 %v897
  %v899 = vand.u32 %v11, 4294901760
  %900 = vmatmul.mubr.f32.gmra.mrb[0].mxu0 %v899
  %v901 = vpop.f32.mrb[0].mxu0
  %v902 = vadd.f32 %v734, %v901
  %v903 = vpop.f32.mrb[0].mxu0
  %904 = vdwg.mxu0
  %905 = vmatprep.subr.mxu0 0.0
  %v906 = vand.u32 %v19, 4294901760
  %907 = vmatpush1.msra.mxu0 %v906
  %908 = vmatprep.subr.mxu0 0.0
  %v909 = vand.u32 %v20, 4294901760
  %910 = vmatpush1.msra.mxu0 %v909
  %911 = vmatprep.subr.mxu0 0.0
  %v912 = vand.u32 %v21, 4294901760
  %913 = vmatpush1.msra.mxu0 %v912
  %914 = vmatprep.subr.mxu0 0.0
  %v915 = vand.u32 %v22, 4294901760
  %916 = vmatpush1.msra.mxu0 %v915
  %917 = vmatprep.subr.mxu0 0.0
  %v918 = vand.u32 %v23, 4294901760
  %919 = vmatpush1.msra.mxu0 %v918
  %920 = vmatprep.subr.mxu0 0.0
  %v921 = vand.u32 %v24, 4294901760
  %922 = vmatpush1.msra.mxu0 %v921
  %923 = vmatprep.subr.mxu0 0.0
  %v924 = vand.u32 %v25, 4294901760
  %925 = vmatpush1.msra.mxu0 %v924
  %926 = vmatprep.subr.mxu0 0.0
  %v927 = vand.u32 %v26, 4294901760
  %928 = vmatpush1.msra.mxu0 %v927
  %929 = vmatprep.subr.mxu0 0.0
  %v930 = vand.u32 %v27, 4294901760
  %931 = vmatpush1.msra.mxu0 %v930
  %932 = vmatprep.subr.mxu0 0.0
  %v933 = vand.u32 %v28, 4294901760
  %934 = vmatpush1.msra.mxu0 %v933
  %935 = vmatprep.subr.mxu0 0.0
  %v936 = vand.u32 %v29, 4294901760
  %937 = vmatpush1.msra.mxu0 %v936
  %938 = vmatprep.subr.mxu0 0.0
  %v939 = vand.u32 %v30, 4294901760
  %940 = vmatpush1.msra.mxu0 %v939
  %941 = vmatprep.subr.mxu0 0.0
  %v942 = vand.u32 %v31, 4294901760
  %943 = vmatpush1.msra.mxu0 %v942
  %944 = vmatprep.subr.mxu0 0.0
  %v945 = vand.u32 %v32, 4294901760
  %946 = vmatpush1.msra.mxu0 %v945
  %947 = vmatprep.subr.mxu0 0.0
  %v948 = vand.u32 %v33, 4294901760
  %949 = vmatpush1.msra.mxu0 %v948
  %950 = vmatprep.subr.mxu0 0.0
  %v951 = vand.u32 %v34, 4294901760
  %952 = vmatpush1.msra.mxu0 %v951
  %953 = vmatprep.subr.mxu0 0.0
  %v954 = vand.u32 %v35, 4294901760
  %955 = vmatpush1.msra.mxu0 %v954
  %956 = vmatprep.subr.mxu0 0.0
  %v957 = vand.u32 %v36, 4294901760
  %958 = vmatpush1.msra.mxu0 %v957
  %959 = vmatprep.subr.mxu0 0.0
  %v960 = vand.u32 %v37, 4294901760
  %961 = vmatpush1.msra.mxu0 %v960
  %962 = vmatprep.subr.mxu0 0.0
  %v963 = vand.u32 %v38, 4294901760
  %964 = vmatpush1.msra.mxu0 %v963
  %965 = vmatprep.subr.mxu0 0.0
  %v966 = vand.u32 %v39, 4294901760
  %967 = vmatpush1.msra.mxu0 %v966
  %968 = vmatprep.subr.mxu0 0.0
  %v969 = vand.u32 %v40, 4294901760
  %970 = vmatpush1.msra.mxu0 %v969
  %971 = vmatprep.subr.mxu0 0.0
  %v972 = vand.u32 %v41, 4294901760
  %973 = vmatpush1.msra.mxu0 %v972
  %974 = vmatprep.subr.mxu0 0.0
  %v975 = vand.u32 %v42, 4294901760
  %976 = vmatpush1.msra.mxu0 %v975
  %977 = vmatprep.subr.mxu0 0.0
  %v978 = vand.u32 %v43, 4294901760
  %979 = vmatpush1.msra.mxu0 %v978
  %980 = vmatprep.subr.mxu0 0.0
  %v981 = vand.u32 %v44, 4294901760
  %982 = vmatpush1.msra.mxu0 %v981
  %983 = vmatprep.subr.mxu0 0.0
  %v984 = vand.u32 %v45, 4294901760
  %985 = vmatpush1.msra.mxu0 %v984
  %986 = vmatprep.subr.mxu0 0.0
  %v987 = vand.u32 %v46, 4294901760
  %988 = vmatpush1.msra.mxu0 %v987
  %989 = vmatprep.subr.mxu0 0.0
  %v990 = vand.u32 %v47, 4294901760
  %991 = vmatpush1.msra.mxu0 %v990
  %992 = vmatprep.subr.mxu0 0.0
  %v993 = vand.u32 %v48, 4294901760
  %994 = vmatpush1.msra.mxu0 %v993
  %995 = vmatprep.subr.mxu0 0.0
  %v996 = vand.u32 %v49, 4294901760
  %997 = vmatpush1.msra.mxu0 %v996
  %998 = vmatprep.subr.mxu0 0.0
  %v999 = vand.u32 %v50, 4294901760
  %1000 = vmatpush1.msra.mxu0 %v999
  %v1001 = vand.u32 %v12, 4294901760
  %1002 = vmatprep.mubr.f32.mxu0 %v1001
  %v1003 = vand.u32 %v11, 4294901760
  %1004 = vmatmul.mubr.f32.gmra.mrb[0].mxu0 %v1003
  %v1005 = vpop.f32.mrb[0].mxu0
  %v1006 = vadd.f32 %v902, %v1005
  %v1007 = vpop.f32.mrb[0].mxu0
  %1008 = vdwg.mxu0
  %1009 = vmatprep.subr.mxu0 0.0
  %v1010 = vand.u32 %v51, 4294901760
  %1011 = vmatpush1.msra.mxu0 %v1010
  %1012 = vmatprep.subr.mxu0 0.0
  %v1013 = vand.u32 %v52, 4294901760
  %1014 = vmatpush1.msra.mxu0 %v1013
  %1015 = vmatprep.subr.mxu0 0.0
  %v1016 = vand.u32 %v53, 4294901760
  %1017 = vmatpush1.msra.mxu0 %v1016
  %1018 = vmatprep.subr.mxu0 0.0
  %v1019 = vand.u32 %v54, 4294901760
  %1020 = vmatpush1.msra.mxu0 %v1019
  %1021 = vmatprep.subr.mxu0 0.0
  %v1022 = vand.u32 %v55, 4294901760
  %1023 = vmatpush1.msra.mxu0 %v1022
  %1024 = vmatprep.subr.mxu0 0.0
  %v1025 = vand.u32 %v56, 4294901760
  %1026 = vmatpush1.msra.mxu0 %v1025
  %1027 = vmatprep.subr.mxu0 0.0
  %v1028 = vand.u32 %v57, 4294901760
  %1029 = vmatpush1.msra.mxu0 %v1028
  %1030 = vmatprep.subr.mxu0 0.0
  %v1031 = vand.u32 %v58, 4294901760
  %1032 = vmatpush1.msra.mxu0 %v1031
  %1033 = vmatprep.subr.mxu0 0.0
  %v1034 = vand.u32 %v59, 4294901760
  %1035 = vmatpush1.msra.mxu0 %v1034
  %1036 = vmatprep.subr.mxu0 0.0
  %v1037 = vand.u32 %v60, 4294901760
  %1038 = vmatpush1.msra.mxu0 %v1037
  %1039 = vmatprep.subr.mxu0 0.0
  %v1040 = vand.u32 %v61, 4294901760
  %1041 = vmatpush1.msra.mxu0 %v1040
  %1042 = vmatprep.subr.mxu0 0.0
  %v1043 = vand.u32 %v62, 4294901760
  %1044 = vmatpush1.msra.mxu0 %v1043
  %1045 = vmatprep.subr.mxu0 0.0
  %v1046 = vand.u32 %v63, 4294901760
  %1047 = vmatpush1.msra.mxu0 %v1046
  %1048 = vmatprep.subr.mxu0 0.0
  %v1049 = vand.u32 %v64, 4294901760
  %1050 = vmatpush1.msra.mxu0 %v1049
  %1051 = vmatprep.subr.mxu0 0.0
  %v1052 = vand.u32 %v65, 4294901760
  %1053 = vmatpush1.msra.mxu0 %v1052
  %1054 = vmatprep.subr.mxu0 0.0
  %v1055 = vand.u32 %v66, 4294901760
  %1056 = vmatpush1.msra.mxu0 %v1055
  %1057 = vmatprep.subr.mxu0 0.0
  %v1058 = vand.u32 %v67, 4294901760
  %1059 = vmatpush1.msra.mxu0 %v1058
  %1060 = vmatprep.subr.mxu0 0.0
  %v1061 = vand.u32 %v68, 4294901760
  %1062 = vmatpush1.msra.mxu0 %v1061
  %1063 = vmatprep.subr.mxu0 0.0
  %v1064 = vand.u32 %v69, 4294901760
  %1065 = vmatpush1.msra.mxu0 %v1064
  %1066 = vmatprep.subr.mxu0 0.0
  %v1067 = vand.u32 %v70, 4294901760
  %1068 = vmatpush1.msra.mxu0 %v1067
  %1069 = vmatprep.subr.mxu0 0.0
  %v1070 = vand.u32 %v71, 4294901760
  %1071 = vmatpush1.msra.mxu0 %v1070
  %1072 = vmatprep.subr.mxu0 0.0
  %v1073 = vand.u32 %v72, 4294901760
  %1074 = vmatpush1.msra.mxu0 %v1073
  %1075 = vmatprep.subr.mxu0 0.0
  %v1076 = vand.u32 %v73, 4294901760
  %1077 = vmatpush1.msra.mxu0 %v1076
  %1078 = vmatprep.subr.mxu0 0.0
  %v1079 = vand.u32 %v74, 4294901760
  %1080 = vmatpush1.msra.mxu0 %v1079
  %1081 = vmatprep.subr.mxu0 0.0
  %v1082 = vand.u32 %v75, 4294901760
  %1083 = vmatpush1.msra.mxu0 %v1082
  %1084 = vmatprep.subr.mxu0 0.0
  %v1085 = vand.u32 %v76, 4294901760
  %1086 = vmatpush1.msra.mxu0 %v1085
  %1087 = vmatprep.subr.mxu0 0.0
  %v1088 = vand.u32 %v77, 4294901760
  %1089 = vmatpush1.msra.mxu0 %v1088
  %1090 = vmatprep.subr.mxu0 0.0
  %v1091 = vand.u32 %v78, 4294901760
  %1092 = vmatpush1.msra.mxu0 %v1091
  %1093 = vmatprep.subr.mxu0 0.0
  %v1094 = vand.u32 %v79, 4294901760
  %1095 = vmatpush1.msra.mxu0 %v1094
  %1096 = vmatprep.subr.mxu0 0.0
  %v1097 = vand.u32 %v80, 4294901760
  %1098 = vmatpush1.msra.mxu0 %v1097
  %1099 = vmatprep.subr.mxu0 0.0
  %v1100 = vand.u32 %v81, 4294901760
  %1101 = vmatpush1.msra.mxu0 %v1100
  %1102 = vmatprep.subr.mxu0 0.0
  %v1103 = vand.u32 %v82, 4294901760
  %1104 = vmatpush1.msra.mxu0 %v1103
  %v1105 = vand.u32 %v14, 4294901760
  %v1106 = vsub.f32 %v14, %v1105
  %v1107 = vand.u32 %v1106, 4294901760
  %v1108 = vsub.f32 %v1106, %v1107
  %v1109 = vand.u32 %v1108, 4294901760
  %1110 = vmatprep.mubr.f32.mxu0 %v1109
  %v1111 = vand.u32 %v13, 4294901760
  %v1112 = vsub.f32 %v13, %v1111
  %v1113 = vand.u32 %v1112, 4294901760
  %v1114 = vsub.f32 %v1112, %v1113
  %v1115 = vand.u32 %v1114, 4294901760
  %1116 = vmatmul.mubr.f32.gmra.mrb[0].mxu0 %v1115
  %v1117 = vpop.f32.mrb[0].mxu0
  %v1118 = vadd.f32 %v1006, %v1117
  %v1119 = vpop.f32.mrb[0].mxu0
  %1120 = vdwg.mxu0
  %1121 = vmatprep.subr.mxu0 0.0
  %v1122 = vand.u32 %v51, 4294901760
  %v1123 = vsub.f32 %v51, %v1122
  %v1124 = vand.u32 %v1123, 4294901760
  %v1125 = vsub.f32 %v1123, %v1124
  %v1126 = vand.u32 %v1125, 4294901760
  %1127 = vmatpush1.msra.mxu0 %v1126
  %1128 = vmatprep.subr.mxu0 0.0
  %v1129 = vand.u32 %v52, 4294901760
  %v1130 = vsub.f32 %v52, %v1129
  %v1131 = vand.u32 %v1130, 4294901760
  %v1132 = vsub.f32 %v1130, %v1131
  %v1133 = vand.u32 %v1132, 4294901760
  %1134 = vmatpush1.msra.mxu0 %v1133
  %1135 = vmatprep.subr.mxu0 0.0
  %v1136 = vand.u32 %v53, 4294901760
  %v1137 = vsub.f32 %v53, %v1136
  %v1138 = vand.u32 %v1137, 4294901760
  %v1139 = vsub.f32 %v1137, %v1138
  %v1140 = vand.u32 %v1139, 4294901760
  %1141 = vmatpush1.msra.mxu0 %v1140
  %1142 = vmatprep.subr.mxu0 0.0
  %v1143 = vand.u32 %v54, 4294901760
  %v1144 = vsub.f32 %v54, %v1143
  %v1145 = vand.u32 %v1144, 4294901760
  %v1146 = vsub.f32 %v1144, %v1145
  %v1147 = vand.u32 %v1146, 4294901760
  %1148 = vmatpush1.msra.mxu0 %v1147
  %1149 = vmatprep.subr.mxu0 0.0
  %v1150 = vand.u32 %v55, 4294901760
  %v1151 = vsub.f32 %v55, %v1150
  %v1152 = vand.u32 %v1151, 4294901760
  %v1153 = vsub.f32 %v1151, %v1152
  %v1154 = vand.u32 %v1153, 4294901760
  %1155 = vmatpush1.msra.mxu0 %v1154
  %1156 = vmatprep.subr.mxu0 0.0
  %v1157 = vand.u32 %v56, 4294901760
  %v1158 = vsub.f32 %v56, %v1157
  %v1159 = vand.u32 %v1158, 4294901760
  %v1160 = vsub.f32 %v1158, %v1159
  %v1161 = vand.u32 %v1160, 4294901760
  %1162 = vmatpush1.msra.mxu0 %v1161
  %1163 = vmatprep.subr.mxu0 0.0
  %v1164 = vand.u32 %v57, 4294901760
  %v1165 = vsub.f32 %v57, %v1164
  %v1166 = vand.u32 %v1165, 4294901760
  %v1167 = vsub.f32 %v1165, %v1166
  %v1168 = vand.u32 %v1167, 4294901760
  %1169 = vmatpush1.msra.mxu0 %v1168
  %1170 = vmatprep.subr.mxu0 0.0
  %v1171 = vand.u32 %v58, 4294901760
  %v1172 = vsub.f32 %v58, %v1171
  %v1173 = vand.u32 %v1172, 4294901760
  %v1174 = vsub.f32 %v1172, %v1173
  %v1175 = vand.u32 %v1174, 4294901760
  %1176 = vmatpush1.msra.mxu0 %v1175
  %1177 = vmatprep.subr.mxu0 0.0
  %v1178 = vand.u32 %v59, 4294901760
  %v1179 = vsub.f32 %v59, %v1178
  %v1180 = vand.u32 %v1179, 4294901760
  %v1181 = vsub.f32 %v1179, %v1180
  %v1182 = vand.u32 %v1181, 4294901760
  %1183 = vmatpush1.msra.mxu0 %v1182
  %1184 = vmatprep.subr.mxu0 0.0
  %v1185 = vand.u32 %v60, 4294901760
  %v1186 = vsub.f32 %v60, %v1185
  %v1187 = vand.u32 %v1186, 4294901760
  %v1188 = vsub.f32 %v1186, %v1187
  %v1189 = vand.u32 %v1188, 4294901760
  %1190 = vmatpush1.msra.mxu0 %v1189
  %1191 = vmatprep.subr.mxu0 0.0
  %v1192 = vand.u32 %v61, 4294901760
  %v1193 = vsub.f32 %v61, %v1192
  %v1194 = vand.u32 %v1193, 4294901760
  %v1195 = vsub.f32 %v1193, %v1194
  %v1196 = vand.u32 %v1195, 4294901760
  %1197 = vmatpush1.msra.mxu0 %v1196
  %1198 = vmatprep.subr.mxu0 0.0
  %v1199 = vand.u32 %v62, 4294901760
  %v1200 = vsub.f32 %v62, %v1199
  %v1201 = vand.u32 %v1200, 4294901760
  %v1202 = vsub.f32 %v1200, %v1201
  %v1203 = vand.u32 %v1202, 4294901760
  %1204 = vmatpush1.msra.mxu0 %v1203
  %1205 = vmatprep.subr.mxu0 0.0
  %v1206 = vand.u32 %v63, 4294901760
  %v1207 = vsub.f32 %v63, %v1206
  %v1208 = vand.u32 %v1207, 4294901760
  %v1209 = vsub.f32 %v1207, %v1208
  %v1210 = vand.u32 %v1209, 4294901760
  %1211 = vmatpush1.msra.mxu0 %v1210
  %1212 = vmatprep.subr.mxu0 0.0
  %v1213 = vand.u32 %v64, 4294901760
  %v1214 = vsub.f32 %v64, %v1213
  %v1215 = vand.u32 %v1214, 4294901760
  %v1216 = vsub.f32 %v1214, %v1215
  %v1217 = vand.u32 %v1216, 4294901760
  %1218 = vmatpush1.msra.mxu0 %v1217
  %1219 = vmatprep.subr.mxu0 0.0
  %v1220 = vand.u32 %v65, 4294901760
  %v1221 = vsub.f32 %v65, %v1220
  %v1222 = vand.u32 %v1221, 4294901760
  %v1223 = vsub.f32 %v1221, %v1222
  %v1224 = vand.u32 %v1223, 4294901760
  %1225 = vmatpush1.msra.mxu0 %v1224
  %1226 = vmatprep.subr.mxu0 0.0
  %v1227 = vand.u32 %v66, 4294901760
  %v1228 = vsub.f32 %v66, %v1227
  %v1229 = vand.u32 %v1228, 4294901760
  %v1230 = vsub.f32 %v1228, %v1229
  %v1231 = vand.u32 %v1230, 4294901760
  %1232 = vmatpush1.msra.mxu0 %v1231
  %1233 = vmatprep.subr.mxu0 0.0
  %v1234 = vand.u32 %v67, 4294901760
  %v1235 = vsub.f32 %v67, %v1234
  %v1236 = vand.u32 %v1235, 4294901760
  %v1237 = vsub.f32 %v1235, %v1236
  %v1238 = vand.u32 %v1237, 4294901760
  %1239 = vmatpush1.msra.mxu0 %v1238
  %1240 = vmatprep.subr.mxu0 0.0
  %v1241 = vand.u32 %v68, 4294901760
  %v1242 = vsub.f32 %v68, %v1241
  %v1243 = vand.u32 %v1242, 4294901760
  %v1244 = vsub.f32 %v1242, %v1243
  %v1245 = vand.u32 %v1244, 4294901760
  %1246 = vmatpush1.msra.mxu0 %v1245
  %1247 = vmatprep.subr.mxu0 0.0
  %v1248 = vand.u32 %v69, 4294901760
  %v1249 = vsub.f32 %v69, %v1248
  %v1250 = vand.u32 %v1249, 4294901760
  %v1251 = vsub.f32 %v1249, %v1250
  %v1252 = vand.u32 %v1251, 4294901760
  %1253 = vmatpush1.msra.mxu0 %v1252
  %1254 = vmatprep.subr.mxu0 0.0
  %v1255 = vand.u32 %v70, 4294901760
  %v1256 = vsub.f32 %v70, %v1255
  %v1257 = vand.u32 %v1256, 4294901760
  %v1258 = vsub.f32 %v1256, %v1257
  %v1259 = vand.u32 %v1258, 4294901760
  %1260 = vmatpush1.msra.mxu0 %v1259
  %1261 = vmatprep.subr.mxu0 0.0
  %v1262 = vand.u32 %v71, 4294901760
  %v1263 = vsub.f32 %v71, %v1262
  %v1264 = vand.u32 %v1263, 4294901760
  %v1265 = vsub.f32 %v1263, %v1264
  %v1266 = vand.u32 %v1265, 4294901760
  %1267 = vmatpush1.msra.mxu0 %v1266
  %1268 = vmatprep.subr.mxu0 0.0
  %v1269 = vand.u32 %v72, 4294901760
  %v1270 = vsub.f32 %v72, %v1269
  %v1271 = vand.u32 %v1270, 4294901760
  %v1272 = vsub.f32 %v1270, %v1271
  %v1273 = vand.u32 %v1272, 4294901760
  %1274 = vmatpush1.msra.mxu0 %v1273
  %1275 = vmatprep.subr.mxu0 0.0
  %v1276 = vand.u32 %v73, 4294901760
  %v1277 = vsub.f32 %v73, %v1276
  %v1278 = vand.u32 %v1277, 4294901760
  %v1279 = vsub.f32 %v1277, %v1278
  %v1280 = vand.u32 %v1279, 4294901760
  %1281 = vmatpush1.msra.mxu0 %v1280
  %1282 = vmatprep.subr.mxu0 0.0
  %v1283 = vand.u32 %v74, 4294901760
  %v1284 = vsub.f32 %v74, %v1283
  %v1285 = vand.u32 %v1284, 4294901760
  %v1286 = vsub.f32 %v1284, %v1285
  %v1287 = vand.u32 %v1286, 4294901760
  %1288 = vmatpush1.msra.mxu0 %v1287
  %1289 = vmatprep.subr.mxu0 0.0
  %v1290 = vand.u32 %v75, 4294901760
  %v1291 = vsub.f32 %v75, %v1290
  %v1292 = vand.u32 %v1291, 4294901760
  %v1293 = vsub.f32 %v1291, %v1292
  %v1294 = vand.u32 %v1293, 4294901760
  %1295 = vmatpush1.msra.mxu0 %v1294
  %1296 = vmatprep.subr.mxu0 0.0
  %v1297 = vand.u32 %v76, 4294901760
  %v1298 = vsub.f32 %v76, %v1297
  %v1299 = vand.u32 %v1298, 4294901760
  %v1300 = vsub.f32 %v1298, %v1299
  %v1301 = vand.u32 %v1300, 4294901760
  %1302 = vmatpush1.msra.mxu0 %v1301
  %1303 = vmatprep.subr.mxu0 0.0
  %v1304 = vand.u32 %v77, 4294901760
  %v1305 = vsub.f32 %v77, %v1304
  %v1306 = vand.u32 %v1305, 4294901760
  %v1307 = vsub.f32 %v1305, %v1306
  %v1308 = vand.u32 %v1307, 4294901760
  %1309 = vmatpush1.msra.mxu0 %v1308
  %1310 = vmatprep.subr.mxu0 0.0
  %v1311 = vand.u32 %v78, 4294901760
  %v1312 = vsub.f32 %v78, %v1311
  %v1313 = vand.u32 %v1312, 4294901760
  %v1314 = vsub.f32 %v1312, %v1313
  %v1315 = vand.u32 %v1314, 4294901760
  %1316 = vmatpush1.msra.mxu0 %v1315
  %1317 = vmatprep.subr.mxu0 0.0
  %v1318 = vand.u32 %v79, 4294901760
  %v1319 = vsub.f32 %v79, %v1318
  %v1320 = vand.u32 %v1319, 4294901760
  %v1321 = vsub.f32 %v1319, %v1320
  %v1322 = vand.u32 %v1321, 4294901760
  %1323 = vmatpush1.msra.mxu0 %v1322
  %1324 = vmatprep.subr.mxu0 0.0
  %v1325 = vand.u32 %v80, 4294901760
  %v1326 = vsub.f32 %v80, %v1325
  %v1327 = vand.u32 %v1326, 4294901760
  %v1328 = vsub.f32 %v1326, %v1327
  %v1329 = vand.u32 %v1328, 4294901760
  %1330 = vmatpush1.msra.mxu0 %v1329
  %1331 = vmatprep.subr.mxu0 0.0
  %v1332 = vand.u32 %v81, 4294901760
  %v1333 = vsub.f32 %v81, %v1332
  %v1334 = vand.u32 %v1333, 4294901760
  %v1335 = vsub.f32 %v1333, %v1334
  %v1336 = vand.u32 %v1335, 4294901760
  %1337 = vmatpush1.msra.mxu0 %v1336
  %1338 = vmatprep.subr.mxu0 0.0
  %v1339 = vand.u32 %v82, 4294901760
  %v1340 = vsub.f32 %v82, %v1339
  %v1341 = vand.u32 %v1340, 4294901760
  %v1342 = vsub.f32 %v1340, %v1341
  %v1343 = vand.u32 %v1342, 4294901760
  %1344 = vmatpush1.msra.mxu0 %v1343
  %v1345 = vand.u32 %v14, 4294901760
  %1346 = vmatprep.mubr.f32.mxu0 %v1345
  %v1347 = vand.u32 %v13, 4294901760
  %1348 = vmatmul.mubr.f32.gmra.mrb[0].mxu0 %v1347
  %v1349 = vpop.f32.mrb[0].mxu0
  %v1350 = vadd.f32 %v1118, %v1349
  %v1351 = vpop.f32.mrb[0].mxu0
  %1352 = vdwg.mxu0
  %1353 = vmatprep.subr.mxu0 0.0
  %v1354 = vand.u32 %v51, 4294901760
  %v1355 = vsub.f32 %v51, %v1354
  %1356 = vmatpush1.msra.mxu0 %v1355
  %1357 = vmatprep.subr.mxu0 0.0
  %v1358 = vand.u32 %v52, 4294901760
  %v1359 = vsub.f32 %v52, %v1358
  %1360 = vmatpush1.msra.mxu0 %v1359
  %1361 = vmatprep.subr.mxu0 0.0
  %v1362 = vand.u32 %v53, 4294901760
  %v1363 = vsub.f32 %v53, %v1362
  %1364 = vmatpush1.msra.mxu0 %v1363
  %1365 = vmatprep.subr.mxu0 0.0
  %v1366 = vand.u32 %v54, 4294901760
  %v1367 = vsub.f32 %v54, %v1366
  %1368 = vmatpush1.msra.mxu0 %v1367
  %1369 = vmatprep.subr.mxu0 0.0
  %v1370 = vand.u32 %v55, 4294901760
  %v1371 = vsub.f32 %v55, %v1370
  %1372 = vmatpush1.msra.mxu0 %v1371
  %1373 = vmatprep.subr.mxu0 0.0
  %v1374 = vand.u32 %v56, 4294901760
  %v1375 = vsub.f32 %v56, %v1374
  %1376 = vmatpush1.msra.mxu0 %v1375
  %1377 = vmatprep.subr.mxu0 0.0
  %v1378 = vand.u32 %v57, 4294901760
  %v1379 = vsub.f32 %v57, %v1378
  %1380 = vmatpush1.msra.mxu0 %v1379
  %1381 = vmatprep.subr.mxu0 0.0
  %v1382 = vand.u32 %v58, 4294901760
  %v1383 = vsub.f32 %v58, %v1382
  %1384 = vmatpush1.msra.mxu0 %v1383
  %1385 = vmatprep.subr.mxu0 0.0
  %v1386 = vand.u32 %v59, 4294901760
  %v1387 = vsub.f32 %v59, %v1386
  %1388 = vmatpush1.msra.mxu0 %v1387
  %1389 = vmatprep.subr.mxu0 0.0
  %v1390 = vand.u32 %v60, 4294901760
  %v1391 = vsub.f32 %v60, %v1390
  %1392 = vmatpush1.msra.mxu0 %v1391
  %1393 = vmatprep.subr.mxu0 0.0
  %v1394 = vand.u32 %v61, 4294901760
  %v1395 = vsub.f32 %v61, %v1394
  %1396 = vmatpush1.msra.mxu0 %v1395
  %1397 = vmatprep.subr.mxu0 0.0
  %v1398 = vand.u32 %v62, 4294901760
  %v1399 = vsub.f32 %v62, %v1398
  %1400 = vmatpush1.msra.mxu0 %v1399
  %1401 = vmatprep.subr.mxu0 0.0
  %v1402 = vand.u32 %v63, 4294901760
  %v1403 = vsub.f32 %v63, %v1402
  %1404 = vmatpush1.msra.mxu0 %v1403
  %1405 = vmatprep.subr.mxu0 0.0
  %v1406 = vand.u32 %v64, 4294901760
  %v1407 = vsub.f32 %v64, %v1406
  %1408 = vmatpush1.msra.mxu0 %v1407
  %1409 = vmatprep.subr.mxu0 0.0
  %v1410 = vand.u32 %v65, 4294901760
  %v1411 = vsub.f32 %v65, %v1410
  %1412 = vmatpush1.msra.mxu0 %v1411
  %1413 = vmatprep.subr.mxu0 0.0
  %v1414 = vand.u32 %v66, 4294901760
  %v1415 = vsub.f32 %v66, %v1414
  %1416 = vmatpush1.msra.mxu0 %v1415
  %1417 = vmatprep.subr.mxu0 0.0
  %v1418 = vand.u32 %v67, 4294901760
  %v1419 = vsub.f32 %v67, %v1418
  %1420 = vmatpush1.msra.mxu0 %v1419
  %1421 = vmatprep.subr.mxu0 0.0
  %v1422 = vand.u32 %v68, 4294901760
  %v1423 = vsub.f32 %v68, %v1422
  %1424 = vmatpush1.msra.mxu0 %v1423
  %1425 = vmatprep.subr.mxu0 0.0
  %v1426 = vand.u32 %v69, 4294901760
  %v1427 = vsub.f32 %v69, %v1426
  %1428 = vmatpush1.msra.mxu0 %v1427
  %1429 = vmatprep.subr.mxu0 0.0
  %v1430 = vand.u32 %v70, 4294901760
  %v1431 = vsub.f32 %v70, %v1430
  %1432 = vmatpush1.msra.mxu0 %v1431
  %1433 = vmatprep.subr.mxu0 0.0
  %v1434 = vand.u32 %v71, 4294901760
  %v1435 = vsub.f32 %v71, %v1434
  %1436 = vmatpush1.msra.mxu0 %v1435
  %1437 = vmatprep.subr.mxu0 0.0
  %v1438 = vand.u32 %v72, 4294901760
  %v1439 = vsub.f32 %v72, %v1438
  %1440 = vmatpush1.msra.mxu0 %v1439
  %1441 = vmatprep.subr.mxu0 0.0
  %v1442 = vand.u32 %v73, 4294901760
  %v1443 = vsub.f32 %v73, %v1442
  %1444 = vmatpush1.msra.mxu0 %v1443
  %1445 = vmatprep.subr.mxu0 0.0
  %v1446 = vand.u32 %v74, 4294901760
  %v1447 = vsub.f32 %v74, %v1446
  %1448 = vmatpush1.msra.mxu0 %v1447
  %1449 = vmatprep.subr.mxu0 0.0
  %v1450 = vand.u32 %v75, 4294901760
  %v1451 = vsub.f32 %v75, %v1450
  %1452 = vmatpush1.msra.mxu0 %v1451
  %1453 = vmatprep.subr.mxu0 0.0
  %v1454 = vand.u32 %v76, 4294901760
  %v1455 = vsub.f32 %v76, %v1454
  %1456 = vmatpush1.msra.mxu0 %v1455
  %1457 = vmatprep.subr.mxu0 0.0
  %v1458 = vand.u32 %v77, 4294901760
  %v1459 = vsub.f32 %v77, %v1458
  %1460 = vmatpush1.msra.mxu0 %v1459
  %1461 = vmatprep.subr.mxu0 0.0
  %v1462 = vand.u32 %v78, 4294901760
  %v1463 = vsub.f32 %v78, %v1462
  %1464 = vmatpush1.msra.mxu0 %v1463
  %1465 = vmatprep.subr.mxu0 0.0
  %v1466 = vand.u32 %v79, 4294901760
  %v1467 = vsub.f32 %v79, %v1466
  %1468 = vmatpush1.msra.mxu0 %v1467
  %1469 = vmatprep.subr.mxu0 0.0
  %v1470 = vand.u32 %v80, 4294901760
  %v1471 = vsub.f32 %v80, %v1470
  %1472 = vmatpush1.msra.mxu0 %v1471
  %1473 = vmatprep.subr.mxu0 0.0
  %v1474 = vand.u32 %v81, 4294901760
  %v1475 = vsub.f32 %v81, %v1474
  %1476 = vmatpush1.msra.mxu0 %v1475
  %1477 = vmatprep.subr.mxu0 0.0
  %v1478 = vand.u32 %v82, 4294901760
  %v1479 = vsub.f32 %v82, %v1478
  %1480 = vmatpush1.msra.mxu0 %v1479
  %v1481 = vand.u32 %v14, 4294901760
  %v1482 = vsub.f32 %v14, %v1481
  %1483 = vmatprep.mubr.f32.mxu0 %v1482
  %v1484 = vand.u32 %v13, 4294901760
  %v1485 = vsub.f32 %v13, %v1484
  %1486 = vmatmul.mubr.f32.gmra.mrb[0].mxu0 %v1485
  %v1487 = vpop.f32.mrb[0].mxu0
  %v1488 = vadd.f32 %v1350, %v1487
  %v1489 = vpop.f32.mrb[0].mxu0
  %1490 = vdwg.mxu0
  %1491 = vmatprep.subr.mxu0 0.0
  %v1492 = vand.u32 %v51, 4294901760
  %1493 = vmatpush1.msra.mxu0 %v1492
  %1494 = vmatprep.subr.mxu0 0.0
  %v1495 = vand.u32 %v52, 4294901760
  %1496 = vmatpush1.msra.mxu0 %v1495
  %1497 = vmatprep.subr.mxu0 0.0
  %v1498 = vand.u32 %v53, 4294901760
  %1499 = vmatpush1.msra.mxu0 %v1498
  %1500 = vmatprep.subr.mxu0 0.0
  %v1501 = vand.u32 %v54, 4294901760
  %1502 = vmatpush1.msra.mxu0 %v1501
  %1503 = vmatprep.subr.mxu0 0.0
  %v1504 = vand.u32 %v55, 4294901760
  %1505 = vmatpush1.msra.mxu0 %v1504
  %1506 = vmatprep.subr.mxu0 0.0
  %v1507 = vand.u32 %v56, 4294901760
  %1508 = vmatpush1.msra.mxu0 %v1507
  %1509 = vmatprep.subr.mxu0 0.0
  %v1510 = vand.u32 %v57, 4294901760
  %1511 = vmatpush1.msra.mxu0 %v1510
  %1512 = vmatprep.subr.mxu0 0.0
  %v1513 = vand.u32 %v58, 4294901760
  %1514 = vmatpush1.msra.mxu0 %v1513
  %1515 = vmatprep.subr.mxu0 0.0
  %v1516 = vand.u32 %v59, 4294901760
  %1517 = vmatpush1.msra.mxu0 %v1516
  %1518 = vmatprep.subr.mxu0 0.0
  %v1519 = vand.u32 %v60, 4294901760
  %1520 = vmatpush1.msra.mxu0 %v1519
  %1521 = vmatprep.subr.mxu0 0.0
  %v1522 = vand.u32 %v61, 4294901760
  %1523 = vmatpush1.msra.mxu0 %v1522
  %1524 = vmatprep.subr.mxu0 0.0
  %v1525 = vand.u32 %v62, 4294901760
  %1526 = vmatpush1.msra.mxu0 %v1525
  %1527 = vmatprep.subr.mxu0 0.0
  %v1528 = vand.u32 %v63, 4294901760
  %1529 = vmatpush1.msra.mxu0 %v1528
  %1530 = vmatprep.subr.mxu0 0.0
  %v1531 = vand.u32 %v64, 4294901760
  %1532 = vmatpush1.msra.mxu0 %v1531
  %1533 = vmatprep.subr.mxu0 0.0
  %v1534 = vand.u32 %v65, 4294901760
  %1535 = vmatpush1.msra.mxu0 %v1534
  %1536 = vmatprep.subr.mxu0 0.0
  %v1537 = vand.u32 %v66, 4294901760
  %1538 = vmatpush1.msra.mxu0 %v1537
  %1539 = vmatprep.subr.mxu0 0.0
  %v1540 = vand.u32 %v67, 4294901760
  %1541 = vmatpush1.msra.mxu0 %v1540
  %1542 = vmatprep.subr.mxu0 0.0
  %v1543 = vand.u32 %v68, 4294901760
  %1544 = vmatpush1.msra.mxu0 %v1543
  %1545 = vmatprep.subr.mxu0 0.0
  %v1546 = vand.u32 %v69, 4294901760
  %1547 = vmatpush1.msra.mxu0 %v1546
  %1548 = vmatprep.subr.mxu0 0.0
  %v1549 = vand.u32 %v70, 4294901760
  %1550 = vmatpush1.msra.mxu0 %v1549
  %1551 = vmatprep.subr.mxu0 0.0
  %v1552 = vand.u32 %v71, 4294901760
  %1553 = vmatpush1.msra.mxu0 %v1552
  %1554 = vmatprep.subr.mxu0 0.0
  %v1555 = vand.u32 %v72, 4294901760
  %1556 = vmatpush1.msra.mxu0 %v1555
  %1557 = vmatprep.subr.mxu0 0.0
  %v1558 = vand.u32 %v73, 4294901760
  %1559 = vmatpush1.msra.mxu0 %v1558
  %1560 = vmatprep.subr.mxu0 0.0
  %v1561 = vand.u32 %v74, 4294901760
  %1562 = vmatpush1.msra.mxu0 %v1561
  %1563 = vmatprep.subr.mxu0 0.0
  %v1564 = vand.u32 %v75, 4294901760
  %1565 = vmatpush1.msra.mxu0 %v1564
  %1566 = vmatprep.subr.mxu0 0.0
  %v1567 = vand.u32 %v76, 4294901760
  %1568 = vmatpush1.msra.mxu0 %v1567
  %1569 = vmatprep.subr.mxu0 0.0
  %v1570 = vand.u32 %v77, 4294901760
  %1571 = vmatpush1.msra.mxu0 %v1570
  %1572 = vmatprep.subr.mxu0 0.0
  %v1573 = vand.u32 %v78, 4294901760
  %1574 = vmatpush1.msra.mxu0 %v1573
  %1575 = vmatprep.subr.mxu0 0.0
  %v1576 = vand.u32 %v79, 4294901760
  %1577 = vmatpush1.msra.mxu0 %v1576
  %1578 = vmatprep.subr.mxu0 0.0
  %v1579 = vand.u32 %v80, 4294901760
  %1580 = vmatpush1.msra.mxu0 %v1579
  %1581 = vmatprep.subr.mxu0 0.0
  %v1582 = vand.u32 %v81, 4294901760
  %1583 = vmatpush1.msra.mxu0 %v1582
  %1584 = vmatprep.subr.mxu0 0.0
  %v1585 = vand.u32 %v82, 4294901760
  %1586 = vmatpush1.msra.mxu0 %v1585
  %v1587 = vand.u32 %v14, 4294901760
  %v1588 = vsub.f32 %v14, %v1587
  %v1589 = vand.u32 %v1588, 4294901760
  %1590 = vmatprep.mubr.f32.mxu0 %v1589
  %v1591 = vand.u32 %v13, 4294901760
  %v1592 = vsub.f32 %v13, %v1591
  %v1593 = vand.u32 %v1592, 4294901760
  %1594 = vmatmul.mubr.f32.gmra.mrb[0].mxu0 %v1593
  %v1595 = vpop.f32.mrb[0].mxu0
  %v1596 = vadd.f32 %v1488, %v1595
  %v1597 = vpop.f32.mrb[0].mxu0
  %1598 = vdwg.mxu0
  %1599 = vmatprep.subr.mxu0 0.0
  %v1600 = vand.u32 %v51, 4294901760
  %v1601 = vsub.f32 %v51, %v1600
  %v1602 = vand.u32 %v1601, 4294901760
  %1603 = vmatpush1.msra.mxu0 %v1602
  %1604 = vmatprep.subr.mxu0 0.0
  %v1605 = vand.u32 %v52, 4294901760
  %v1606 = vsub.f32 %v52, %v1605
  %v1607 = vand.u32 %v1606, 4294901760
  %1608 = vmatpush1.msra.mxu0 %v1607
  %1609 = vmatprep.subr.mxu0 0.0
  %v1610 = vand.u32 %v53, 4294901760
  %v1611 = vsub.f32 %v53, %v1610
  %v1612 = vand.u32 %v1611, 4294901760
  %1613 = vmatpush1.msra.mxu0 %v1612
  %1614 = vmatprep.subr.mxu0 0.0
  %v1615 = vand.u32 %v54, 4294901760
  %v1616 = vsub.f32 %v54, %v1615
  %v1617 = vand.u32 %v1616, 4294901760
  %1618 = vmatpush1.msra.mxu0 %v1617
  %1619 = vmatprep.subr.mxu0 0.0
  %v1620 = vand.u32 %v55, 4294901760
  %v1621 = vsub.f32 %v55, %v1620
  %v1622 = vand.u32 %v1621, 4294901760
  %1623 = vmatpush1.msra.mxu0 %v1622
  %1624 = vmatprep.subr.mxu0 0.0
  %v1625 = vand.u32 %v56, 4294901760
  %v1626 = vsub.f32 %v56, %v1625
  %v1627 = vand.u32 %v1626, 4294901760
  %1628 = vmatpush1.msra.mxu0 %v1627
  %1629 = vmatprep.subr.mxu0 0.0
  %v1630 = vand.u32 %v57, 4294901760
  %v1631 = vsub.f32 %v57, %v1630
  %v1632 = vand.u32 %v1631, 4294901760
  %1633 = vmatpush1.msra.mxu0 %v1632
  %1634 = vmatprep.subr.mxu0 0.0
  %v1635 = vand.u32 %v58, 4294901760
  %v1636 = vsub.f32 %v58, %v1635
  %v1637 = vand.u32 %v1636, 4294901760
  %1638 = vmatpush1.msra.mxu0 %v1637
  %1639 = vmatprep.subr.mxu0 0.0
  %v1640 = vand.u32 %v59, 4294901760
  %v1641 = vsub.f32 %v59, %v1640
  %v1642 = vand.u32 %v1641, 4294901760
  %1643 = vmatpush1.msra.mxu0 %v1642
  %1644 = vmatprep.subr.mxu0 0.0
  %v1645 = vand.u32 %v60, 4294901760
  %v1646 = vsub.f32 %v60, %v1645
  %v1647 = vand.u32 %v1646, 4294901760
  %1648 = vmatpush1.msra.mxu0 %v1647
  %1649 = vmatprep.subr.mxu0 0.0
  %v1650 = vand.u32 %v61, 4294901760
  %v1651 = vsub.f32 %v61, %v1650
  %v1652 = vand.u32 %v1651, 4294901760
  %1653 = vmatpush1.msra.mxu0 %v1652
  %1654 = vmatprep.subr.mxu0 0.0
  %v1655 = vand.u32 %v62, 4294901760
  %v1656 = vsub.f32 %v62, %v1655
  %v1657 = vand.u32 %v1656, 4294901760
  %1658 = vmatpush1.msra.mxu0 %v1657
  %1659 = vmatprep.subr.mxu0 0.0
  %v1660 = vand.u32 %v63, 4294901760
  %v1661 = vsub.f32 %v63, %v1660
  %v1662 = vand.u32 %v1661, 4294901760
  %1663 = vmatpush1.msra.mxu0 %v1662
  %1664 = vmatprep.subr.mxu0 0.0
  %v1665 = vand.u32 %v64, 4294901760
  %v1666 = vsub.f32 %v64, %v1665
  %v1667 = vand.u32 %v1666, 4294901760
  %1668 = vmatpush1.msra.mxu0 %v1667
  %1669 = vmatprep.subr.mxu0 0.0
  %v1670 = vand.u32 %v65, 4294901760
  %v1671 = vsub.f32 %v65, %v1670
  %v1672 = vand.u32 %v1671, 4294901760
  %1673 = vmatpush1.msra.mxu0 %v1672
  %1674 = vmatprep.subr.mxu0 0.0
  %v1675 = vand.u32 %v66, 4294901760
  %v1676 = vsub.f32 %v66, %v1675
  %v1677 = vand.u32 %v1676, 4294901760
  %1678 = vmatpush1.msra.mxu0 %v1677
  %1679 = vmatprep.subr.mxu0 0.0
  %v1680 = vand.u32 %v67, 4294901760
  %v1681 = vsub.f32 %v67, %v1680
  %v1682 = vand.u32 %v1681, 4294901760
  %1683 = vmatpush1.msra.mxu0 %v1682
  %1684 = vmatprep.subr.mxu0 0.0
  %v1685 = vand.u32 %v68, 4294901760
  %v1686 = vsub.f32 %v68, %v1685
  %v1687 = vand.u32 %v1686, 4294901760
  %1688 = vmatpush1.msra.mxu0 %v1687
  %1689 = vmatprep.subr.mxu0 0.0
  %v1690 = vand.u32 %v69, 4294901760
  %v1691 = vsub.f32 %v69, %v1690
  %v1692 = vand.u32 %v1691, 4294901760
  %1693 = vmatpush1.msra.mxu0 %v1692
  %1694 = vmatprep.subr.mxu0 0.0
  %v1695 = vand.u32 %v70, 4294901760
  %v1696 = vsub.f32 %v70, %v1695
  %v1697 = vand.u32 %v1696, 4294901760
  %1698 = vmatpush1.msra.mxu0 %v1697
  %1699 = vmatprep.subr.mxu0 0.0
  %v1700 = vand.u32 %v71, 4294901760
  %v1701 = vsub.f32 %v71, %v1700
  %v1702 = vand.u32 %v1701, 4294901760
  %1703 = vmatpush1.msra.mxu0 %v1702
  %1704 = vmatprep.subr.mxu0 0.0
  %v1705 = vand.u32 %v72, 4294901760
  %v1706 = vsub.f32 %v72, %v1705
  %v1707 = vand.u32 %v1706, 4294901760
  %1708 = vmatpush1.msra.mxu0 %v1707
  %1709 = vmatprep.subr.mxu0 0.0
  %v1710 = vand.u32 %v73, 4294901760
  %v1711 = vsub.f32 %v73, %v1710
  %v1712 = vand.u32 %v1711, 4294901760
  %1713 = vmatpush1.msra.mxu0 %v1712
  %1714 = vmatprep.subr.mxu0 0.0
  %v1715 = vand.u32 %v74, 4294901760
  %v1716 = vsub.f32 %v74, %v1715
  %v1717 = vand.u32 %v1716, 4294901760
  %1718 = vmatpush1.msra.mxu0 %v1717
  %1719 = vmatprep.subr.mxu0 0.0
  %v1720 = vand.u32 %v75, 4294901760
  %v1721 = vsub.f32 %v75, %v1720
  %v1722 = vand.u32 %v1721, 4294901760
  %1723 = vmatpush1.msra.mxu0 %v1722
  %1724 = vmatprep.subr.mxu0 0.0
  %v1725 = vand.u32 %v76, 4294901760
  %v1726 = vsub.f32 %v76, %v1725
  %v1727 = vand.u32 %v1726, 4294901760
  %1728 = vmatpush1.msra.mxu0 %v1727
  %1729 = vmatprep.subr.mxu0 0.0
  %v1730 = vand.u32 %v77, 4294901760
  %v1731 = vsub.f32 %v77, %v1730
  %v1732 = vand.u32 %v1731, 4294901760
  %1733 = vmatpush1.msra.mxu0 %v1732
  %1734 = vmatprep.subr.mxu0 0.0
  %v1735 = vand.u32 %v78, 4294901760
  %v1736 = vsub.f32 %v78, %v1735
  %v1737 = vand.u32 %v1736, 4294901760
  %1738 = vmatpush1.msra.mxu0 %v1737
  %1739 = vmatprep.subr.mxu0 0.0
  %v1740 = vand.u32 %v79, 4294901760
  %v1741 = vsub.f32 %v79, %v1740
  %v1742 = vand.u32 %v1741, 4294901760
  %1743 = vmatpush1.msra.mxu0 %v1742
  %1744 = vmatprep.subr.mxu0 0.0
  %v1745 = vand.u32 %v80, 4294901760
  %v1746 = vsub.f32 %v80, %v1745
  %v1747 = vand.u32 %v1746, 4294901760
  %1748 = vmatpush1.msra.mxu0 %v1747
  %1749 = vmatprep.subr.mxu0 0.0
  %v1750 = vand.u32 %v81, 4294901760
  %v1751 = vsub.f32 %v81, %v1750
  %v1752 = vand.u32 %v1751, 4294901760
  %1753 = vmatpush1.msra.mxu0 %v1752
  %1754 = vmatprep.subr.mxu0 0.0
  %v1755 = vand.u32 %v82, 4294901760
  %v1756 = vsub.f32 %v82, %v1755
  %v1757 = vand.u32 %v1756, 4294901760
  %1758 = vmatpush1.msra.mxu0 %v1757
  %v1759 = vand.u32 %v14, 4294901760
  %1760 = vmatprep.mubr.f32.mxu0 %v1759
  %v1761 = vand.u32 %v13, 4294901760
  %1762 = vmatmul.mubr.f32.gmra.mrb[0].mxu0 %v1761
  %v1763 = vpop.f32.mrb[0].mxu0
  %v1764 = vadd.f32 %v1596, %v1763
  %v1765 = vpop.f32.mrb[0].mxu0
  %1766 = vdwg.mxu0
  %1767 = vmatprep.subr.mxu0 0.0
  %v1768 = vand.u32 %v51, 4294901760
  %1769 = vmatpush1.msra.mxu0 %v1768
  %1770 = vmatprep.subr.mxu0 0.0
  %v1771 = vand.u32 %v52, 4294901760
  %1772 = vmatpush1.msra.mxu0 %v1771
  %1773 = vmatprep.subr.mxu0 0.0
  %v1774 = vand.u32 %v53, 4294901760
  %1775 = vmatpush1.msra.mxu0 %v1774
  %1776 = vmatprep.subr.mxu0 0.0
  %v1777 = vand.u32 %v54, 4294901760
  %1778 = vmatpush1.msra.mxu0 %v1777
  %1779 = vmatprep.subr.mxu0 0.0
  %v1780 = vand.u32 %v55, 4294901760
  %1781 = vmatpush1.msra.mxu0 %v1780
  %1782 = vmatprep.subr.mxu0 0.0
  %v1783 = vand.u32 %v56, 4294901760
  %1784 = vmatpush1.msra.mxu0 %v1783
  %1785 = vmatprep.subr.mxu0 0.0
  %v1786 = vand.u32 %v57, 4294901760
  %1787 = vmatpush1.msra.mxu0 %v1786
  %1788 = vmatprep.subr.mxu0 0.0
  %v1789 = vand.u32 %v58, 4294901760
  %1790 = vmatpush1.msra.mxu0 %v1789
  %1791 = vmatprep.subr.mxu0 0.0
  %v1792 = vand.u32 %v59, 4294901760
  %1793 = vmatpush1.msra.mxu0 %v1792
  %1794 = vmatprep.subr.mxu0 0.0
  %v1795 = vand.u32 %v60, 4294901760
  %1796 = vmatpush1.msra.mxu0 %v1795
  %1797 = vmatprep.subr.mxu0 0.0
  %v1798 = vand.u32 %v61, 4294901760
  %1799 = vmatpush1.msra.mxu0 %v1798
  %1800 = vmatprep.subr.mxu0 0.0
  %v1801 = vand.u32 %v62, 4294901760
  %1802 = vmatpush1.msra.mxu0 %v1801
  %1803 = vmatprep.subr.mxu0 0.0
  %v1804 = vand.u32 %v63, 4294901760
  %1805 = vmatpush1.msra.mxu0 %v1804
  %1806 = vmatprep.subr.mxu0 0.0
  %v1807 = vand.u32 %v64, 4294901760
  %1808 = vmatpush1.msra.mxu0 %v1807
  %1809 = vmatprep.subr.mxu0 0.0
  %v1810 = vand.u32 %v65, 4294901760
  %1811 = vmatpush1.msra.mxu0 %v1810
  %1812 = vmatprep.subr.mxu0 0.0
  %v1813 = vand.u32 %v66, 4294901760
  %1814 = vmatpush1.msra.mxu0 %v1813
  %1815 = vmatprep.subr.mxu0 0.0
  %v1816 = vand.u32 %v67, 4294901760
  %1817 = vmatpush1.msra.mxu0 %v1816
  %1818 = vmatprep.subr.mxu0 0.0
  %v1819 = vand.u32 %v68, 4294901760
  %1820 = vmatpush1.msra.mxu0 %v1819
  %1821 = vmatprep.subr.mxu0 0.0
  %v1822 = vand.u32 %v69, 4294901760
  %1823 = vmatpush1.msra.mxu0 %v1822
  %1824 = vmatprep.subr.mxu0 0.0
  %v1825 = vand.u32 %v70, 4294901760
  %1826 = vmatpush1.msra.mxu0 %v1825
  %1827 = vmatprep.subr.mxu0 0.0
  %v1828 = vand.u32 %v71, 4294901760
  %1829 = vmatpush1.msra.mxu0 %v1828
  %1830 = vmatprep.subr.mxu0 0.0
  %v1831 = vand.u32 %v72, 4294901760
  %1832 = vmatpush1.msra.mxu0 %v1831
  %1833 = vmatprep.subr.mxu0 0.0
  %v1834 = vand.u32 %v73, 4294901760
  %1835 = vmatpush1.msra.mxu0 %v1834
  %1836 = vmatprep.subr.mxu0 0.0
  %v1837 = vand.u32 %v74, 4294901760
  %1838 = vmatpush1.msra.mxu0 %v1837
  %1839 = vmatprep.subr.mxu0 0.0
  %v1840 = vand.u32 %v75, 4294901760
  %1841 = vmatpush1.msra.mxu0 %v1840
  %1842 = vmatprep.subr.mxu0 0.0
  %v1843 = vand.u32 %v76, 4294901760
  %1844 = vmatpush1.msra.mxu0 %v1843
  %1845 = vmatprep.subr.mxu0 0.0
  %v1846 = vand.u32 %v77, 4294901760
  %1847 = vmatpush1.msra.mxu0 %v1846
  %1848 = vmatprep.subr.mxu0 0.0
  %v1849 = vand.u32 %v78, 4294901760
  %1850 = vmatpush1.msra.mxu0 %v1849
  %1851 = vmatprep.subr.mxu0 0.0
  %v1852 = vand.u32 %v79, 4294901760
  %1853 = vmatpush1.msra.mxu0 %v1852
  %1854 = vmatprep.subr.mxu0 0.0
  %v1855 = vand.u32 %v80, 4294901760
  %1856 = vmatpush1.msra.mxu0 %v1855
  %1857 = vmatprep.subr.mxu0 0.0
  %v1858 = vand.u32 %v81, 4294901760
  %1859 = vmatpush1.msra.mxu0 %v1858
  %1860 = vmatprep.subr.mxu0 0.0
  %v1861 = vand.u32 %v82, 4294901760
  %1862 = vmatpush1.msra.mxu0 %v1861
  %v1863 = vand.u32 %v14, 4294901760
  %1864 = vmatprep.mubr.f32.mxu0 %v1863
  %v1865 = vand.u32 %v13, 4294901760
  %1866 = vmatmul.mubr.f32.gmra.mrb[0].mxu0 %v1865
  %v1867 = vpop.f32.mrb[0].mxu0
  %v1868 = vadd.f32 %v1764, %v1867
  %v1869 = vpop.f32.mrb[0].mxu0
  %1870 = vdwg.mxu0
  %1871 = vmatprep.subr.mxu0 0.0
  %v1872 = vand.u32 %v83, 4294901760
  %1873 = vmatpush1.msra.mxu0 %v1872
  %1874 = vmatprep.subr.mxu0 0.0
  %v1875 = vand.u32 %v84, 4294901760
  %1876 = vmatpush1.msra.mxu0 %v1875
  %1877 = vmatprep.subr.mxu0 0.0
  %v1878 = vand.u32 %v85, 4294901760
  %1879 = vmatpush1.msra.mxu0 %v1878
  %1880 = vmatprep.subr.mxu0 0.0
  %v1881 = vand.u32 %v86, 4294901760
  %1882 = vmatpush1.msra.mxu0 %v1881
  %1883 = vmatprep.subr.mxu0 0.0
  %v1884 = vand.u32 %v87, 4294901760
  %1885 = vmatpush1.msra.mxu0 %v1884
  %1886 = vmatprep.subr.mxu0 0.0
  %v1887 = vand.u32 %v88, 4294901760
  %1888 = vmatpush1.msra.mxu0 %v1887
  %1889 = vmatprep.subr.mxu0 0.0
  %v1890 = vand.u32 %v89, 4294901760
  %1891 = vmatpush1.msra.mxu0 %v1890
  %1892 = vmatprep.subr.mxu0 0.0
  %v1893 = vand.u32 %v90, 4294901760
  %1894 = vmatpush1.msra.mxu0 %v1893
  %1895 = vmatprep.subr.mxu0 0.0
  %v1896 = vand.u32 %v91, 4294901760
  %1897 = vmatpush1.msra.mxu0 %v1896
  %1898 = vmatprep.subr.mxu0 0.0
  %v1899 = vand.u32 %v92, 4294901760
  %1900 = vmatpush1.msra.mxu0 %v1899
  %1901 = vmatprep.subr.mxu0 0.0
  %v1902 = vand.u32 %v93, 4294901760
  %1903 = vmatpush1.msra.mxu0 %v1902
  %1904 = vmatprep.subr.mxu0 0.0
  %v1905 = vand.u32 %v94, 4294901760
  %1906 = vmatpush1.msra.mxu0 %v1905
  %1907 = vmatprep.subr.mxu0 0.0
  %v1908 = vand.u32 %v95, 4294901760
  %1909 = vmatpush1.msra.mxu0 %v1908
  %1910 = vmatprep.subr.mxu0 0.0
  %v1911 = vand.u32 %v96, 4294901760
  %1912 = vmatpush1.msra.mxu0 %v1911
  %1913 = vmatprep.subr.mxu0 0.0
  %v1914 = vand.u32 %v97, 4294901760
  %1915 = vmatpush1.msra.mxu0 %v1914
  %1916 = vmatprep.subr.mxu0 0.0
  %v1917 = vand.u32 %v98, 4294901760
  %1918 = vmatpush1.msra.mxu0 %v1917
  %1919 = vmatprep.subr.mxu0 0.0
  %v1920 = vand.u32 %v99, 4294901760
  %1921 = vmatpush1.msra.mxu0 %v1920
  %1922 = vmatprep.subr.mxu0 0.0
  %v1923 = vand.u32 %v100, 4294901760
  %1924 = vmatpush1.msra.mxu0 %v1923
  %1925 = vmatprep.subr.mxu0 0.0
  %v1926 = vand.u32 %v101, 4294901760
  %1927 = vmatpush1.msra.mxu0 %v1926
  %1928 = vmatprep.subr.mxu0 0.0
  %v1929 = vand.u32 %v102, 4294901760
  %1930 = vmatpush1.msra.mxu0 %v1929
  %1931 = vmatprep.subr.mxu0 0.0
  %v1932 = vand.u32 %v103, 4294901760
  %1933 = vmatpush1.msra.mxu0 %v1932
  %1934 = vmatprep.subr.mxu0 0.0
  %v1935 = vand.u32 %v104, 4294901760
  %1936 = vmatpush1.msra.mxu0 %v1935
  %1937 = vmatprep.subr.mxu0 0.0
  %v1938 = vand.u32 %v105, 4294901760
  %1939 = vmatpush1.msra.mxu0 %v1938
  %1940 = vmatprep.subr.mxu0 0.0
  %v1941 = vand.u32 %v106, 4294901760
  %1942 = vmatpush1.msra.mxu0 %v1941
  %1943 = vmatprep.subr.mxu0 0.0
  %v1944 = vand.u32 %v107, 4294901760
  %1945 = vmatpush1.msra.mxu0 %v1944
  %1946 = vmatprep.subr.mxu0 0.0
  %v1947 = vand.u32 %v108, 4294901760
  %1948 = vmatpush1.msra.mxu0 %v1947
  %1949 = vmatprep.subr.mxu0 0.0
  %v1950 = vand.u32 %v109, 4294901760
  %1951 = vmatpush1.msra.mxu0 %v1950
  %1952 = vmatprep.subr.mxu0 0.0
  %v1953 = vand.u32 %v110, 4294901760
  %1954 = vmatpush1.msra.mxu0 %v1953
  %1955 = vmatprep.subr.mxu0 0.0
  %v1956 = vand.u32 %v111, 4294901760
  %1957 = vmatpush1.msra.mxu0 %v1956
  %1958 = vmatprep.subr.mxu0 0.0
  %v1959 = vand.u32 %v112, 4294901760
  %1960 = vmatpush1.msra.mxu0 %v1959
  %1961 = vmatprep.subr.mxu0 0.0
  %v1962 = vand.u32 %v113, 4294901760
  %1963 = vmatpush1.msra.mxu0 %v1962
  %1964 = vmatprep.subr.mxu0 0.0
  %v1965 = vand.u32 %v114, 4294901760
  %1966 = vmatpush1.msra.mxu0 %v1965
  %v1967 = vand.u32 %v16, 4294901760
  %v1968 = vsub.f32 %v16, %v1967
  %v1969 = vand.u32 %v1968, 4294901760
  %v1970 = vsub.f32 %v1968, %v1969
  %v1971 = vand.u32 %v1970, 4294901760
  %1972 = vmatprep.mubr.f32.mxu0 %v1971
  %v1973 = vand.u32 %v15, 4294901760
  %v1974 = vsub.f32 %v15, %v1973
  %v1975 = vand.u32 %v1974, 4294901760
  %v1976 = vsub.f32 %v1974, %v1975
  %v1977 = vand.u32 %v1976, 4294901760
  %1978 = vmatmul.mubr.f32.gmra.mrb[0].mxu0 %v1977
  %v1979 = vpop.f32.mrb[0].mxu0
  %v1980 = vadd.f32 %v1868, %v1979
  %v1981 = vpop.f32.mrb[0].mxu0
  %1982 = vdwg.mxu0
  %1983 = vmatprep.subr.mxu0 0.0
  %v1984 = vand.u32 %v83, 4294901760
  %v1985 = vsub.f32 %v83, %v1984
  %v1986 = vand.u32 %v1985, 4294901760
  %v1987 = vsub.f32 %v1985, %v1986
  %v1988 = vand.u32 %v1987, 4294901760
  %1989 = vmatpush1.msra.mxu0 %v1988
  %1990 = vmatprep.subr.mxu0 0.0
  %v1991 = vand.u32 %v84, 4294901760
  %v1992 = vsub.f32 %v84, %v1991
  %v1993 = vand.u32 %v1992, 4294901760
  %v1994 = vsub.f32 %v1992, %v1993
  %v1995 = vand.u32 %v1994, 4294901760
  %1996 = vmatpush1.msra.mxu0 %v1995
  %1997 = vmatprep.subr.mxu0 0.0
  %v1998 = vand.u32 %v85, 4294901760
  %v1999 = vsub.f32 %v85, %v1998
  %v2000 = vand.u32 %v1999, 4294901760
  %v2001 = vsub.f32 %v1999, %v2000
  %v2002 = vand.u32 %v2001, 4294901760
  %2003 = vmatpush1.msra.mxu0 %v2002
  %2004 = vmatprep.subr.mxu0 0.0
  %v2005 = vand.u32 %v86, 4294901760
  %v2006 = vsub.f32 %v86, %v2005
  %v2007 = vand.u32 %v2006, 4294901760
  %v2008 = vsub.f32 %v2006, %v2007
  %v2009 = vand.u32 %v2008, 4294901760
  %2010 = vmatpush1.msra.mxu0 %v2009
  %2011 = vmatprep.subr.mxu0 0.0
  %v2012 = vand.u32 %v87, 4294901760
  %v2013 = vsub.f32 %v87, %v2012
  %v2014 = vand.u32 %v2013, 4294901760
  %v2015 = vsub.f32 %v2013, %v2014
  %v2016 = vand.u32 %v2015, 4294901760
  %2017 = vmatpush1.msra.mxu0 %v2016
  %2018 = vmatprep.subr.mxu0 0.0
  %v2019 = vand.u32 %v88, 4294901760
  %v2020 = vsub.f32 %v88, %v2019
  %v2021 = vand.u32 %v2020, 4294901760
  %v2022 = vsub.f32 %v2020, %v2021
  %v2023 = vand.u32 %v2022, 4294901760
  %2024 = vmatpush1.msra.mxu0 %v2023
  %2025 = vmatprep.subr.mxu0 0.0
  %v2026 = vand.u32 %v89, 4294901760
  %v2027 = vsub.f32 %v89, %v2026
  %v2028 = vand.u32 %v2027, 4294901760
  %v2029 = vsub.f32 %v2027, %v2028
  %v2030 = vand.u32 %v2029, 4294901760
  %2031 = vmatpush1.msra.mxu0 %v2030
  %2032 = vmatprep.subr.mxu0 0.0
  %v2033 = vand.u32 %v90, 4294901760
  %v2034 = vsub.f32 %v90, %v2033
  %v2035 = vand.u32 %v2034, 4294901760
  %v2036 = vsub.f32 %v2034, %v2035
  %v2037 = vand.u32 %v2036, 4294901760
  %2038 = vmatpush1.msra.mxu0 %v2037
  %2039 = vmatprep.subr.mxu0 0.0
  %v2040 = vand.u32 %v91, 4294901760
  %v2041 = vsub.f32 %v91, %v2040
  %v2042 = vand.u32 %v2041, 4294901760
  %v2043 = vsub.f32 %v2041, %v2042
  %v2044 = vand.u32 %v2043, 4294901760
  %2045 = vmatpush1.msra.mxu0 %v2044
  %2046 = vmatprep.subr.mxu0 0.0
  %v2047 = vand.u32 %v92, 4294901760
  %v2048 = vsub.f32 %v92, %v2047
  %v2049 = vand.u32 %v2048, 4294901760
  %v2050 = vsub.f32 %v2048, %v2049
  %v2051 = vand.u32 %v2050, 4294901760
  %2052 = vmatpush1.msra.mxu0 %v2051
  %2053 = vmatprep.subr.mxu0 0.0
  %v2054 = vand.u32 %v93, 4294901760
  %v2055 = vsub.f32 %v93, %v2054
  %v2056 = vand.u32 %v2055, 4294901760
  %v2057 = vsub.f32 %v2055, %v2056
  %v2058 = vand.u32 %v2057, 4294901760
  %2059 = vmatpush1.msra.mxu0 %v2058
  %2060 = vmatprep.subr.mxu0 0.0
  %v2061 = vand.u32 %v94, 4294901760
  %v2062 = vsub.f32 %v94, %v2061
  %v2063 = vand.u32 %v2062, 4294901760
  %v2064 = vsub.f32 %v2062, %v2063
  %v2065 = vand.u32 %v2064, 4294901760
  %2066 = vmatpush1.msra.mxu0 %v2065
  %2067 = vmatprep.subr.mxu0 0.0
  %v2068 = vand.u32 %v95, 4294901760
  %v2069 = vsub.f32 %v95, %v2068
  %v2070 = vand.u32 %v2069, 4294901760
  %v2071 = vsub.f32 %v2069, %v2070
  %v2072 = vand.u32 %v2071, 4294901760
  %2073 = vmatpush1.msra.mxu0 %v2072
  %2074 = vmatprep.subr.mxu0 0.0
  %v2075 = vand.u32 %v96, 4294901760
  %v2076 = vsub.f32 %v96, %v2075
  %v2077 = vand.u32 %v2076, 4294901760
  %v2078 = vsub.f32 %v2076, %v2077
  %v2079 = vand.u32 %v2078, 4294901760
  %2080 = vmatpush1.msra.mxu0 %v2079
  %2081 = vmatprep.subr.mxu0 0.0
  %v2082 = vand.u32 %v97, 4294901760
  %v2083 = vsub.f32 %v97, %v2082
  %v2084 = vand.u32 %v2083, 4294901760
  %v2085 = vsub.f32 %v2083, %v2084
  %v2086 = vand.u32 %v2085, 4294901760
  %2087 = vmatpush1.msra.mxu0 %v2086
  %2088 = vmatprep.subr.mxu0 0.0
  %v2089 = vand.u32 %v98, 4294901760
  %v2090 = vsub.f32 %v98, %v2089
  %v2091 = vand.u32 %v2090, 4294901760
  %v2092 = vsub.f32 %v2090, %v2091
  %v2093 = vand.u32 %v2092, 4294901760
  %2094 = vmatpush1.msra.mxu0 %v2093
  %2095 = vmatprep.subr.mxu0 0.0
  %v2096 = vand.u32 %v99, 4294901760
  %v2097 = vsub.f32 %v99, %v2096
  %v2098 = vand.u32 %v2097, 4294901760
  %v2099 = vsub.f32 %v2097, %v2098
  %v2100 = vand.u32 %v2099, 4294901760
  %2101 = vmatpush1.msra.mxu0 %v2100
  %2102 = vmatprep.subr.mxu0 0.0
  %v2103 = vand.u32 %v100, 4294901760
  %v2104 = vsub.f32 %v100, %v2103
  %v2105 = vand.u32 %v2104, 4294901760
  %v2106 = vsub.f32 %v2104, %v2105
  %v2107 = vand.u32 %v2106, 4294901760
  %2108 = vmatpush1.msra.mxu0 %v2107
  %2109 = vmatprep.subr.mxu0 0.0
  %v2110 = vand.u32 %v101, 4294901760
  %v2111 = vsub.f32 %v101, %v2110
  %v2112 = vand.u32 %v2111, 4294901760
  %v2113 = vsub.f32 %v2111, %v2112
  %v2114 = vand.u32 %v2113, 4294901760
  %2115 = vmatpush1.msra.mxu0 %v2114
  %2116 = vmatprep.subr.mxu0 0.0
  %v2117 = vand.u32 %v102, 4294901760
  %v2118 = vsub.f32 %v102, %v2117
  %v2119 = vand.u32 %v2118, 4294901760
  %v2120 = vsub.f32 %v2118, %v2119
  %v2121 = vand.u32 %v2120, 4294901760
  %2122 = vmatpush1.msra.mxu0 %v2121
  %2123 = vmatprep.subr.mxu0 0.0
  %v2124 = vand.u32 %v103, 4294901760
  %v2125 = vsub.f32 %v103, %v2124
  %v2126 = vand.u32 %v2125, 4294901760
  %v2127 = vsub.f32 %v2125, %v2126
  %v2128 = vand.u32 %v2127, 4294901760
  %2129 = vmatpush1.msra.mxu0 %v2128
  %2130 = vmatprep.subr.mxu0 0.0
  %v2131 = vand.u32 %v104, 4294901760
  %v2132 = vsub.f32 %v104, %v2131
  %v2133 = vand.u32 %v2132, 4294901760
  %v2134 = vsub.f32 %v2132, %v2133
  %v2135 = vand.u32 %v2134, 4294901760
  %2136 = vmatpush1.msra.mxu0 %v2135
  %2137 = vmatprep.subr.mxu0 0.0
  %v2138 = vand.u32 %v105, 4294901760
  %v2139 = vsub.f32 %v105, %v2138
  %v2140 = vand.u32 %v2139, 4294901760
  %v2141 = vsub.f32 %v2139, %v2140
  %v2142 = vand.u32 %v2141, 4294901760
  %2143 = vmatpush1.msra.mxu0 %v2142
  %2144 = vmatprep.subr.mxu0 0.0
  %v2145 = vand.u32 %v106, 4294901760
  %v2146 = vsub.f32 %v106, %v2145
  %v2147 = vand.u32 %v2146, 4294901760
  %v2148 = vsub.f32 %v2146, %v2147
  %v2149 = vand.u32 %v2148, 4294901760
  %2150 = vmatpush1.msra.mxu0 %v2149
  %2151 = vmatprep.subr.mxu0 0.0
  %v2152 = vand.u32 %v107, 4294901760
  %v2153 = vsub.f32 %v107, %v2152
  %v2154 = vand.u32 %v2153, 4294901760
  %v2155 = vsub.f32 %v2153, %v2154
  %v2156 = vand.u32 %v2155, 4294901760
  %2157 = vmatpush1.msra.mxu0 %v2156
  %2158 = vmatprep.subr.mxu0 0.0
  %v2159 = vand.u32 %v108, 4294901760
  %v2160 = vsub.f32 %v108, %v2159
  %v2161 = vand.u32 %v2160, 4294901760
  %v2162 = vsub.f32 %v2160, %v2161
  %v2163 = vand.u32 %v2162, 4294901760
  %2164 = vmatpush1.msra.mxu0 %v2163
  %2165 = vmatprep.subr.mxu0 0.0
  %v2166 = vand.u32 %v109, 4294901760
  %v2167 = vsub.f32 %v109, %v2166
  %v2168 = vand.u32 %v2167, 4294901760
  %v2169 = vsub.f32 %v2167, %v2168
  %v2170 = vand.u32 %v2169, 4294901760
  %2171 = vmatpush1.msra.mxu0 %v2170
  %2172 = vmatprep.subr.mxu0 0.0
  %v2173 = vand.u32 %v110, 4294901760
  %v2174 = vsub.f32 %v110, %v2173
  %v2175 = vand.u32 %v2174, 4294901760
  %v2176 = vsub.f32 %v2174, %v2175
  %v2177 = vand.u32 %v2176, 4294901760
  %2178 = vmatpush1.msra.mxu0 %v2177
  %2179 = vmatprep.subr.mxu0 0.0
  %v2180 = vand.u32 %v111, 4294901760
  %v2181 = vsub.f32 %v111, %v2180
  %v2182 = vand.u32 %v2181, 4294901760
  %v2183 = vsub.f32 %v2181, %v2182
  %v2184 = vand.u32 %v2183, 4294901760
  %2185 = vmatpush1.msra.mxu0 %v2184
  %2186 = vmatprep.subr.mxu0 0.0
  %v2187 = vand.u32 %v112, 4294901760
  %v2188 = vsub.f32 %v112, %v2187
  %v2189 = vand.u32 %v2188, 4294901760
  %v2190 = vsub.f32 %v2188, %v2189
  %v2191 = vand.u32 %v2190, 4294901760
  %2192 = vmatpush1.msra.mxu0 %v2191
  %2193 = vmatprep.subr.mxu0 0.0
  %v2194 = vand.u32 %v113, 4294901760
  %v2195 = vsub.f32 %v113, %v2194
  %v2196 = vand.u32 %v2195, 4294901760
  %v2197 = vsub.f32 %v2195, %v2196
  %v2198 = vand.u32 %v2197, 4294901760
  %2199 = vmatpush1.msra.mxu0 %v2198
  %2200 = vmatprep.subr.mxu0 0.0
  %v2201 = vand.u32 %v114, 4294901760
  %v2202 = vsub.f32 %v114, %v2201
  %v2203 = vand.u32 %v2202, 4294901760
  %v2204 = vsub.f32 %v2202, %v2203
  %v2205 = vand.u32 %v2204, 4294901760
  %2206 = vmatpush1.msra.mxu0 %v2205
  %v2207 = vand.u32 %v16, 4294901760
  %2208 = vmatprep.mubr.f32.mxu0 %v2207
  %v2209 = vand.u32 %v15, 4294901760
  %2210 = vmatmul.mubr.f32.gmra.mrb[0].mxu0 %v2209
  %v2211 = vpop.f32.mrb[0].mxu0
  %v2212 = vadd.f32 %v1980, %v2211
  %v2213 = vpop.f32.mrb[0].mxu0
  %2214 = vdwg.mxu0
  %2215 = vmatprep.subr.mxu0 0.0
  %v2216 = vand.u32 %v83, 4294901760
  %v2217 = vsub.f32 %v83, %v2216
  %2218 = vmatpush1.msra.mxu0 %v2217
  %2219 = vmatprep.subr.mxu0 0.0
  %v2220 = vand.u32 %v84, 4294901760
  %v2221 = vsub.f32 %v84, %v2220
  %2222 = vmatpush1.msra.mxu0 %v2221
  %2223 = vmatprep.subr.mxu0 0.0
  %v2224 = vand.u32 %v85, 4294901760
  %v2225 = vsub.f32 %v85, %v2224
  %2226 = vmatpush1.msra.mxu0 %v2225
  %2227 = vmatprep.subr.mxu0 0.0
  %v2228 = vand.u32 %v86, 4294901760
  %v2229 = vsub.f32 %v86, %v2228
  %2230 = vmatpush1.msra.mxu0 %v2229
  %2231 = vmatprep.subr.mxu0 0.0
  %v2232 = vand.u32 %v87, 4294901760
  %v2233 = vsub.f32 %v87, %v2232
  %2234 = vmatpush1.msra.mxu0 %v2233
  %2235 = vmatprep.subr.mxu0 0.0
  %v2236 = vand.u32 %v88, 4294901760
  %v2237 = vsub.f32 %v88, %v2236
  %2238 = vmatpush1.msra.mxu0 %v2237
  %2239 = vmatprep.subr.mxu0 0.0
  %v2240 = vand.u32 %v89, 4294901760
  %v2241 = vsub.f32 %v89, %v2240
  %2242 = vmatpush1.msra.mxu0 %v2241
  %2243 = vmatprep.subr.mxu0 0.0
  %v2244 = vand.u32 %v90, 4294901760
  %v2245 = vsub.f32 %v90, %v2244
  %2246 = vmatpush1.msra.mxu0 %v2245
  %2247 = vmatprep.subr.mxu0 0.0
  %v2248 = vand.u32 %v91, 4294901760
  %v2249 = vsub.f32 %v91, %v2248
  %2250 = vmatpush1.msra.mxu0 %v2249
  %2251 = vmatprep.subr.mxu0 0.0
  %v2252 = vand.u32 %v92, 4294901760
  %v2253 = vsub.f32 %v92, %v2252
  %2254 = vmatpush1.msra.mxu0 %v2253
  %2255 = vmatprep.subr.mxu0 0.0
  %v2256 = vand.u32 %v93, 4294901760
  %v2257 = vsub.f32 %v93, %v2256
  %2258 = vmatpush1.msra.mxu0 %v2257
  %2259 = vmatprep.subr.mxu0 0.0
  %v2260 = vand.u32 %v94, 4294901760
  %v2261 = vsub.f32 %v94, %v2260
  %2262 = vmatpush1.msra.mxu0 %v2261
  %2263 = vmatprep.subr.mxu0 0.0
  %v2264 = vand.u32 %v95, 4294901760
  %v2265 = vsub.f32 %v95, %v2264
  %2266 = vmatpush1.msra.mxu0 %v2265
  %2267 = vmatprep.subr.mxu0 0.0
  %v2268 = vand.u32 %v96, 4294901760
  %v2269 = vsub.f32 %v96, %v2268
  %2270 = vmatpush1.msra.mxu0 %v2269
  %2271 = vmatprep.subr.mxu0 0.0
  %v2272 = vand.u32 %v97, 4294901760
  %v2273 = vsub.f32 %v97, %v2272
  %2274 = vmatpush1.msra.mxu0 %v2273
  %2275 = vmatprep.subr.mxu0 0.0
  %v2276 = vand.u32 %v98, 4294901760
  %v2277 = vsub.f32 %v98, %v2276
  %2278 = vmatpush1.msra.mxu0 %v2277
  %2279 = vmatprep.subr.mxu0 0.0
  %v2280 = vand.u32 %v99, 4294901760
  %v2281 = vsub.f32 %v99, %v2280
  %2282 = vmatpush1.msra.mxu0 %v2281
  %2283 = vmatprep.subr.mxu0 0.0
  %v2284 = vand.u32 %v100, 4294901760
  %v2285 = vsub.f32 %v100, %v2284
  %2286 = vmatpush1.msra.mxu0 %v2285
  %2287 = vmatprep.subr.mxu0 0.0
  %v2288 = vand.u32 %v101, 4294901760
  %v2289 = vsub.f32 %v101, %v2288
  %2290 = vmatpush1.msra.mxu0 %v2289
  %2291 = vmatprep.subr.mxu0 0.0
  %v2292 = vand.u32 %v102, 4294901760
  %v2293 = vsub.f32 %v102, %v2292
  %2294 = vmatpush1.msra.mxu0 %v2293
  %2295 = vmatprep.subr.mxu0 0.0
  %v2296 = vand.u32 %v103, 4294901760
  %v2297 = vsub.f32 %v103, %v2296
  %2298 = vmatpush1.msra.mxu0 %v2297
  %2299 = vmatprep.subr.mxu0 0.0
  %v2300 = vand.u32 %v104, 4294901760
  %v2301 = vsub.f32 %v104, %v2300
  %2302 = vmatpush1.msra.mxu0 %v2301
  %2303 = vmatprep.subr.mxu0 0.0
  %v2304 = vand.u32 %v105, 4294901760
  %v2305 = vsub.f32 %v105, %v2304
  %2306 = vmatpush1.msra.mxu0 %v2305
  %2307 = vmatprep.subr.mxu0 0.0
  %v2308 = vand.u32 %v106, 4294901760
  %v2309 = vsub.f32 %v106, %v2308
  %2310 = vmatpush1.msra.mxu0 %v2309
  %2311 = vmatprep.subr.mxu0 0.0
  %v2312 = vand.u32 %v107, 4294901760
  %v2313 = vsub.f32 %v107, %v2312
  %2314 = vmatpush1.msra.mxu0 %v2313
  %2315 = vmatprep.subr.mxu0 0.0
  %v2316 = vand.u32 %v108, 4294901760
  %v2317 = vsub.f32 %v108, %v2316
  %2318 = vmatpush1.msra.mxu0 %v2317
  %2319 = vmatprep.subr.mxu0 0.0
  %v2320 = vand.u32 %v109, 4294901760
  %v2321 = vsub.f32 %v109, %v2320
  %2322 = vmatpush1.msra.mxu0 %v2321
  %2323 = vmatprep.subr.mxu0 0.0
  %v2324 = vand.u32 %v110, 4294901760
  %v2325 = vsub.f32 %v110, %v2324
  %2326 = vmatpush1.msra.mxu0 %v2325
  %2327 = vmatprep.subr.mxu0 0.0
  %v2328 = vand.u32 %v111, 4294901760
  %v2329 = vsub.f32 %v111, %v2328
  %2330 = vmatpush1.msra.mxu0 %v2329
  %2331 = vmatprep.subr.mxu0 0.0
  %v2332 = vand.u32 %v112, 4294901760
  %v2333 = vsub.f32 %v112, %v2332
  %2334 = vmatpush1.msra.mxu0 %v2333
  %2335 = vmatprep.subr.mxu0 0.0
  %v2336 = vand.u32 %v113, 4294901760
  %v2337 = vsub.f32 %v113, %v2336
  %2338 = vmatpush1.msra.mxu0 %v2337
  %2339 = vmatprep.subr.mxu0 0.0
  %v2340 = vand.u32 %v114, 4294901760
  %v2341 = vsub.f32 %v114, %v2340
  %2342 = vmatpush1.msra.mxu0 %v2341
  %v2343 = vand.u32 %v16, 4294901760
  %v2344 = vsub.f32 %v16, %v2343
  %2345 = vmatprep.mubr.f32.mxu0 %v2344
  %v2346 = vand.u32 %v15, 4294901760
  %v2347 = vsub.f32 %v15, %v2346
  %2348 = vmatmul.mubr.f32.gmra.mrb[0].mxu0 %v2347
  %v2349 = vpop.f32.mrb[0].mxu0
  %v2350 = vadd.f32 %v2212, %v2349
  %v2351 = vpop.f32.mrb[0].mxu0
  %2352 = vdwg.mxu0
  %2353 = vmatprep.subr.mxu0 0.0
  %v2354 = vand.u32 %v83, 4294901760
  %2355 = vmatpush1.msra.mxu0 %v2354
  %2356 = vmatprep.subr.mxu0 0.0
  %v2357 = vand.u32 %v84, 4294901760
  %2358 = vmatpush1.msra.mxu0 %v2357
  %2359 = vmatprep.subr.mxu0 0.0
  %v2360 = vand.u32 %v85, 4294901760
  %2361 = vmatpush1.msra.mxu0 %v2360
  %2362 = vmatprep.subr.mxu0 0.0
  %v2363 = vand.u32 %v86, 4294901760
  %2364 = vmatpush1.msra.mxu0 %v2363
  %2365 = vmatprep.subr.mxu0 0.0
  %v2366 = vand.u32 %v87, 4294901760
  %2367 = vmatpush1.msra.mxu0 %v2366
  %2368 = vmatprep.subr.mxu0 0.0
  %v2369 = vand.u32 %v88, 4294901760
  %2370 = vmatpush1.msra.mxu0 %v2369
  %2371 = vmatprep.subr.mxu0 0.0
  %v2372 = vand.u32 %v89, 4294901760
  %2373 = vmatpush1.msra.mxu0 %v2372
  %2374 = vmatprep.subr.mxu0 0.0
  %v2375 = vand.u32 %v90, 4294901760
  %2376 = vmatpush1.msra.mxu0 %v2375
  %2377 = vmatprep.subr.mxu0 0.0
  %v2378 = vand.u32 %v91, 4294901760
  %2379 = vmatpush1.msra.mxu0 %v2378
  %2380 = vmatprep.subr.mxu0 0.0
  %v2381 = vand.u32 %v92, 4294901760
  %2382 = vmatpush1.msra.mxu0 %v2381
  %2383 = vmatprep.subr.mxu0 0.0
  %v2384 = vand.u32 %v93, 4294901760
  %2385 = vmatpush1.msra.mxu0 %v2384
  %2386 = vmatprep.subr.mxu0 0.0
  %v2387 = vand.u32 %v94, 4294901760
  %2388 = vmatpush1.msra.mxu0 %v2387
  %2389 = vmatprep.subr.mxu0 0.0
  %v2390 = vand.u32 %v95, 4294901760
  %2391 = vmatpush1.msra.mxu0 %v2390
  %2392 = vmatprep.subr.mxu0 0.0
  %v2393 = vand.u32 %v96, 4294901760
  %2394 = vmatpush1.msra.mxu0 %v2393
  %2395 = vmatprep.subr.mxu0 0.0
  %v2396 = vand.u32 %v97, 4294901760
  %2397 = vmatpush1.msra.mxu0 %v2396
  %2398 = vmatprep.subr.mxu0 0.0
  %v2399 = vand.u32 %v98, 4294901760
  %2400 = vmatpush1.msra.mxu0 %v2399
  %2401 = vmatprep.subr.mxu0 0.0
  %v2402 = vand.u32 %v99, 4294901760
  %2403 = vmatpush1.msra.mxu0 %v2402
  %2404 = vmatprep.subr.mxu0 0.0
  %v2405 = vand.u32 %v100, 4294901760
  %2406 = vmatpush1.msra.mxu0 %v2405
  %2407 = vmatprep.subr.mxu0 0.0
  %v2408 = vand.u32 %v101, 4294901760
  %2409 = vmatpush1.msra.mxu0 %v2408
  %2410 = vmatprep.subr.mxu0 0.0
  %v2411 = vand.u32 %v102, 4294901760
  %2412 = vmatpush1.msra.mxu0 %v2411
  %2413 = vmatprep.subr.mxu0 0.0
  %v2414 = vand.u32 %v103, 4294901760
  %2415 = vmatpush1.msra.mxu0 %v2414
  %2416 = vmatprep.subr.mxu0 0.0
  %v2417 = vand.u32 %v104, 4294901760
  %2418 = vmatpush1.msra.mxu0 %v2417
  %2419 = vmatprep.subr.mxu0 0.0
  %v2420 = vand.u32 %v105, 4294901760
  %2421 = vmatpush1.msra.mxu0 %v2420
  %2422 = vmatprep.subr.mxu0 0.0
  %v2423 = vand.u32 %v106, 4294901760
  %2424 = vmatpush1.msra.mxu0 %v2423
  %2425 = vmatprep.subr.mxu0 0.0
  %v2426 = vand.u32 %v107, 4294901760
  %2427 = vmatpush1.msra.mxu0 %v2426
  %2428 = vmatprep.subr.mxu0 0.0
  %v2429 = vand.u32 %v108, 4294901760
  %2430 = vmatpush1.msra.mxu0 %v2429
  %2431 = vmatprep.subr.mxu0 0.0
  %v2432 = vand.u32 %v109, 4294901760
  %2433 = vmatpush1.msra.mxu0 %v2432
  %2434 = vmatprep.subr.mxu0 0.0
  %v2435 = vand.u32 %v110, 4294901760
  %2436 = vmatpush1.msra.mxu0 %v2435
  %2437 = vmatprep.subr.mxu0 0.0
  %v2438 = vand.u32 %v111, 4294901760
  %2439 = vmatpush1.msra.mxu0 %v2438
  %2440 = vmatprep.subr.mxu0 0.0
  %v2441 = vand.u32 %v112, 4294901760
  %2442 = vmatpush1.msra.mxu0 %v2441
  %2443 = vmatprep.subr.mxu0 0.0
  %v2444 = vand.u32 %v113, 4294901760
  %2445 = vmatpush1.msra.mxu0 %v2444
  %2446 = vmatprep.subr.mxu0 0.0
  %v2447 = vand.u32 %v114, 4294901760
  %2448 = vmatpush1.msra.mxu0 %v2447
  %v2449 = vand.u32 %v16, 4294901760
  %v2450 = vsub.f32 %v16, %v2449
  %v2451 = vand.u32 %v2450, 4294901760
  %2452 = vmatprep.mubr.f32.mxu0 %v2451
  %v2453 = vand.u32 %v15, 4294901760
  %v2454 = vsub.f32 %v15, %v2453
  %v2455 = vand.u32 %v2454, 4294901760
  %2456 = vmatmul.mubr.f32.gmra.mrb[0].mxu0 %v2455
  %v2457 = vpop.f32.mrb[0].mxu0
  %v2458 = vadd.f32 %v2350, %v2457
  %v2459 = vpop.f32.mrb[0].mxu0
  %2460 = vdwg.mxu0
  %2461 = vmatprep.subr.mxu0 0.0
  %v2462 = vand.u32 %v83, 4294901760
  %v2463 = vsub.f32 %v83, %v2462
  %v2464 = vand.u32 %v2463, 4294901760
  %2465 = vmatpush1.msra.mxu0 %v2464
  %2466 = vmatprep.subr.mxu0 0.0
  %v2467 = vand.u32 %v84, 4294901760
  %v2468 = vsub.f32 %v84, %v2467
  %v2469 = vand.u32 %v2468, 4294901760
  %2470 = vmatpush1.msra.mxu0 %v2469
  %2471 = vmatprep.subr.mxu0 0.0
  %v2472 = vand.u32 %v85, 4294901760
  %v2473 = vsub.f32 %v85, %v2472
  %v2474 = vand.u32 %v2473, 4294901760
  %2475 = vmatpush1.msra.mxu0 %v2474
  %2476 = vmatprep.subr.mxu0 0.0
  %v2477 = vand.u32 %v86, 4294901760
  %v2478 = vsub.f32 %v86, %v2477
  %v2479 = vand.u32 %v2478, 4294901760
  %2480 = vmatpush1.msra.mxu0 %v2479
  %2481 = vmatprep.subr.mxu0 0.0
  %v2482 = vand.u32 %v87, 4294901760
  %v2483 = vsub.f32 %v87, %v2482
  %v2484 = vand.u32 %v2483, 4294901760
  %2485 = vmatpush1.msra.mxu0 %v2484
  %2486 = vmatprep.subr.mxu0 0.0
  %v2487 = vand.u32 %v88, 4294901760
  %v2488 = vsub.f32 %v88, %v2487
  %v2489 = vand.u32 %v2488, 4294901760
  %2490 = vmatpush1.msra.mxu0 %v2489
  %2491 = vmatprep.subr.mxu0 0.0
  %v2492 = vand.u32 %v89, 4294901760
  %v2493 = vsub.f32 %v89, %v2492
  %v2494 = vand.u32 %v2493, 4294901760
  %2495 = vmatpush1.msra.mxu0 %v2494
  %2496 = vmatprep.subr.mxu0 0.0
  %v2497 = vand.u32 %v90, 4294901760
  %v2498 = vsub.f32 %v90, %v2497
  %v2499 = vand.u32 %v2498, 4294901760
  %2500 = vmatpush1.msra.mxu0 %v2499
  %2501 = vmatprep.subr.mxu0 0.0
  %v2502 = vand.u32 %v91, 4294901760
  %v2503 = vsub.f32 %v91, %v2502
  %v2504 = vand.u32 %v2503, 4294901760
  %2505 = vmatpush1.msra.mxu0 %v2504
  %2506 = vmatprep.subr.mxu0 0.0
  %v2507 = vand.u32 %v92, 4294901760
  %v2508 = vsub.f32 %v92, %v2507
  %v2509 = vand.u32 %v2508, 4294901760
  %2510 = vmatpush1.msra.mxu0 %v2509
  %2511 = vmatprep.subr.mxu0 0.0
  %v2512 = vand.u32 %v93, 4294901760
  %v2513 = vsub.f32 %v93, %v2512
  %v2514 = vand.u32 %v2513, 4294901760
  %2515 = vmatpush1.msra.mxu0 %v2514
  %2516 = vmatprep.subr.mxu0 0.0
  %v2517 = vand.u32 %v94, 4294901760
  %v2518 = vsub.f32 %v94, %v2517
  %v2519 = vand.u32 %v2518, 4294901760
  %2520 = vmatpush1.msra.mxu0 %v2519
  %2521 = vmatprep.subr.mxu0 0.0
  %v2522 = vand.u32 %v95, 4294901760
  %v2523 = vsub.f32 %v95, %v2522
  %v2524 = vand.u32 %v2523, 4294901760
  %2525 = vmatpush1.msra.mxu0 %v2524
  %2526 = vmatprep.subr.mxu0 0.0
  %v2527 = vand.u32 %v96, 4294901760
  %v2528 = vsub.f32 %v96, %v2527
  %v2529 = vand.u32 %v2528, 4294901760
  %2530 = vmatpush1.msra.mxu0 %v2529
  %2531 = vmatprep.subr.mxu0 0.0
  %v2532 = vand.u32 %v97, 4294901760
  %v2533 = vsub.f32 %v97, %v2532
  %v2534 = vand.u32 %v2533, 4294901760
  %2535 = vmatpush1.msra.mxu0 %v2534
  %2536 = vmatprep.subr.mxu0 0.0
  %v2537 = vand.u32 %v98, 4294901760
  %v2538 = vsub.f32 %v98, %v2537
  %v2539 = vand.u32 %v2538, 4294901760
  %2540 = vmatpush1.msra.mxu0 %v2539
  %2541 = vmatprep.subr.mxu0 0.0
  %v2542 = vand.u32 %v99, 4294901760
  %v2543 = vsub.f32 %v99, %v2542
  %v2544 = vand.u32 %v2543, 4294901760
  %2545 = vmatpush1.msra.mxu0 %v2544
  %2546 = vmatprep.subr.mxu0 0.0
  %v2547 = vand.u32 %v100, 4294901760
  %v2548 = vsub.f32 %v100, %v2547
  %v2549 = vand.u32 %v2548, 4294901760
  %2550 = vmatpush1.msra.mxu0 %v2549
  %2551 = vmatprep.subr.mxu0 0.0
  %v2552 = vand.u32 %v101, 4294901760
  %v2553 = vsub.f32 %v101, %v2552
  %v2554 = vand.u32 %v2553, 4294901760
  %2555 = vmatpush1.msra.mxu0 %v2554
  %2556 = vmatprep.subr.mxu0 0.0
  %v2557 = vand.u32 %v102, 4294901760
  %v2558 = vsub.f32 %v102, %v2557
  %v2559 = vand.u32 %v2558, 4294901760
  %2560 = vmatpush1.msra.mxu0 %v2559
  %2561 = vmatprep.subr.mxu0 0.0
  %v2562 = vand.u32 %v103, 4294901760
  %v2563 = vsub.f32 %v103, %v2562
  %v2564 = vand.u32 %v2563, 4294901760
  %2565 = vmatpush1.msra.mxu0 %v2564
  %2566 = vmatprep.subr.mxu0 0.0
  %v2567 = vand.u32 %v104, 4294901760
  %v2568 = vsub.f32 %v104, %v2567
  %v2569 = vand.u32 %v2568, 4294901760
  %2570 = vmatpush1.msra.mxu0 %v2569
  %2571 = vmatprep.subr.mxu0 0.0
  %v2572 = vand.u32 %v105, 4294901760
  %v2573 = vsub.f32 %v105, %v2572
  %v2574 = vand.u32 %v2573, 4294901760
  %2575 = vmatpush1.msra.mxu0 %v2574
  %2576 = vmatprep.subr.mxu0 0.0
  %v2577 = vand.u32 %v106, 4294901760
  %v2578 = vsub.f32 %v106, %v2577
  %v2579 = vand.u32 %v2578, 4294901760
  %2580 = vmatpush1.msra.mxu0 %v2579
  %2581 = vmatprep.subr.mxu0 0.0
  %v2582 = vand.u32 %v107, 4294901760
  %v2583 = vsub.f32 %v107, %v2582
  %v2584 = vand.u32 %v2583, 4294901760
  %2585 = vmatpush1.msra.mxu0 %v2584
  %2586 = vmatprep.subr.mxu0 0.0
  %v2587 = vand.u32 %v108, 4294901760
  %v2588 = vsub.f32 %v108, %v2587
  %v2589 = vand.u32 %v2588, 4294901760
  %2590 = vmatpush1.msra.mxu0 %v2589
  %2591 = vmatprep.subr.mxu0 0.0
  %v2592 = vand.u32 %v109, 4294901760
  %v2593 = vsub.f32 %v109, %v2592
  %v2594 = vand.u32 %v2593, 4294901760
  %2595 = vmatpush1.msra.mxu0 %v2594
  %2596 = vmatprep.subr.mxu0 0.0
  %v2597 = vand.u32 %v110, 4294901760
  %v2598 = vsub.f32 %v110, %v2597
  %v2599 = vand.u32 %v2598, 4294901760
  %2600 = vmatpush1.msra.mxu0 %v2599
  %2601 = vmatprep.subr.mxu0 0.0
  %v2602 = vand.u32 %v111, 4294901760
  %v2603 = vsub.f32 %v111, %v2602
  %v2604 = vand.u32 %v2603, 4294901760
  %2605 = vmatpush1.msra.mxu0 %v2604
  %2606 = vmatprep.subr.mxu0 0.0
  %v2607 = vand.u32 %v112, 4294901760
  %v2608 = vsub.f32 %v112, %v2607
  %v2609 = vand.u32 %v2608, 4294901760
  %2610 = vmatpush1.msra.mxu0 %v2609
  %2611 = vmatprep.subr.mxu0 0.0
  %v2612 = vand.u32 %v113, 4294901760
  %v2613 = vsub.f32 %v113, %v2612
  %v2614 = vand.u32 %v2613, 4294901760
  %2615 = vmatpush1.msra.mxu0 %v2614
  %2616 = vmatprep.subr.mxu0 0.0
  %v2617 = vand.u32 %v114, 4294901760
  %v2618 = vsub.f32 %v114, %v2617
  %v2619 = vand.u32 %v2618, 4294901760
  %2620 = vmatpush1.msra.mxu0 %v2619
  %v2621 = vand.u32 %v16, 4294901760
  %2622 = vmatprep.mubr.f32.mxu0 %v2621
  %v2623 = vand.u32 %v15, 4294901760
  %2624 = vmatmul.mubr.f32.gmra.mrb[0].mxu0 %v2623
  %v2625 = vpop.f32.mrb[0].mxu0
  %v2626 = vadd.f32 %v2458, %v2625
  %v2627 = vpop.f32.mrb[0].mxu0
  %2628 = vdwg.mxu0
  %2629 = vmatprep.subr.mxu0 0.0
  %v2630 = vand.u32 %v83, 4294901760
  %2631 = vmatpush1.msra.mxu0 %v2630
  %2632 = vmatprep.subr.mxu0 0.0
  %v2633 = vand.u32 %v84, 4294901760
  %2634 = vmatpush1.msra.mxu0 %v2633
  %2635 = vmatprep.subr.mxu0 0.0
  %v2636 = vand.u32 %v85, 4294901760
  %2637 = vmatpush1.msra.mxu0 %v2636
  %2638 = vmatprep.subr.mxu0 0.0
  %v2639 = vand.u32 %v86, 4294901760
  %2640 = vmatpush1.msra.mxu0 %v2639
  %2641 = vmatprep.subr.mxu0 0.0
  %v2642 = vand.u32 %v87, 4294901760
  %2643 = vmatpush1.msra.mxu0 %v2642
  %2644 = vmatprep.subr.mxu0 0.0
  %v2645 = vand.u32 %v88, 4294901760
  %2646 = vmatpush1.msra.mxu0 %v2645
  %2647 = vmatprep.subr.mxu0 0.0
  %v2648 = vand.u32 %v89, 4294901760
  %2649 = vmatpush1.msra.mxu0 %v2648
  %2650 = vmatprep.subr.mxu0 0.0
  %v2651 = vand.u32 %v90, 4294901760
  %2652 = vmatpush1.msra.mxu0 %v2651
  %2653 = vmatprep.subr.mxu0 0.0
  %v2654 = vand.u32 %v91, 4294901760
  %2655 = vmatpush1.msra.mxu0 %v2654
  %2656 = vmatprep.subr.mxu0 0.0
  %v2657 = vand.u32 %v92, 4294901760
  %2658 = vmatpush1.msra.mxu0 %v2657
  %2659 = vmatprep.subr.mxu0 0.0
  %v2660 = vand.u32 %v93, 4294901760
  %2661 = vmatpush1.msra.mxu0 %v2660
  %2662 = vmatprep.subr.mxu0 0.0
  %v2663 = vand.u32 %v94, 4294901760
  %2664 = vmatpush1.msra.mxu0 %v2663
  %2665 = vmatprep.subr.mxu0 0.0
  %v2666 = vand.u32 %v95, 4294901760
  %2667 = vmatpush1.msra.mxu0 %v2666
  %2668 = vmatprep.subr.mxu0 0.0
  %v2669 = vand.u32 %v96, 4294901760
  %2670 = vmatpush1.msra.mxu0 %v2669
  %2671 = vmatprep.subr.mxu0 0.0
  %v2672 = vand.u32 %v97, 4294901760
  %2673 = vmatpush1.msra.mxu0 %v2672
  %2674 = vmatprep.subr.mxu0 0.0
  %v2675 = vand.u32 %v98, 4294901760
  %2676 = vmatpush1.msra.mxu0 %v2675
  %2677 = vmatprep.subr.mxu0 0.0
  %v2678 = vand.u32 %v99, 4294901760
  %2679 = vmatpush1.msra.mxu0 %v2678
  %2680 = vmatprep.subr.mxu0 0.0
  %v2681 = vand.u32 %v100, 4294901760
  %2682 = vmatpush1.msra.mxu0 %v2681
  %2683 = vmatprep.subr.mxu0 0.0
  %v2684 = vand.u32 %v101, 4294901760
  %2685 = vmatpush1.msra.mxu0 %v2684
  %2686 = vmatprep.subr.mxu0 0.0
  %v2687 = vand.u32 %v102, 4294901760
  %2688 = vmatpush1.msra.mxu0 %v2687
  %2689 = vmatprep.subr.mxu0 0.0
  %v2690 = vand.u32 %v103, 4294901760
  %2691 = vmatpush1.msra.mxu0 %v2690
  %2692 = vmatprep.subr.mxu0 0.0
  %v2693 = vand.u32 %v104, 4294901760
  %2694 = vmatpush1.msra.mxu0 %v2693
  %2695 = vmatprep.subr.mxu0 0.0
  %v2696 = vand.u32 %v105, 4294901760
  %2697 = vmatpush1.msra.mxu0 %v2696
  %2698 = vmatprep.subr.mxu0 0.0
  %v2699 = vand.u32 %v106, 4294901760
  %2700 = vmatpush1.msra.mxu0 %v2699
  %2701 = vmatprep.subr.mxu0 0.0
  %v2702 = vand.u32 %v107, 4294901760
  %2703 = vmatpush1.msra.mxu0 %v2702
  %2704 = vmatprep.subr.mxu0 0.0
  %v2705 = vand.u32 %v108, 4294901760
  %2706 = vmatpush1.msra.mxu0 %v2705
  %2707 = vmatprep.subr.mxu0 0.0
  %v2708 = vand.u32 %v109, 4294901760
  %2709 = vmatpush1.msra.mxu0 %v2708
  %2710 = vmatprep.subr.mxu0 0.0
  %v2711 = vand.u32 %v110, 4294901760
  %2712 = vmatpush1.msra.mxu0 %v2711
  %2713 = vmatprep.subr.mxu0 0.0
  %v2714 = vand.u32 %v111, 4294901760
  %2715 = vmatpush1.msra.mxu0 %v2714
  %2716 = vmatprep.subr.mxu0 0.0
  %v2717 = vand.u32 %v112, 4294901760
  %2718 = vmatpush1.msra.mxu0 %v2717
  %2719 = vmatprep.subr.mxu0 0.0
  %v2720 = vand.u32 %v113, 4294901760
  %2721 = vmatpush1.msra.mxu0 %v2720
  %2722 = vmatprep.subr.mxu0 0.0
  %v2723 = vand.u32 %v114, 4294901760
  %2724 = vmatpush1.msra.mxu0 %v2723
  %v2725 = vand.u32 %v16, 4294901760
  %2726 = vmatprep.mubr.f32.mxu0 %v2725
  %v2727 = vand.u32 %v15, 4294901760
  %2728 = vmatmul.mubr.f32.gmra.mrb[0].mxu0 %v2727
  %v2729 = vpop.f32.mrb[0].mxu0
  %v2730 = vadd.f32 %v2626, %v2729
  %v2731 = vpop.f32.mrb[0].mxu0
  %2732 = vdwg.mxu0
  %2733 = vmatprep.subr.mxu0 0.0
  %v2734 = vand.u32 %v115, 4294901760
  %2735 = vmatpush1.msra.mxu0 %v2734
  %2736 = vmatprep.subr.mxu0 0.0
  %v2737 = vand.u32 %v116, 4294901760
  %2738 = vmatpush1.msra.mxu0 %v2737
  %2739 = vmatprep.subr.mxu0 0.0
  %v2740 = vand.u32 %v117, 4294901760
  %2741 = vmatpush1.msra.mxu0 %v2740
  %2742 = vmatprep.subr.mxu0 0.0
  %v2743 = vand.u32 %v118, 4294901760
  %2744 = vmatpush1.msra.mxu0 %v2743
  %2745 = vmatprep.subr.mxu0 0.0
  %v2746 = vand.u32 %v119, 4294901760
  %2747 = vmatpush1.msra.mxu0 %v2746
  %2748 = vmatprep.subr.mxu0 0.0
  %v2749 = vand.u32 %v120, 4294901760
  %2750 = vmatpush1.msra.mxu0 %v2749
  %2751 = vmatprep.subr.mxu0 0.0
  %v2752 = vand.u32 %v121, 4294901760
  %2753 = vmatpush1.msra.mxu0 %v2752
  %2754 = vmatprep.subr.mxu0 0.0
  %v2755 = vand.u32 %v122, 4294901760
  %2756 = vmatpush1.msra.mxu0 %v2755
  %2757 = vmatprep.subr.mxu0 0.0
  %v2758 = vand.u32 %v123, 4294901760
  %2759 = vmatpush1.msra.mxu0 %v2758
  %2760 = vmatprep.subr.mxu0 0.0
  %v2761 = vand.u32 %v124, 4294901760
  %2762 = vmatpush1.msra.mxu0 %v2761
  %2763 = vmatprep.subr.mxu0 0.0
  %v2764 = vand.u32 %v125, 4294901760
  %2765 = vmatpush1.msra.mxu0 %v2764
  %2766 = vmatprep.subr.mxu0 0.0
  %v2767 = vand.u32 %v126, 4294901760
  %2768 = vmatpush1.msra.mxu0 %v2767
  %2769 = vmatprep.subr.mxu0 0.0
  %v2770 = vand.u32 %v127, 4294901760
  %2771 = vmatpush1.msra.mxu0 %v2770
  %2772 = vmatprep.subr.mxu0 0.0
  %v2773 = vand.u32 %v128, 4294901760
  %2774 = vmatpush1.msra.mxu0 %v2773
  %2775 = vmatprep.subr.mxu0 0.0
  %v2776 = vand.u32 %v129, 4294901760
  %2777 = vmatpush1.msra.mxu0 %v2776
  %2778 = vmatprep.subr.mxu0 0.0
  %v2779 = vand.u32 %v130, 4294901760
  %2780 = vmatpush1.msra.mxu0 %v2779
  %2781 = vmatprep.subr.mxu0 0.0
  %v2782 = vand.u32 %v131, 4294901760
  %2783 = vmatpush1.msra.mxu0 %v2782
  %2784 = vmatprep.subr.mxu0 0.0
  %v2785 = vand.u32 %v132, 4294901760
  %2786 = vmatpush1.msra.mxu0 %v2785
  %2787 = vmatprep.subr.mxu0 0.0
  %v2788 = vand.u32 %v133, 4294901760
  %2789 = vmatpush1.msra.mxu0 %v2788
  %2790 = vmatprep.subr.mxu0 0.0
  %v2791 = vand.u32 %v134, 4294901760
  %2792 = vmatpush1.msra.mxu0 %v2791
  %2793 = vmatprep.subr.mxu0 0.0
  %v2794 = vand.u32 %v135, 4294901760
  %2795 = vmatpush1.msra.mxu0 %v2794
  %2796 = vmatprep.subr.mxu0 0.0
  %v2797 = vand.u32 %v136, 4294901760
  %2798 = vmatpush1.msra.mxu0 %v2797
  %2799 = vmatprep.subr.mxu0 0.0
  %v2800 = vand.u32 %v137, 4294901760
  %2801 = vmatpush1.msra.mxu0 %v2800
  %2802 = vmatprep.subr.mxu0 0.0
  %v2803 = vand.u32 %v138, 4294901760
  %2804 = vmatpush1.msra.mxu0 %v2803
  %2805 = vmatprep.subr.mxu0 0.0
  %v2806 = vand.u32 %v139, 4294901760
  %2807 = vmatpush1.msra.mxu0 %v2806
  %2808 = vmatprep.subr.mxu0 0.0
  %v2809 = vand.u32 %v140, 4294901760
  %2810 = vmatpush1.msra.mxu0 %v2809
  %2811 = vmatprep.subr.mxu0 0.0
  %v2812 = vand.u32 %v141, 4294901760
  %2813 = vmatpush1.msra.mxu0 %v2812
  %2814 = vmatprep.subr.mxu0 0.0
  %v2815 = vand.u32 %v142, 4294901760
  %2816 = vmatpush1.msra.mxu0 %v2815
  %2817 = vmatprep.subr.mxu0 0.0
  %v2818 = vand.u32 %v143, 4294901760
  %2819 = vmatpush1.msra.mxu0 %v2818
  %2820 = vmatprep.subr.mxu0 0.0
  %v2821 = vand.u32 %v144, 4294901760
  %2822 = vmatpush1.msra.mxu0 %v2821
  %2823 = vmatprep.subr.mxu0 0.0
  %v2824 = vand.u32 %v145, 4294901760
  %2825 = vmatpush1.msra.mxu0 %v2824
  %2826 = vmatprep.subr.mxu0 0.0
  %v2827 = vand.u32 %v146, 4294901760
  %2828 = vmatpush1.msra.mxu0 %v2827
  %v2829 = vand.u32 %v18, 4294901760
  %v2830 = vsub.f32 %v18, %v2829
  %v2831 = vand.u32 %v2830, 4294901760
  %v2832 = vsub.f32 %v2830, %v2831
  %v2833 = vand.u32 %v2832, 4294901760
  %2834 = vmatprep.mubr.f32.mxu0 %v2833
  %v2835 = vand.u32 %v17, 4294901760
  %v2836 = vsub.f32 %v17, %v2835
  %v2837 = vand.u32 %v2836, 4294901760
  %v2838 = vsub.f32 %v2836, %v2837
  %v2839 = vand.u32 %v2838, 4294901760
  %2840 = vmatmul.mubr.f32.gmra.mrb[0].mxu0 %v2839
  %v2841 = vpop.f32.mrb[0].mxu0
  %v2842 = vadd.f32 %v2730, %v2841
  %v2843 = vpop.f32.mrb[0].mxu0
  %2844 = vdwg.mxu0
  %2845 = vmatprep.subr.mxu0 0.0
  %v2846 = vand.u32 %v115, 4294901760
  %v2847 = vsub.f32 %v115, %v2846
  %v2848 = vand.u32 %v2847, 4294901760
  %v2849 = vsub.f32 %v2847, %v2848
  %v2850 = vand.u32 %v2849, 4294901760
  %2851 = vmatpush1.msra.mxu0 %v2850
  %2852 = vmatprep.subr.mxu0 0.0
  %v2853 = vand.u32 %v116, 4294901760
  %v2854 = vsub.f32 %v116, %v2853
  %v2855 = vand.u32 %v2854, 4294901760
  %v2856 = vsub.f32 %v2854, %v2855
  %v2857 = vand.u32 %v2856, 4294901760
  %2858 = vmatpush1.msra.mxu0 %v2857
  %2859 = vmatprep.subr.mxu0 0.0
  %v2860 = vand.u32 %v117, 4294901760
  %v2861 = vsub.f32 %v117, %v2860
  %v2862 = vand.u32 %v2861, 4294901760
  %v2863 = vsub.f32 %v2861, %v2862
  %v2864 = vand.u32 %v2863, 4294901760
  %2865 = vmatpush1.msra.mxu0 %v2864
  %2866 = vmatprep.subr.mxu0 0.0
  %v2867 = vand.u32 %v118, 4294901760
  %v2868 = vsub.f32 %v118, %v2867
  %v2869 = vand.u32 %v2868, 4294901760
  %v2870 = vsub.f32 %v2868, %v2869
  %v2871 = vand.u32 %v2870, 4294901760
  %2872 = vmatpush1.msra.mxu0 %v2871
  %2873 = vmatprep.subr.mxu0 0.0
  %v2874 = vand.u32 %v119, 4294901760
  %v2875 = vsub.f32 %v119, %v2874
  %v2876 = vand.u32 %v2875, 4294901760
  %v2877 = vsub.f32 %v2875, %v2876
  %v2878 = vand.u32 %v2877, 4294901760
  %2879 = vmatpush1.msra.mxu0 %v2878
  %2880 = vmatprep.subr.mxu0 0.0
  %v2881 = vand.u32 %v120, 4294901760
  %v2882 = vsub.f32 %v120, %v2881
  %v2883 = vand.u32 %v2882, 4294901760
  %v2884 = vsub.f32 %v2882, %v2883
  %v2885 = vand.u32 %v2884, 4294901760
  %2886 = vmatpush1.msra.mxu0 %v2885
  %2887 = vmatprep.subr.mxu0 0.0
  %v2888 = vand.u32 %v121, 4294901760
  %v2889 = vsub.f32 %v121, %v2888
  %v2890 = vand.u32 %v2889, 4294901760
  %v2891 = vsub.f32 %v2889, %v2890
  %v2892 = vand.u32 %v2891, 4294901760
  %2893 = vmatpush1.msra.mxu0 %v2892
  %2894 = vmatprep.subr.mxu0 0.0
  %v2895 = vand.u32 %v122, 4294901760
  %v2896 = vsub.f32 %v122, %v2895
  %v2897 = vand.u32 %v2896, 4294901760
  %v2898 = vsub.f32 %v2896, %v2897
  %v2899 = vand.u32 %v2898, 4294901760
  %2900 = vmatpush1.msra.mxu0 %v2899
  %2901 = vmatprep.subr.mxu0 0.0
  %v2902 = vand.u32 %v123, 4294901760
  %v2903 = vsub.f32 %v123, %v2902
  %v2904 = vand.u32 %v2903, 4294901760
  %v2905 = vsub.f32 %v2903, %v2904
  %v2906 = vand.u32 %v2905, 4294901760
  %2907 = vmatpush1.msra.mxu0 %v2906
  %2908 = vmatprep.subr.mxu0 0.0
  %v2909 = vand.u32 %v124, 4294901760
  %v2910 = vsub.f32 %v124, %v2909
  %v2911 = vand.u32 %v2910, 4294901760
  %v2912 = vsub.f32 %v2910, %v2911
  %v2913 = vand.u32 %v2912, 4294901760
  %2914 = vmatpush1.msra.mxu0 %v2913
  %2915 = vmatprep.subr.mxu0 0.0
  %v2916 = vand.u32 %v125, 4294901760
  %v2917 = vsub.f32 %v125, %v2916
  %v2918 = vand.u32 %v2917, 4294901760
  %v2919 = vsub.f32 %v2917, %v2918
  %v2920 = vand.u32 %v2919, 4294901760
  %2921 = vmatpush1.msra.mxu0 %v2920
  %2922 = vmatprep.subr.mxu0 0.0
  %v2923 = vand.u32 %v126, 4294901760
  %v2924 = vsub.f32 %v126, %v2923
  %v2925 = vand.u32 %v2924, 4294901760
  %v2926 = vsub.f32 %v2924, %v2925
  %v2927 = vand.u32 %v2926, 4294901760
  %2928 = vmatpush1.msra.mxu0 %v2927
  %2929 = vmatprep.subr.mxu0 0.0
  %v2930 = vand.u32 %v127, 4294901760
  %v2931 = vsub.f32 %v127, %v2930
  %v2932 = vand.u32 %v2931, 4294901760
  %v2933 = vsub.f32 %v2931, %v2932
  %v2934 = vand.u32 %v2933, 4294901760
  %2935 = vmatpush1.msra.mxu0 %v2934
  %2936 = vmatprep.subr.mxu0 0.0
  %v2937 = vand.u32 %v128, 4294901760
  %v2938 = vsub.f32 %v128, %v2937
  %v2939 = vand.u32 %v2938, 4294901760
  %v2940 = vsub.f32 %v2938, %v2939
  %v2941 = vand.u32 %v2940, 4294901760
  %2942 = vmatpush1.msra.mxu0 %v2941
  %2943 = vmatprep.subr.mxu0 0.0
  %v2944 = vand.u32 %v129, 4294901760
  %v2945 = vsub.f32 %v129, %v2944
  %v2946 = vand.u32 %v2945, 4294901760
  %v2947 = vsub.f32 %v2945, %v2946
  %v2948 = vand.u32 %v2947, 4294901760
  %2949 = vmatpush1.msra.mxu0 %v2948
  %2950 = vmatprep.subr.mxu0 0.0
  %v2951 = vand.u32 %v130, 4294901760
  %v2952 = vsub.f32 %v130, %v2951
  %v2953 = vand.u32 %v2952, 4294901760
  %v2954 = vsub.f32 %v2952, %v2953
  %v2955 = vand.u32 %v2954, 4294901760
  %2956 = vmatpush1.msra.mxu0 %v2955
  %2957 = vmatprep.subr.mxu0 0.0
  %v2958 = vand.u32 %v131, 4294901760
  %v2959 = vsub.f32 %v131, %v2958
  %v2960 = vand.u32 %v2959, 4294901760
  %v2961 = vsub.f32 %v2959, %v2960
  %v2962 = vand.u32 %v2961, 4294901760
  %2963 = vmatpush1.msra.mxu0 %v2962
  %2964 = vmatprep.subr.mxu0 0.0
  %v2965 = vand.u32 %v132, 4294901760
  %v2966 = vsub.f32 %v132, %v2965
  %v2967 = vand.u32 %v2966, 4294901760
  %v2968 = vsub.f32 %v2966, %v2967
  %v2969 = vand.u32 %v2968, 4294901760
  %2970 = vmatpush1.msra.mxu0 %v2969
  %2971 = vmatprep.subr.mxu0 0.0
  %v2972 = vand.u32 %v133, 4294901760
  %v2973 = vsub.f32 %v133, %v2972
  %v2974 = vand.u32 %v2973, 4294901760
  %v2975 = vsub.f32 %v2973, %v2974
  %v2976 = vand.u32 %v2975, 4294901760
  %2977 = vmatpush1.msra.mxu0 %v2976
  %2978 = vmatprep.subr.mxu0 0.0
  %v2979 = vand.u32 %v134, 4294901760
  %v2980 = vsub.f32 %v134, %v2979
  %v2981 = vand.u32 %v2980, 4294901760
  %v2982 = vsub.f32 %v2980, %v2981
  %v2983 = vand.u32 %v2982, 4294901760
  %2984 = vmatpush1.msra.mxu0 %v2983
  %2985 = vmatprep.subr.mxu0 0.0
  %v2986 = vand.u32 %v135, 4294901760
  %v2987 = vsub.f32 %v135, %v2986
  %v2988 = vand.u32 %v2987, 4294901760
  %v2989 = vsub.f32 %v2987, %v2988
  %v2990 = vand.u32 %v2989, 4294901760
  %2991 = vmatpush1.msra.mxu0 %v2990
  %2992 = vmatprep.subr.mxu0 0.0
  %v2993 = vand.u32 %v136, 4294901760
  %v2994 = vsub.f32 %v136, %v2993
  %v2995 = vand.u32 %v2994, 4294901760
  %v2996 = vsub.f32 %v2994, %v2995
  %v2997 = vand.u32 %v2996, 4294901760
  %2998 = vmatpush1.msra.mxu0 %v2997
  %2999 = vmatprep.subr.mxu0 0.0
  %v3000 = vand.u32 %v137, 4294901760
  %v3001 = vsub.f32 %v137, %v3000
  %v3002 = vand.u32 %v3001, 4294901760
  %v3003 = vsub.f32 %v3001, %v3002
  %v3004 = vand.u32 %v3003, 4294901760
  %3005 = vmatpush1.msra.mxu0 %v3004
  %3006 = vmatprep.subr.mxu0 0.0
  %v3007 = vand.u32 %v138, 4294901760
  %v3008 = vsub.f32 %v138, %v3007
  %v3009 = vand.u32 %v3008, 4294901760
  %v3010 = vsub.f32 %v3008, %v3009
  %v3011 = vand.u32 %v3010, 4294901760
  %3012 = vmatpush1.msra.mxu0 %v3011
  %3013 = vmatprep.subr.mxu0 0.0
  %v3014 = vand.u32 %v139, 4294901760
  %v3015 = vsub.f32 %v139, %v3014
  %v3016 = vand.u32 %v3015, 4294901760
  %v3017 = vsub.f32 %v3015, %v3016
  %v3018 = vand.u32 %v3017, 4294901760
  %3019 = vmatpush1.msra.mxu0 %v3018
  %3020 = vmatprep.subr.mxu0 0.0
  %v3021 = vand.u32 %v140, 4294901760
  %v3022 = vsub.f32 %v140, %v3021
  %v3023 = vand.u32 %v3022, 4294901760
  %v3024 = vsub.f32 %v3022, %v3023
  %v3025 = vand.u32 %v3024, 4294901760
  %3026 = vmatpush1.msra.mxu0 %v3025
  %3027 = vmatprep.subr.mxu0 0.0
  %v3028 = vand.u32 %v141, 4294901760
  %v3029 = vsub.f32 %v141, %v3028
  %v3030 = vand.u32 %v3029, 4294901760
  %v3031 = vsub.f32 %v3029, %v3030
  %v3032 = vand.u32 %v3031, 4294901760
  %3033 = vmatpush1.msra.mxu0 %v3032
  %3034 = vmatprep.subr.mxu0 0.0
  %v3035 = vand.u32 %v142, 4294901760
  %v3036 = vsub.f32 %v142, %v3035
  %v3037 = vand.u32 %v3036, 4294901760
  %v3038 = vsub.f32 %v3036, %v3037
  %v3039 = vand.u32 %v3038, 4294901760
  %3040 = vmatpush1.msra.mxu0 %v3039
  %3041 = vmatprep.subr.mxu0 0.0
  %v3042 = vand.u32 %v143, 4294901760
  %v3043 = vsub.f32 %v143, %v3042
  %v3044 = vand.u32 %v3043, 4294901760
  %v3045 = vsub.f32 %v3043, %v3044
  %v3046 = vand.u32 %v3045, 4294901760
  %3047 = vmatpush1.msra.mxu0 %v3046
  %3048 = vmatprep.subr.mxu0 0.0
  %v3049 = vand.u32 %v144, 4294901760
  %v3050 = vsub.f32 %v144, %v3049
  %v3051 = vand.u32 %v3050, 4294901760
  %v3052 = vsub.f32 %v3050, %v3051
  %v3053 = vand.u32 %v3052, 4294901760
  %3054 = vmatpush1.msra.mxu0 %v3053
  %3055 = vmatprep.subr.mxu0 0.0
  %v3056 = vand.u32 %v145, 4294901760
  %v3057 = vsub.f32 %v145, %v3056
  %v3058 = vand.u32 %v3057, 4294901760
  %v3059 = vsub.f32 %v3057, %v3058
  %v3060 = vand.u32 %v3059, 4294901760
  %3061 = vmatpush1.msra.mxu0 %v3060
  %3062 = vmatprep.subr.mxu0 0.0
  %v3063 = vand.u32 %v146, 4294901760
  %v3064 = vsub.f32 %v146, %v3063
  %v3065 = vand.u32 %v3064, 4294901760
  %v3066 = vsub.f32 %v3064, %v3065
  %v3067 = vand.u32 %v3066, 4294901760
  %3068 = vmatpush1.msra.mxu0 %v3067
  %v3069 = vand.u32 %v18, 4294901760
  %3070 = vmatprep.mubr.f32.mxu0 %v3069
  %v3071 = vand.u32 %v17, 4294901760
  %3072 = vmatmul.mubr.f32.gmra.mrb[0].mxu0 %v3071
  %v3073 = vpop.f32.mrb[0].mxu0
  %v3074 = vadd.f32 %v2842, %v3073
  %v3075 = vpop.f32.mrb[0].mxu0
  %3076 = vdwg.mxu0
  %3077 = vmatprep.subr.mxu0 0.0
  %v3078 = vand.u32 %v115, 4294901760
  %v3079 = vsub.f32 %v115, %v3078
  %3080 = vmatpush1.msra.mxu0 %v3079
  %3081 = vmatprep.subr.mxu0 0.0
  %v3082 = vand.u32 %v116, 4294901760
  %v3083 = vsub.f32 %v116, %v3082
  %3084 = vmatpush1.msra.mxu0 %v3083
  %3085 = vmatprep.subr.mxu0 0.0
  %v3086 = vand.u32 %v117, 4294901760
  %v3087 = vsub.f32 %v117, %v3086
  %3088 = vmatpush1.msra.mxu0 %v3087
  %3089 = vmatprep.subr.mxu0 0.0
  %v3090 = vand.u32 %v118, 4294901760
  %v3091 = vsub.f32 %v118, %v3090
  %3092 = vmatpush1.msra.mxu0 %v3091
  %3093 = vmatprep.subr.mxu0 0.0
  %v3094 = vand.u32 %v119, 4294901760
  %v3095 = vsub.f32 %v119, %v3094
  %3096 = vmatpush1.msra.mxu0 %v3095
  %3097 = vmatprep.subr.mxu0 0.0
  %v3098 = vand.u32 %v120, 4294901760
  %v3099 = vsub.f32 %v120, %v3098
  %3100 = vmatpush1.msra.mxu0 %v3099
  %3101 = vmatprep.subr.mxu0 0.0
  %v3102 = vand.u32 %v121, 4294901760
  %v3103 = vsub.f32 %v121, %v3102
  %3104 = vmatpush1.msra.mxu0 %v3103
  %3105 = vmatprep.subr.mxu0 0.0
  %v3106 = vand.u32 %v122, 4294901760
  %v3107 = vsub.f32 %v122, %v3106
  %3108 = vmatpush1.msra.mxu0 %v3107
  %3109 = vmatprep.subr.mxu0 0.0
  %v3110 = vand.u32 %v123, 4294901760
  %v3111 = vsub.f32 %v123, %v3110
  %3112 = vmatpush1.msra.mxu0 %v3111
  %3113 = vmatprep.subr.mxu0 0.0
  %v3114 = vand.u32 %v124, 4294901760
  %v3115 = vsub.f32 %v124, %v3114
  %3116 = vmatpush1.msra.mxu0 %v3115
  %3117 = vmatprep.subr.mxu0 0.0
  %v3118 = vand.u32 %v125, 4294901760
  %v3119 = vsub.f32 %v125, %v3118
  %3120 = vmatpush1.msra.mxu0 %v3119
  %3121 = vmatprep.subr.mxu0 0.0
  %v3122 = vand.u32 %v126, 4294901760
  %v3123 = vsub.f32 %v126, %v3122
  %3124 = vmatpush1.msra.mxu0 %v3123
  %3125 = vmatprep.subr.mxu0 0.0
  %v3126 = vand.u32 %v127, 4294901760
  %v3127 = vsub.f32 %v127, %v3126
  %3128 = vmatpush1.msra.mxu0 %v3127
  %3129 = vmatprep.subr.mxu0 0.0
  %v3130 = vand.u32 %v128, 4294901760
  %v3131 = vsub.f32 %v128, %v3130
  %3132 = vmatpush1.msra.mxu0 %v3131
  %3133 = vmatprep.subr.mxu0 0.0
  %v3134 = vand.u32 %v129, 4294901760
  %v3135 = vsub.f32 %v129, %v3134
  %3136 = vmatpush1.msra.mxu0 %v3135
  %3137 = vmatprep.subr.mxu0 0.0
  %v3138 = vand.u32 %v130, 4294901760
  %v3139 = vsub.f32 %v130, %v3138
  %3140 = vmatpush1.msra.mxu0 %v3139
  %3141 = vmatprep.subr.mxu0 0.0
  %v3142 = vand.u32 %v131, 4294901760
  %v3143 = vsub.f32 %v131, %v3142
  %3144 = vmatpush1.msra.mxu0 %v3143
  %3145 = vmatprep.subr.mxu0 0.0
  %v3146 = vand.u32 %v132, 4294901760
  %v3147 = vsub.f32 %v132, %v3146
  %3148 = vmatpush1.msra.mxu0 %v3147
  %3149 = vmatprep.subr.mxu0 0.0
  %v3150 = vand.u32 %v133, 4294901760
  %v3151 = vsub.f32 %v133, %v3150
  %3152 = vmatpush1.msra.mxu0 %v3151
  %3153 = vmatprep.subr.mxu0 0.0
  %v3154 = vand.u32 %v134, 4294901760
  %v3155 = vsub.f32 %v134, %v3154
  %3156 = vmatpush1.msra.mxu0 %v3155
  %3157 = vmatprep.subr.mxu0 0.0
  %v3158 = vand.u32 %v135, 4294901760
  %v3159 = vsub.f32 %v135, %v3158
  %3160 = vmatpush1.msra.mxu0 %v3159
  %3161 = vmatprep.subr.mxu0 0.0
  %v3162 = vand.u32 %v136, 4294901760
  %v3163 = vsub.f32 %v136, %v3162
  %3164 = vmatpush1.msra.mxu0 %v3163
  %3165 = vmatprep.subr.mxu0 0.0
  %v3166 = vand.u32 %v137, 4294901760
  %v3167 = vsub.f32 %v137, %v3166
  %3168 = vmatpush1.msra.mxu0 %v3167
  %3169 = vmatprep.subr.mxu0 0.0
  %v3170 = vand.u32 %v138, 4294901760
  %v3171 = vsub.f32 %v138, %v3170
  %3172 = vmatpush1.msra.mxu0 %v3171
  %3173 = vmatprep.subr.mxu0 0.0
  %v3174 = vand.u32 %v139, 4294901760
  %v3175 = vsub.f32 %v139, %v3174
  %3176 = vmatpush1.msra.mxu0 %v3175
  %3177 = vmatprep.subr.mxu0 0.0
  %v3178 = vand.u32 %v140, 4294901760
  %v3179 = vsub.f32 %v140, %v3178
  %3180 = vmatpush1.msra.mxu0 %v3179
  %3181 = vmatprep.subr.mxu0 0.0
  %v3182 = vand.u32 %v141, 4294901760
  %v3183 = vsub.f32 %v141, %v3182
  %3184 = vmatpush1.msra.mxu0 %v3183
  %3185 = vmatprep.subr.mxu0 0.0
  %v3186 = vand.u32 %v142, 4294901760
  %v3187 = vsub.f32 %v142, %v3186
  %3188 = vmatpush1.msra.mxu0 %v3187
  %3189 = vmatprep.subr.mxu0 0.0
  %v3190 = vand.u32 %v143, 4294901760
  %v3191 = vsub.f32 %v143, %v3190
  %3192 = vmatpush1.msra.mxu0 %v3191
  %3193 = vmatprep.subr.mxu0 0.0
  %v3194 = vand.u32 %v144, 4294901760
  %v3195 = vsub.f32 %v144, %v3194
  %3196 = vmatpush1.msra.mxu0 %v3195
  %3197 = vmatprep.subr.mxu0 0.0
  %v3198 = vand.u32 %v145, 4294901760
  %v3199 = vsub.f32 %v145, %v3198
  %3200 = vmatpush1.msra.mxu0 %v3199
  %3201 = vmatprep.subr.mxu0 0.0
  %v3202 = vand.u32 %v146, 4294901760
  %v3203 = vsub.f32 %v146, %v3202
  %3204 = vmatpush1.msra.mxu0 %v3203
  %v3205 = vand.u32 %v18, 4294901760
  %v3206 = vsub.f32 %v18, %v3205
  %3207 = vmatprep.mubr.f32.mxu0 %v3206
  %v3208 = vand.u32 %v17, 4294901760
  %v3209 = vsub.f32 %v17, %v3208
  %3210 = vmatmul.mubr.f32.gmra.mrb[0].mxu0 %v3209
  %v3211 = vpop.f32.mrb[0].mxu0
  %v3212 = vadd.f32 %v3074, %v3211
  %v3213 = vpop.f32.mrb[0].mxu0
  %3214 = vdwg.mxu0
  %3215 = vmatprep.subr.mxu0 0.0
  %v3216 = vand.u32 %v115, 4294901760
  %3217 = vmatpush1.msra.mxu0 %v3216
  %3218 = vmatprep.subr.mxu0 0.0
  %v3219 = vand.u32 %v116, 4294901760
  %3220 = vmatpush1.msra.mxu0 %v3219
  %3221 = vmatprep.subr.mxu0 0.0
  %v3222 = vand.u32 %v117, 4294901760
  %3223 = vmatpush1.msra.mxu0 %v3222
  %3224 = vmatprep.subr.mxu0 0.0
  %v3225 = vand.u32 %v118, 4294901760
  %3226 = vmatpush1.msra.mxu0 %v3225
  %3227 = vmatprep.subr.mxu0 0.0
  %v3228 = vand.u32 %v119, 4294901760
  %3229 = vmatpush1.msra.mxu0 %v3228
  %3230 = vmatprep.subr.mxu0 0.0
  %v3231 = vand.u32 %v120, 4294901760
  %3232 = vmatpush1.msra.mxu0 %v3231
  %3233 = vmatprep.subr.mxu0 0.0
  %v3234 = vand.u32 %v121, 4294901760
  %3235 = vmatpush1.msra.mxu0 %v3234
  %3236 = vmatprep.subr.mxu0 0.0
  %v3237 = vand.u32 %v122, 4294901760
  %3238 = vmatpush1.msra.mxu0 %v3237
  %3239 = vmatprep.subr.mxu0 0.0
  %v3240 = vand.u32 %v123, 4294901760
  %3241 = vmatpush1.msra.mxu0 %v3240
  %3242 = vmatprep.subr.mxu0 0.0
  %v3243 = vand.u32 %v124, 4294901760
  %3244 = vmatpush1.msra.mxu0 %v3243
  %3245 = vmatprep.subr.mxu0 0.0
  %v3246 = vand.u32 %v125, 4294901760
  %3247 = vmatpush1.msra.mxu0 %v3246
  %3248 = vmatprep.subr.mxu0 0.0
  %v3249 = vand.u32 %v126, 4294901760
  %3250 = vmatpush1.msra.mxu0 %v3249
  %3251 = vmatprep.subr.mxu0 0.0
  %v3252 = vand.u32 %v127, 4294901760
  %3253 = vmatpush1.msra.mxu0 %v3252
  %3254 = vmatprep.subr.mxu0 0.0
  %v3255 = vand.u32 %v128, 4294901760
  %3256 = vmatpush1.msra.mxu0 %v3255
  %3257 = vmatprep.subr.mxu0 0.0
  %v3258 = vand.u32 %v129, 4294901760
  %3259 = vmatpush1.msra.mxu0 %v3258
  %3260 = vmatprep.subr.mxu0 0.0
  %v3261 = vand.u32 %v130, 4294901760
  %3262 = vmatpush1.msra.mxu0 %v3261
  %3263 = vmatprep.subr.mxu0 0.0
  %v3264 = vand.u32 %v131, 4294901760
  %3265 = vmatpush1.msra.mxu0 %v3264
  %3266 = vmatprep.subr.mxu0 0.0
  %v3267 = vand.u32 %v132, 4294901760
  %3268 = vmatpush1.msra.mxu0 %v3267
  %3269 = vmatprep.subr.mxu0 0.0
  %v3270 = vand.u32 %v133, 4294901760
  %3271 = vmatpush1.msra.mxu0 %v3270
  %3272 = vmatprep.subr.mxu0 0.0
  %v3273 = vand.u32 %v134, 4294901760
  %3274 = vmatpush1.msra.mxu0 %v3273
  %3275 = vmatprep.subr.mxu0 0.0
  %v3276 = vand.u32 %v135, 4294901760
  %3277 = vmatpush1.msra.mxu0 %v3276
  %3278 = vmatprep.subr.mxu0 0.0
  %v3279 = vand.u32 %v136, 4294901760
  %3280 = vmatpush1.msra.mxu0 %v3279
  %3281 = vmatprep.subr.mxu0 0.0
  %v3282 = vand.u32 %v137, 4294901760
  %3283 = vmatpush1.msra.mxu0 %v3282
  %3284 = vmatprep.subr.mxu0 0.0
  %v3285 = vand.u32 %v138, 4294901760
  %3286 = vmatpush1.msra.mxu0 %v3285
  %3287 = vmatprep.subr.mxu0 0.0
  %v3288 = vand.u32 %v139, 4294901760
  %3289 = vmatpush1.msra.mxu0 %v3288
  %3290 = vmatprep.subr.mxu0 0.0
  %v3291 = vand.u32 %v140, 4294901760
  %3292 = vmatpush1.msra.mxu0 %v3291
  %3293 = vmatprep.subr.mxu0 0.0
  %v3294 = vand.u32 %v141, 4294901760
  %3295 = vmatpush1.msra.mxu0 %v3294
  %3296 = vmatprep.subr.mxu0 0.0
  %v3297 = vand.u32 %v142, 4294901760
  %3298 = vmatpush1.msra.mxu0 %v3297
  %3299 = vmatprep.subr.mxu0 0.0
  %v3300 = vand.u32 %v143, 4294901760
  %3301 = vmatpush1.msra.mxu0 %v3300
  %3302 = vmatprep.subr.mxu0 0.0
  %v3303 = vand.u32 %v144, 4294901760
  %3304 = vmatpush1.msra.mxu0 %v3303
  %3305 = vmatprep.subr.mxu0 0.0
  %v3306 = vand.u32 %v145, 4294901760
  %3307 = vmatpush1.msra.mxu0 %v3306
  %3308 = vmatprep.subr.mxu0 0.0
  %v3309 = vand.u32 %v146, 4294901760
  %3310 = vmatpush1.msra.mxu0 %v3309
  %v3311 = vand.u32 %v18, 4294901760
  %v3312 = vsub.f32 %v18, %v3311
  %v3313 = vand.u32 %v3312, 4294901760
  %3314 = vmatprep.mubr.f32.mxu0 %v3313
  %v3315 = vand.u32 %v17, 4294901760
  %v3316 = vsub.f32 %v17, %v3315
  %v3317 = vand.u32 %v3316, 4294901760
  %3318 = vmatmul.mubr.f32.gmra.mrb[0].mxu0 %v3317
  %v3319 = vpop.f32.mrb[0].mxu0
  %v3320 = vadd.f32 %v3212, %v3319
  %v3321 = vpop.f32.mrb[0].mxu0
  %3322 = vdwg.mxu0
  %3323 = vmatprep.subr.mxu0 0.0
  %v3324 = vand.u32 %v115, 4294901760
  %v3325 = vsub.f32 %v115, %v3324
  %v3326 = vand.u32 %v3325, 4294901760
  %3327 = vmatpush1.msra.mxu0 %v3326
  %3328 = vmatprep.subr.mxu0 0.0
  %v3329 = vand.u32 %v116, 4294901760
  %v3330 = vsub.f32 %v116, %v3329
  %v3331 = vand.u32 %v3330, 4294901760
  %3332 = vmatpush1.msra.mxu0 %v3331
  %3333 = vmatprep.subr.mxu0 0.0
  %v3334 = vand.u32 %v117, 4294901760
  %v3335 = vsub.f32 %v117, %v3334
  %v3336 = vand.u32 %v3335, 4294901760
  %3337 = vmatpush1.msra.mxu0 %v3336
  %3338 = vmatprep.subr.mxu0 0.0
  %v3339 = vand.u32 %v118, 4294901760
  %v3340 = vsub.f32 %v118, %v3339
  %v3341 = vand.u32 %v3340, 4294901760
  %3342 = vmatpush1.msra.mxu0 %v3341
  %3343 = vmatprep.subr.mxu0 0.0
  %v3344 = vand.u32 %v119, 4294901760
  %v3345 = vsub.f32 %v119, %v3344
  %v3346 = vand.u32 %v3345, 4294901760
  %3347 = vmatpush1.msra.mxu0 %v3346
  %3348 = vmatprep.subr.mxu0 0.0
  %v3349 = vand.u32 %v120, 4294901760
  %v3350 = vsub.f32 %v120, %v3349
  %v3351 = vand.u32 %v3350, 4294901760
  %3352 = vmatpush1.msra.mxu0 %v3351
  %3353 = vmatprep.subr.mxu0 0.0
  %v3354 = vand.u32 %v121, 4294901760
  %v3355 = vsub.f32 %v121, %v3354
  %v3356 = vand.u32 %v3355, 4294901760
  %3357 = vmatpush1.msra.mxu0 %v3356
  %3358 = vmatprep.subr.mxu0 0.0
  %v3359 = vand.u32 %v122, 4294901760
  %v3360 = vsub.f32 %v122, %v3359
  %v3361 = vand.u32 %v3360, 4294901760
  %3362 = vmatpush1.msra.mxu0 %v3361
  %3363 = vmatprep.subr.mxu0 0.0
  %v3364 = vand.u32 %v123, 4294901760
  %v3365 = vsub.f32 %v123, %v3364
  %v3366 = vand.u32 %v3365, 4294901760
  %3367 = vmatpush1.msra.mxu0 %v3366
  %3368 = vmatprep.subr.mxu0 0.0
  %v3369 = vand.u32 %v124, 4294901760
  %v3370 = vsub.f32 %v124, %v3369
  %v3371 = vand.u32 %v3370, 4294901760
  %3372 = vmatpush1.msra.mxu0 %v3371
  %3373 = vmatprep.subr.mxu0 0.0
  %v3374 = vand.u32 %v125, 4294901760
  %v3375 = vsub.f32 %v125, %v3374
  %v3376 = vand.u32 %v3375, 4294901760
  %3377 = vmatpush1.msra.mxu0 %v3376
  %3378 = vmatprep.subr.mxu0 0.0
  %v3379 = vand.u32 %v126, 4294901760
  %v3380 = vsub.f32 %v126, %v3379
  %v3381 = vand.u32 %v3380, 4294901760
  %3382 = vmatpush1.msra.mxu0 %v3381
  %3383 = vmatprep.subr.mxu0 0.0
  %v3384 = vand.u32 %v127, 4294901760
  %v3385 = vsub.f32 %v127, %v3384
  %v3386 = vand.u32 %v3385, 4294901760
  %3387 = vmatpush1.msra.mxu0 %v3386
  %3388 = vmatprep.subr.mxu0 0.0
  %v3389 = vand.u32 %v128, 4294901760
  %v3390 = vsub.f32 %v128, %v3389
  %v3391 = vand.u32 %v3390, 4294901760
  %3392 = vmatpush1.msra.mxu0 %v3391
  %3393 = vmatprep.subr.mxu0 0.0
  %v3394 = vand.u32 %v129, 4294901760
  %v3395 = vsub.f32 %v129, %v3394
  %v3396 = vand.u32 %v3395, 4294901760
  %3397 = vmatpush1.msra.mxu0 %v3396
  %3398 = vmatprep.subr.mxu0 0.0
  %v3399 = vand.u32 %v130, 4294901760
  %v3400 = vsub.f32 %v130, %v3399
  %v3401 = vand.u32 %v3400, 4294901760
  %3402 = vmatpush1.msra.mxu0 %v3401
  %3403 = vmatprep.subr.mxu0 0.0
  %v3404 = vand.u32 %v131, 4294901760
  %v3405 = vsub.f32 %v131, %v3404
  %v3406 = vand.u32 %v3405, 4294901760
  %3407 = vmatpush1.msra.mxu0 %v3406
  %3408 = vmatprep.subr.mxu0 0.0
  %v3409 = vand.u32 %v132, 4294901760
  %v3410 = vsub.f32 %v132, %v3409
  %v3411 = vand.u32 %v3410, 4294901760
  %3412 = vmatpush1.msra.mxu0 %v3411
  %3413 = vmatprep.subr.mxu0 0.0
  %v3414 = vand.u32 %v133, 4294901760
  %v3415 = vsub.f32 %v133, %v3414
  %v3416 = vand.u32 %v3415, 4294901760
  %3417 = vmatpush1.msra.mxu0 %v3416
  %3418 = vmatprep.subr.mxu0 0.0
  %v3419 = vand.u32 %v134, 4294901760
  %v3420 = vsub.f32 %v134, %v3419
  %v3421 = vand.u32 %v3420, 4294901760
  %3422 = vmatpush1.msra.mxu0 %v3421
  %3423 = vmatprep.subr.mxu0 0.0
  %v3424 = vand.u32 %v135, 4294901760
  %v3425 = vsub.f32 %v135, %v3424
  %v3426 = vand.u32 %v3425, 4294901760
  %3427 = vmatpush1.msra.mxu0 %v3426
  %3428 = vmatprep.subr.mxu0 0.0
  %v3429 = vand.u32 %v136, 4294901760
  %v3430 = vsub.f32 %v136, %v3429
  %v3431 = vand.u32 %v3430, 4294901760
  %3432 = vmatpush1.msra.mxu0 %v3431
  %3433 = vmatprep.subr.mxu0 0.0
  %v3434 = vand.u32 %v137, 4294901760
  %v3435 = vsub.f32 %v137, %v3434
  %v3436 = vand.u32 %v3435, 4294901760
  %3437 = vmatpush1.msra.mxu0 %v3436
  %3438 = vmatprep.subr.mxu0 0.0
  %v3439 = vand.u32 %v138, 4294901760
  %v3440 = vsub.f32 %v138, %v3439
  %v3441 = vand.u32 %v3440, 4294901760
  %3442 = vmatpush1.msra.mxu0 %v3441
  %3443 = vmatprep.subr.mxu0 0.0
  %v3444 = vand.u32 %v139, 4294901760
  %v3445 = vsub.f32 %v139, %v3444
  %v3446 = vand.u32 %v3445, 4294901760
  %3447 = vmatpush1.msra.mxu0 %v3446
  %3448 = vmatprep.subr.mxu0 0.0
  %v3449 = vand.u32 %v140, 4294901760
  %v3450 = vsub.f32 %v140, %v3449
  %v3451 = vand.u32 %v3450, 4294901760
  %3452 = vmatpush1.msra.mxu0 %v3451
  %3453 = vmatprep.subr.mxu0 0.0
  %v3454 = vand.u32 %v141, 4294901760
  %v3455 = vsub.f32 %v141, %v3454
  %v3456 = vand.u32 %v3455, 4294901760
  %3457 = vmatpush1.msra.mxu0 %v3456
  %3458 = vmatprep.subr.mxu0 0.0
  %v3459 = vand.u32 %v142, 4294901760
  %v3460 = vsub.f32 %v142, %v3459
  %v3461 = vand.u32 %v3460, 4294901760
  %3462 = vmatpush1.msra.mxu0 %v3461
  %3463 = vmatprep.subr.mxu0 0.0
  %v3464 = vand.u32 %v143, 4294901760
  %v3465 = vsub.f32 %v143, %v3464
  %v3466 = vand.u32 %v3465, 4294901760
  %3467 = vmatpush1.msra.mxu0 %v3466
  %3468 = vmatprep.subr.mxu0 0.0
  %v3469 = vand.u32 %v144, 4294901760
  %v3470 = vsub.f32 %v144, %v3469
  %v3471 = vand.u32 %v3470, 4294901760
  %3472 = vmatpush1.msra.mxu0 %v3471
  %3473 = vmatprep.subr.mxu0 0.0
  %v3474 = vand.u32 %v145, 4294901760
  %v3475 = vsub.f32 %v145, %v3474
  %v3476 = vand.u32 %v3475, 4294901760
  %3477 = vmatpush1.msra.mxu0 %v3476
  %3478 = vmatprep.subr.mxu0 0.0
  %v3479 = vand.u32 %v146, 4294901760
  %v3480 = vsub.f32 %v146, %v3479
  %v3481 = vand.u32 %v3480, 4294901760
  %3482 = vmatpush1.msra.mxu0 %v3481
  %v3483 = vand.u32 %v18, 4294901760
  %3484 = vmatprep.mubr.f32.mxu0 %v3483
  %v3485 = vand.u32 %v17, 4294901760
  %3486 = vmatmul.mubr.f32.gmra.mrb[0].mxu0 %v3485
  %v3487 = vpop.f32.mrb[0].mxu0
  %v3488 = vadd.f32 %v3320, %v3487
  %v3489 = vpop.f32.mrb[0].mxu0
  %3490 = vdwg.mxu0
  %3491 = vmatprep.subr.mxu0 0.0
  %v3492 = vand.u32 %v115, 4294901760
  %3493 = vmatpush1.msra.mxu0 %v3492
  %3494 = vmatprep.subr.mxu0 0.0
  %v3495 = vand.u32 %v116, 4294901760
  %3496 = vmatpush1.msra.mxu0 %v3495
  %3497 = vmatprep.subr.mxu0 0.0
  %v3498 = vand.u32 %v117, 4294901760
  %3499 = vmatpush1.msra.mxu0 %v3498
  %3500 = vmatprep.subr.mxu0 0.0
  %v3501 = vand.u32 %v118, 4294901760
  %3502 = vmatpush1.msra.mxu0 %v3501
  %3503 = vmatprep.subr.mxu0 0.0
  %v3504 = vand.u32 %v119, 4294901760
  %3505 = vmatpush1.msra.mxu0 %v3504
  %3506 = vmatprep.subr.mxu0 0.0
  %v3507 = vand.u32 %v120, 4294901760
  %3508 = vmatpush1.msra.mxu0 %v3507
  %3509 = vmatprep.subr.mxu0 0.0
  %v3510 = vand.u32 %v121, 4294901760
  %3511 = vmatpush1.msra.mxu0 %v3510
  %3512 = vmatprep.subr.mxu0 0.0
  %v3513 = vand.u32 %v122, 4294901760
  %3514 = vmatpush1.msra.mxu0 %v3513
  %3515 = vmatprep.subr.mxu0 0.0
  %v3516 = vand.u32 %v123, 4294901760
  %3517 = vmatpush1.msra.mxu0 %v3516
  %3518 = vmatprep.subr.mxu0 0.0
  %v3519 = vand.u32 %v124, 4294901760
  %3520 = vmatpush1.msra.mxu0 %v3519
  %3521 = vmatprep.subr.mxu0 0.0
  %v3522 = vand.u32 %v125, 4294901760
  %3523 = vmatpush1.msra.mxu0 %v3522
  %3524 = vmatprep.subr.mxu0 0.0
  %v3525 = vand.u32 %v126, 4294901760
  %3526 = vmatpush1.msra.mxu0 %v3525
  %3527 = vmatprep.subr.mxu0 0.0
  %v3528 = vand.u32 %v127, 4294901760
  %3529 = vmatpush1.msra.mxu0 %v3528
  %3530 = vmatprep.subr.mxu0 0.0
  %v3531 = vand.u32 %v128, 4294901760
  %3532 = vmatpush1.msra.mxu0 %v3531
  %3533 = vmatprep.subr.mxu0 0.0
  %v3534 = vand.u32 %v129, 4294901760
  %3535 = vmatpush1.msra.mxu0 %v3534
  %3536 = vmatprep.subr.mxu0 0.0
  %v3537 = vand.u32 %v130, 4294901760
  %3538 = vmatpush1.msra.mxu0 %v3537
  %3539 = vmatprep.subr.mxu0 0.0
  %v3540 = vand.u32 %v131, 4294901760
  %3541 = vmatpush1.msra.mxu0 %v3540
  %3542 = vmatprep.subr.mxu0 0.0
  %v3543 = vand.u32 %v132, 4294901760
  %3544 = vmatpush1.msra.mxu0 %v3543
  %3545 = vmatprep.subr.mxu0 0.0
  %v3546 = vand.u32 %v133, 4294901760
  %3547 = vmatpush1.msra.mxu0 %v3546
  %3548 = vmatprep.subr.mxu0 0.0
  %v3549 = vand.u32 %v134, 4294901760
  %3550 = vmatpush1.msra.mxu0 %v3549
  %3551 = vmatprep.subr.mxu0 0.0
  %v3552 = vand.u32 %v135, 4294901760
  %3553 = vmatpush1.msra.mxu0 %v3552
  %3554 = vmatprep.subr.mxu0 0.0
  %v3555 = vand.u32 %v136, 4294901760
  %3556 = vmatpush1.msra.mxu0 %v3555
  %3557 = vmatprep.subr.mxu0 0.0
  %v3558 = vand.u32 %v137, 4294901760
  %3559 = vmatpush1.msra.mxu0 %v3558
  %3560 = vmatprep.subr.mxu0 0.0
  %v3561 = vand.u32 %v138, 4294901760
  %3562 = vmatpush1.msra.mxu0 %v3561
  %3563 = vmatprep.subr.mxu0 0.0
  %v3564 = vand.u32 %v139, 4294901760
  %3565 = vmatpush1.msra.mxu0 %v3564
  %3566 = vmatprep.subr.mxu0 0.0
  %v3567 = vand.u32 %v140, 4294901760
  %3568 = vmatpush1.msra.mxu0 %v3567
  %3569 = vmatprep.subr.mxu0 0.0
  %v3570 = vand.u32 %v141, 4294901760
  %3571 = vmatpush1.msra.mxu0 %v3570
  %3572 = vmatprep.subr.mxu0 0.0
  %v3573 = vand.u32 %v142, 4294901760
  %3574 = vmatpush1.msra.mxu0 %v3573
  %3575 = vmatprep.subr.mxu0 0.0
  %v3576 = vand.u32 %v143, 4294901760
  %3577 = vmatpush1.msra.mxu0 %v3576
  %3578 = vmatprep.subr.mxu0 0.0
  %v3579 = vand.u32 %v144, 4294901760
  %3580 = vmatpush1.msra.mxu0 %v3579
  %3581 = vmatprep.subr.mxu0 0.0
  %v3582 = vand.u32 %v145, 4294901760
  %3583 = vmatpush1.msra.mxu0 %v3582
  %3584 = vmatprep.subr.mxu0 0.0
  %v3585 = vand.u32 %v146, 4294901760
  %3586 = vmatpush1.msra.mxu0 %v3585
  %v3587 = vand.u32 %v18, 4294901760
  %3588 = vmatprep.mubr.f32.mxu0 %v3587
  %v3589 = vand.u32 %v17, 4294901760
  %3590 = vmatmul.mubr.f32.gmra.mrb[0].mxu0 %v3589
  %v3591 = vpop.f32.mrb[0].mxu0
  %v3592 = vadd.f32 %v3488, %v3591
  %v3593 = vpop.f32.mrb[0].mxu0
  %3594 = vdwg.mxu0
  %3595 = vst [vmem:[%s2] sm:$0xff] %v3592
  // Predicated region
  $region10: #{intensity_sum_pallas.1} parent=0 // pred_check
    _
  $region11: #{intensity_sum_pallas.1} parent=0 // pred_check_branch
    %3597 = sbr.rel (0) target = $region13
  $region12: #{intensity_sum_pallas.1} parent=0 // pred_region
    _
  $region13: #{intensity_sum_pallas.1} parent=0 // pred_fallthru
    _
  // Predicated region
  $region14: #{intensity_sum_pallas.1} parent=0 // pred_check
    _
  $region15: #{intensity_sum_pallas.1} parent=0 // pred_check_branch
    %3599 = sbr.rel (0) target = $region17
  $region16: #{intensity_sum_pallas.1} parent=0 // pred_region
    _
  $region17: #{intensity_sum_pallas.1} parent=0 // pred_fallthru
    _

</llo_original>
